<compile_context>
chip_gen: v7x
topology: tpu7x:2x2x1
jax: 0.10.0
libtpu: 0.0.40
codegen_flags: <defaults>
</compile_context>

<pallas_src>
from functools import partial

import jax
import jax.numpy as jnp
from jax.experimental import pallas as pl
from jax.experimental.pallas import tpu as pltpu


def _round_up(a, b):
    return (a + b - 1) // b * b


def _vmem_budget():
    """(per-tile working-set budget, vmem_limit_bytes) — generation aware when possible."""
    try:
        cap = pltpu.get_tpu_info().vmem_capacity_bytes      # 64 MiB on v7x, 128 MiB v5e/v6e
        budget = min(24 << 20, max(8 << 20, cap // 6))
        limit = min(64 << 20, cap // 2)
        return int(budget), int(limit)
    except Exception:                                        # pragma: no cover - fallback
        return 10 << 20, 32 << 20


# --------------------------------------------------------------------------------------
# Pass 1: conv (in-kernel tap streaming) + per-tile partial BN statistics
# --------------------------------------------------------------------------------------
def _conv_stats_kernel(x_ref, w_ref, y_ref, stats_ref, *, taps, th, Wo):
    """x_ref:   (1, P, Hq, Wq, Cin) bf16   whole padded plane (phase-split) for batch n
       w_ref:   (K*K, Cin, Cout)    bf16   resident weights, one (Cin,Cout) slab per tap
       y_ref:   (th*Wo, Cout)       bf16   conv output rows for this (n, row-tile)
       stats_ref: (1, 1, 2, Cout)   f32    per-tile [sum; sum_of_squares] per channel
    """
    i = pl.program_id(1)
    oh0 = i * th
    cin = x_ref.shape[-1]
    cout = w_ref.shape[-1]

    acc = jnp.zeros((th * Wo, cout), jnp.float32)
    # K*K taps, statically unrolled: each tap is a unit-stride VMEM slice + MXU matmul.
    for (ph, qi, qj, t) in taps:
        xs = x_ref[0, ph, pl.ds(oh0 + qi, th), pl.ds(qj, Wo), :]        # (th, Wo, Cin)
        acc = acc + jnp.dot(xs.reshape(th * Wo, cin), w_ref[t],
                            preferred_element_type=jnp.float32)

    # Store the intermediate in bf16 (halves the HBM stream); stats come from the f32 acc.
    y_ref[...] = acc.astype(y_ref.dtype)
    s = jnp.sum(acc, axis=0, keepdims=True)                              # (1, Cout)
    q = jnp.sum(acc * acc, axis=0, keepdims=True)                        # (1, Cout)
    stats_ref[...] = jnp.concatenate([s, q], axis=0).reshape(1, 1, 2, cout)


# --------------------------------------------------------------------------------------
# Pass 2: precomputed BN affine + LeakyReLU (pure streaming, bf16 in / bf16 out)
# --------------------------------------------------------------------------------------
def _affine_lrelu_kernel(y_ref, scale_ref, shift_ref, o_ref, *, slope):
    z = y_ref[...].astype(jnp.float32) * scale_ref[...] + shift_ref[...]
    o_ref[...] = jnp.where(z >= 0, z, slope * z).astype(o_ref.dtype)


# --------------------------------------------------------------------------------------
# ConvBlock = ReflectionPad2d -> Conv2d -> BatchNorm2d(batch stats) -> LeakyReLU  (NHWC)
# --------------------------------------------------------------------------------------
def conv_block_nhwc(x_nhwc, w, gamma, beta, *, kernel_size, stride,
                    leaky_slope=0.2, eps=1e-5):
    N, H, W, Cin = x_nhwc.shape
    Cout = w.shape[0]
    K = kernel_size
    s = stride
    pad = (K - s + 1) // 2
    assert pad < H and pad < W, "ReflectionPad2d requires pad < spatial dims"

    Hp, Wp = H + 2 * pad, W + 2 * pad
    Ho = (Hp - K) // s + 1
    Wo = (Wp - K) // s + 1
    P = s * s
    qmax = (K - 1) // s

    budget, vmem_limit = _vmem_budget()

    # --- choose the output-row tile height (multiple of 8, divides Ho_pad) --------------
    plane_bytes = 2 * P * (Ho + qmax + 8) * (Wo + qmax) * Cin            # bf16, generous
    w_bytes = 2 * K * K * Cin * Cout
    fixed = 2 * plane_bytes + 2 * w_bytes                                # double-buffered
    per_row = Wo * (Cout * (2 * 2 + 4) + K * K * Cin * 4)                # y dbl-buf + f32 acc + taps
    avail = budget - fixed
    th = avail // per_row if avail > per_row * 8 else 8
    th = max(8, min(int(th), _round_up(Ho, 8)))
    th = max(8, (th // 8) * 8)
    Ho_pad = _round_up(Ho, th)
    T = Ho_pad // th

    # --- stride-phase split (space-to-depth): byte-neutral, done once in XLA ------------
    # Phase (pi,pj)[n,h,w,c] == x_pad[n, s*h+pi, s*w+pj, c]; a K*K tap (ki,kj) then reads
    # phase (ki%s, kj%s) at unit-stride offset (ki//s, kj//s) relative to the output pixel.
    Hq = Ho_pad + qmax
    Wq = Wo + qmax
    xb = jnp.pad(x_nhwc, ((0, 0), (pad, pad), (pad, pad), (0, 0)),
                 mode="reflect").astype(jnp.bfloat16)
    phases = []
    for pi in range(s):
        for pj in range(s):
            ph = xb[:, pi::s, pj::s, :]
            ph = ph[:, :Hq, :Wq, :]
            ph = jnp.pad(ph, ((0, 0), (0, Hq - ph.shape[1]),
                              (0, Wq - ph.shape[2]), (0, 0)))
            phases.append(ph)
    x_ph = jnp.stack(phases, axis=1)                                     # (N, P, Hq, Wq, Cin)

    taps = tuple(((ki % s) * s + (kj % s), ki // s, kj // s, ki * K + kj)
                 for ki in range(K) for kj in range(K))

    # PyTorch conv weight (Cout, Cin, K, K) -> per-tap (Cin, Cout) slabs, bf16.
    w_taps = jnp.transpose(w, (2, 3, 1, 0)).reshape(K * K, Cin, Cout).astype(jnp.bfloat16)

    M_pad = N * Ho_pad * Wo
    cparams = pltpu.CompilerParams(
        dimension_semantics=("parallel", "arbitrary"),
        vmem_limit_bytes=vmem_limit,
    )

    # --- Pass 1: conv + per-tile partial BN stats ----------------------------------------
    y, stats = pl.pallas_call(
        partial(_conv_stats_kernel, taps=taps, th=th, Wo=Wo),
        grid=(N, T),
        in_specs=[
            # whole phase-split plane for batch n, resident across the row-tile axis
            pl.BlockSpec((1, P, Hq, Wq, Cin), lambda n, i: (n, 0, 0, 0, 0)),
            # resident weights
            pl.BlockSpec((K * K, Cin, Cout), lambda n, i: (0, 0, 0)),
        ],
        out_specs=(
            pl.BlockSpec((th * Wo, Cout), lambda n, i: (n * T + i, 0)),
            pl.BlockSpec((1, 1, 2, Cout), lambda n, i: (n, i, 0, 0)),
        ),
        out_shape=(
            jax.ShapeDtypeStruct((M_pad, Cout), jnp.bfloat16),
            jax.ShapeDtypeStruct((N, T, 2, Cout), jnp.float32),
        ),
        compiler_params=cparams,
    )(x_ph, w_taps)

    # --- tiny cross-tile reduction + BN scale/shift precompute (XLA) ---------------------
    # Padded (zero) output rows contribute exactly 0 to sum/sumsq, so dividing by the true
    # element count keeps the batch statistics exact.
    count = float(N * Ho * Wo)
    ch_sum = stats[:, :, 0, :].sum(axis=(0, 1))
    ch_sq = stats[:, :, 1, :].sum(axis=(0, 1))
    mean = ch_sum / count
    var = jnp.maximum(ch_sq / count - mean * mean, 0.0)                  # biased, as PyTorch training
    scale = gamma.astype(jnp.float32) * jax.lax.rsqrt(var + eps)
    shift = beta.astype(jnp.float32) - mean * scale

    WC = Wo * Cout
    scale_row = jnp.tile(scale, Wo).reshape(1, WC)
    shift_row = jnp.tile(shift, Wo).reshape(1, WC)

    # --- Pass 2: BN affine + LeakyReLU, lane-dense rows, bf16 out ------------------------
    R = N * Ho_pad
    tr = th
    row_bytes2 = WC * (2 * 2 + 2 * 2 + 4)
    while tr * 2 <= R and R % (tr * 2) == 0 and (tr * 2) * row_bytes2 < budget:
        tr *= 2

    y2 = y.reshape(R, WC)                                                # pure view of NHWC bytes
    out2 = pl.pallas_call(
        partial(_affine_lrelu_kernel, slope=leaky_slope),
        grid=(R // tr,),
        in_specs=[
            pl.BlockSpec((tr, WC), lambda i: (i, 0)),
            pl.BlockSpec((1, WC), lambda i: (0, 0)),
            pl.BlockSpec((1, WC), lambda i: (0, 0)),
        ],
        out_specs=pl.BlockSpec((tr, WC), lambda i: (i, 0)),
        out_shape=jax.ShapeDtypeStruct((R, WC), jnp.bfloat16),
        compiler_params=pltpu.CompilerParams(
            dimension_semantics=("parallel",), vmem_limit_bytes=vmem_limit),
    )(y2, scale_row, shift_row)

    out = out2.reshape(N, Ho_pad, Wo, Cout)[:, :Ho]                      # drop zero tail rows
    return out                                                           # NHWC bf16


def downsample_block(x_nchw, params, *, kernel_size, scale_factor=2, leaky_slope=0.2):
    """Equivalent of DownsampleBlock.forward (NCHW in, NCHW out)."""
    x = jnp.transpose(x_nchw, (0, 2, 3, 1))                              # NCHW -> NHWC once
    # Conv bias omitted on purpose: training-mode BatchNorm cancels it exactly.
    x = conv_block_nhwc(x, params["w1"], params["g1"], params["beta1"],
                        kernel_size=kernel_size, stride=scale_factor,
                        leaky_slope=leaky_slope)
    x = conv_block_nhwc(x, params["w2"], params["g2"], params["beta2"],
                        kernel_size=kernel_size, stride=1,
                        leaky_slope=leaky_slope)
    return jnp.transpose(x, (0, 3, 1, 2)).astype(jnp.float32)


def init_params(key, in_channels, out_channels, kernel_size):
    k = jax.random.split(key, 6)
    K = kernel_size
    fan1 = in_channels * K * K
    fan2 = out_channels * K * K
    return {
        "w1": jax.random.normal(k[0], (out_channels, in_channels, K, K),
                                jnp.float32) / jnp.sqrt(fan1),
        "b1": jax.random.normal(k[1], (out_channels,), jnp.float32) * 0.1,  # cancelled by BN
        "g1": jnp.ones((out_channels,), jnp.float32),
        "beta1": jnp.zeros((out_channels,), jnp.float32),
        "w2": jax.random.normal(k[2], (out_channels, out_channels, K, K),
                                jnp.float32) / jnp.sqrt(fan2),
        "b2": jax.random.normal(k[3], (out_channels,), jnp.float32) * 0.1,  # cancelled by BN
        "g2": jnp.ones((out_channels,), jnp.float32),
        "beta2": jnp.zeros((out_channels,), jnp.float32),
    }


# ----------------------------- pure-JAX reference (f32) --------------------------------
def _ref_conv_block(x_nhwc, w, b, gamma, beta, *, K, stride, slope=0.2, eps=1e-5):
    pad = (K - stride + 1) // 2
    xp = jnp.pad(x_nhwc.astype(jnp.float32), ((0, 0), (pad, pad), (pad, pad), (0, 0)),
                 mode="reflect")
    wt = jnp.transpose(w, (2, 3, 1, 0))                                  # HWIO
    y = jax.lax.conv_general_dilated(xp, wt, (stride, stride), "VALID",
                                     dimension_numbers=("NHWC", "HWIO", "NHWC"))
    y = y + b
    mean = y.mean(axis=(0, 1, 2))
    var = y.var(axis=(0, 1, 2))
    yh = (y - mean) * jax.lax.rsqrt(var + eps) * gamma + beta
    return jnp.where(yh >= 0, yh, slope * yh)


def _ref_downsample(x_nchw, params, K, s, slope):
    x = jnp.transpose(x_nchw, (0, 2, 3, 1))
    x = _ref_conv_block(x, params["w1"], params["b1"], params["g1"], params["beta1"],
                        K=K, stride=s, slope=slope)
    x = _ref_conv_block(x, params["w2"], params["b2"], params["g2"], params["beta2"],
                        K=K, stride=1, slope=slope)
    return jnp.transpose(x, (0, 3, 1, 2))


if __name__ == "__main__":
    N, Cin, Cout, H, W = 2, 4, 8, 16, 16
    kernel_size = 3
    scale_factor = 2

    key = jax.random.PRNGKey(0)
    kx, kp = jax.random.split(key)
    x = jax.random.normal(kx, (N, Cin, H, W), jnp.float32)
    params = init_params(kp, Cin, Cout, kernel_size)

    fwd = jax.jit(partial(downsample_block, kernel_size=kernel_size,
                          scale_factor=scale_factor, leaky_slope=0.2))
    out = jax.block_until_ready(fwd(x, params))

    assert out.shape == (N, Cout, H // scale_factor, W // scale_factor), out.shape
    assert bool(jnp.all(jnp.isfinite(out)))

    ref = _ref_downsample(x, params, kernel_size, scale_factor, 0.2)
    err = float(jnp.max(jnp.abs(out - ref)))
    assert err < 0.25, f"max abs err vs f32 reference: {err}"
    print("KERNEL_OK")
</pallas_src>

<mosaic_0001>
module attributes {stable_mosaic.version = 11 : i64} {
  func.func @_conv_stats_kernel(%arg0: i32, %arg1: i32, %arg2: memref<1x4x9x9x4xbf16, #tpu.memory_space<vmem>>, %arg3: memref<9x4x8xbf16, #tpu.memory_space<vmem>>, %arg4: memref<64x8xbf16, #tpu.memory_space<vmem>>, %arg5: memref<1x1x2x8xf32, #tpu.memory_space<vmem>>) attributes {dimension_semantics = [#tpu.dimension_semantics<parallel>, #tpu.dimension_semantics<arbitrary>], iteration_bounds = array<i64: 2, 1>, scalar_prefetch = 0 : i64, scratch_operands = 0 : i64, tpu.core_type = #tpu.core_type<tc>, window_params = [{transform_indices = @transform_0, window_bounds = array<i64: 1, 4, 9, 9, 4>}, {pipeline_mode = #tpu.pipeline_mode<synchronous>, transform_indices = @transform_1, window_bounds = array<i64: 9, 4, 8>}, {transform_indices = @transform_2, window_bounds = array<i64: 64, 8>}, {transform_indices = @transform_3, window_bounds = array<i64: 1, 1, 2, 8>}]} {
    %c8_i32 = arith.constant 8 : i32
    %0 = arith.muli %arg1, %c8_i32 : i32
    %cst = arith.constant 0.000000e+00 : f32
    %1 = vector.broadcast %cst : f32 to vector<64x8xf32>
    %c0_i32 = arith.constant 0 : i32
    %2 = arith.addi %0, %c0_i32 : i32
    %c0 = arith.constant 0 : index
    %c0_0 = arith.constant 0 : index
    %3 = arith.index_cast %2 : i32 to index
    %c0_1 = arith.constant 0 : index
    %c0_2 = arith.constant 0 : index
    %4 = vector.load %arg2[%c0, %c0_0, %3, %c0_1, %c0_2] : memref<1x4x9x9x4xbf16, #tpu.memory_space<vmem>>, vector<1x1x8x8x4xbf16>
    %5 = vector.shape_cast %4 : vector<1x1x8x8x4xbf16> to vector<8x8x4xbf16>
    %6 = vector.shape_cast %5 : vector<8x8x4xbf16> to vector<64x4xbf16>
    %c0_3 = arith.constant 0 : index
    %c0_4 = arith.constant 0 : index
    %c0_5 = arith.constant 0 : index
    %7 = vector.load %arg3[%c0_3, %c0_4, %c0_5] : memref<9x4x8xbf16, #tpu.memory_space<vmem>>, vector<1x4x8xbf16>
    %8 = vector.shape_cast %7 : vector<1x4x8xbf16> to vector<4x8xbf16>
    %cst_6 = arith.constant dense<0.000000e+00> : vector<64x8xf32>
    %9 = tpu.matmul %6, %8, %cst_6 {dimension_numbers = #tpu.dot_dimension_numbers<[1], [0], [0], [1], [0, 0, 1, 1], [], []>} : vector<64x4xbf16>, vector<4x8xbf16>, vector<64x8xf32> -> vector<64x8xf32>
    %10 = arith.addf %1, %9 : vector<64x8xf32>
    %c0_i32_7 = arith.constant 0 : i32
    %11 = arith.addi %0, %c0_i32_7 : i32
    %c0_8 = arith.constant 0 : index
    %c1 = arith.constant 1 : index
    %12 = arith.index_cast %11 : i32 to index
    %c0_9 = arith.constant 0 : index
    %c0_10 = arith.constant 0 : index
    %13 = vector.load %arg2[%c0_8, %c1, %12, %c0_9, %c0_10] : memref<1x4x9x9x4xbf16, #tpu.memory_space<vmem>>, vector<1x1x8x8x4xbf16>
    %14 = vector.shape_cast %13 : vector<1x1x8x8x4xbf16> to vector<8x8x4xbf16>
    %15 = vector.shape_cast %14 : vector<8x8x4xbf16> to vector<64x4xbf16>
    %c1_11 = arith.constant 1 : index
    %c0_12 = arith.constant 0 : index
    %c0_13 = arith.constant 0 : index
    %16 = vector.load %arg3[%c1_11, %c0_12, %c0_13] : memref<9x4x8xbf16, #tpu.memory_space<vmem>>, vector<1x4x8xbf16>
    %17 = vector.shape_cast %16 : vector<1x4x8xbf16> to vector<4x8xbf16>
    %cst_14 = arith.constant dense<0.000000e+00> : vector<64x8xf32>
    %18 = tpu.matmul %15, %17, %cst_14 {dimension_numbers = #tpu.dot_dimension_numbers<[1], [0], [0], [1], [0, 0, 1, 1], [], []>} : vector<64x4xbf16>, vector<4x8xbf16>, vector<64x8xf32> -> vector<64x8xf32>
    %19 = arith.addf %10, %18 : vector<64x8xf32>
    %c0_i32_15 = arith.constant 0 : i32
    %20 = arith.addi %0, %c0_i32_15 : i32
    %c0_16 = arith.constant 0 : index
    %c0_17 = arith.constant 0 : index
    %21 = arith.index_cast %20 : i32 to index
    %c1_18 = arith.constant 1 : index
    %c0_19 = arith.constant 0 : index
    %22 = vector.load %arg2[%c0_16, %c0_17, %21, %c1_18, %c0_19] : memref<1x4x9x9x4xbf16, #tpu.memory_space<vmem>>, vector<1x1x8x8x4xbf16>
    %23 = vector.shape_cast %22 : vector<1x1x8x8x4xbf16> to vector<8x8x4xbf16>
    %24 = vector.shape_cast %23 : vector<8x8x4xbf16> to vector<64x4xbf16>
    %c2 = arith.constant 2 : index
    %c0_20 = arith.constant 0 : index
    %c0_21 = arith.constant 0 : index
    %25 = vector.load %arg3[%c2, %c0_20, %c0_21] : memref<9x4x8xbf16, #tpu.memory_space<vmem>>, vector<1x4x8xbf16>
    %26 = vector.shape_cast %25 : vector<1x4x8xbf16> to vector<4x8xbf16>
    %cst_22 = arith.constant dense<0.000000e+00> : vector<64x8xf32>
    %27 = tpu.matmul %24, %26, %cst_22 {dimension_numbers = #tpu.dot_dimension_numbers<[1], [0], [0], [1], [0, 0, 1, 1], [], []>} : vector<64x4xbf16>, vector<4x8xbf16>, vector<64x8xf32> -> vector<64x8xf32>
    %28 = arith.addf %19, %27 : vector<64x8xf32>
    %c0_i32_23 = arith.constant 0 : i32
    %29 = arith.addi %0, %c0_i32_23 : i32
    %c0_24 = arith.constant 0 : index
    %c2_25 = arith.constant 2 : index
    %30 = arith.index_cast %29 : i32 to index
    %c0_26 = arith.constant 0 : index
    %c0_27 = arith.constant 0 : index
    %31 = vector.load %arg2[%c0_24, %c2_25, %30, %c0_26, %c0_27] : memref<1x4x9x9x4xbf16, #tpu.memory_space<vmem>>, vector<1x1x8x8x4xbf16>
    %32 = vector.shape_cast %31 : vector<1x1x8x8x4xbf16> to vector<8x8x4xbf16>
    %33 = vector.shape_cast %32 : vector<8x8x4xbf16> to vector<64x4xbf16>
    %c3 = arith.constant 3 : index
    %c0_28 = arith.constant 0 : index
    %c0_29 = arith.constant 0 : index
    %34 = vector.load %arg3[%c3, %c0_28, %c0_29] : memref<9x4x8xbf16, #tpu.memory_space<vmem>>, vector<1x4x8xbf16>
    %35 = vector.shape_cast %34 : vector<1x4x8xbf16> to vector<4x8xbf16>
    %cst_30 = arith.constant dense<0.000000e+00> : vector<64x8xf32>
    %36 = tpu.matmul %33, %35, %cst_30 {dimension_numbers = #tpu.dot_dimension_numbers<[1], [0], [0], [1], [0, 0, 1, 1], [], []>} : vector<64x4xbf16>, vector<4x8xbf16>, vector<64x8xf32> -> vector<64x8xf32>
    %37 = arith.addf %28, %36 : vector<64x8xf32>
    %c0_i32_31 = arith.constant 0 : i32
    %38 = arith.addi %0, %c0_i32_31 : i32
    %c0_32 = arith.constant 0 : index
    %c3_33 = arith.constant 3 : index
    %39 = arith.index_cast %38 : i32 to index
    %c0_34 = arith.constant 0 : index
    %c0_35 = arith.constant 0 : index
    %40 = vector.load %arg2[%c0_32, %c3_33, %39, %c0_34, %c0_35] : memref<1x4x9x9x4xbf16, #tpu.memory_space<vmem>>, vector<1x1x8x8x4xbf16>
    %41 = vector.shape_cast %40 : vector<1x1x8x8x4xbf16> to vector<8x8x4xbf16>
    %42 = vector.shape_cast %41 : vector<8x8x4xbf16> to vector<64x4xbf16>
    %c4 = arith.constant 4 : index
    %c0_36 = arith.constant 0 : index
    %c0_37 = arith.constant 0 : index
    %43 = vector.load %arg3[%c4, %c0_36, %c0_37] : memref<9x4x8xbf16, #tpu.memory_space<vmem>>, vector<1x4x8xbf16>
    %44 = vector.shape_cast %43 : vector<1x4x8xbf16> to vector<4x8xbf16>
    %cst_38 = arith.constant dense<0.000000e+00> : vector<64x8xf32>
    %45 = tpu.matmul %42, %44, %cst_38 {dimension_numbers = #tpu.dot_dimension_numbers<[1], [0], [0], [1], [0, 0, 1, 1], [], []>} : vector<64x4xbf16>, vector<4x8xbf16>, vector<64x8xf32> -> vector<64x8xf32>
    %46 = arith.addf %37, %45 : vector<64x8xf32>
    %c0_i32_39 = arith.constant 0 : i32
    %47 = arith.addi %0, %c0_i32_39 : i32
    %c0_40 = arith.constant 0 : index
    %c2_41 = arith.constant 2 : index
    %48 = arith.index_cast %47 : i32 to index
    %c1_42 = arith.constant 1 : index
    %c0_43 = arith.constant 0 : index
    %49 = vector.load %arg2[%c0_40, %c2_41, %48, %c1_42, %c0_43] : memref<1x4x9x9x4xbf16, #tpu.memory_space<vmem>>, vector<1x1x8x8x4xbf16>
    %50 = vector.shape_cast %49 : vector<1x1x8x8x4xbf16> to vector<8x8x4xbf16>
    %51 = vector.shape_cast %50 : vector<8x8x4xbf16> to vector<64x4xbf16>
    %c5 = arith.constant 5 : index
    %c0_44 = arith.constant 0 : index
    %c0_45 = arith.constant 0 : index
    %52 = vector.load %arg3[%c5, %c0_44, %c0_45] : memref<9x4x8xbf16, #tpu.memory_space<vmem>>, vector<1x4x8xbf16>
    %53 = vector.shape_cast %52 : vector<1x4x8xbf16> to vector<4x8xbf16>
    %cst_46 = arith.constant dense<0.000000e+00> : vector<64x8xf32>
    %54 = tpu.matmul %51, %53, %cst_46 {dimension_numbers = #tpu.dot_dimension_numbers<[1], [0], [0], [1], [0, 0, 1, 1], [], []>} : vector<64x4xbf16>, vector<4x8xbf16>, vector<64x8xf32> -> vector<64x8xf32>
    %55 = arith.addf %46, %54 : vector<64x8xf32>
    %c1_i32 = arith.constant 1 : i32
    %56 = arith.addi %0, %c1_i32 : i32
    %c0_47 = arith.constant 0 : index
    %c0_48 = arith.constant 0 : index
    %57 = arith.index_cast %56 : i32 to index
    %c0_49 = arith.constant 0 : index
    %c0_50 = arith.constant 0 : index
    %58 = vector.load %arg2[%c0_47, %c0_48, %57, %c0_49, %c0_50] : memref<1x4x9x9x4xbf16, #tpu.memory_space<vmem>>, vector<1x1x8x8x4xbf16>
    %59 = vector.shape_cast %58 : vector<1x1x8x8x4xbf16> to vector<8x8x4xbf16>
    %60 = vector.shape_cast %59 : vector<8x8x4xbf16> to vector<64x4xbf16>
    %c6 = arith.constant 6 : index
    %c0_51 = arith.constant 0 : index
    %c0_52 = arith.constant 0 : index
    %61 = vector.load %arg3[%c6, %c0_51, %c0_52] : memref<9x4x8xbf16, #tpu.memory_space<vmem>>, vector<1x4x8xbf16>
    %62 = vector.shape_cast %61 : vector<1x4x8xbf16> to vector<4x8xbf16>
    %cst_53 = arith.constant dense<0.000000e+00> : vector<64x8xf32>
    %63 = tpu.matmul %60, %62, %cst_53 {dimension_numbers = #tpu.dot_dimension_numbers<[1], [0], [0], [1], [0, 0, 1, 1], [], []>} : vector<64x4xbf16>, vector<4x8xbf16>, vector<64x8xf32> -> vector<64x8xf32>
    %64 = arith.addf %55, %63 : vector<64x8xf32>
    %c1_i32_54 = arith.constant 1 : i32
    %65 = arith.addi %0, %c1_i32_54 : i32
    %c0_55 = arith.constant 0 : index
    %c1_56 = arith.constant 1 : index
    %66 = arith.index_cast %65 : i32 to index
    %c0_57 = arith.constant 0 : index
    %c0_58 = arith.constant 0 : index
    %67 = vector.load %arg2[%c0_55, %c1_56, %66, %c0_57, %c0_58] : memref<1x4x9x9x4xbf16, #tpu.memory_space<vmem>>, vector<1x1x8x8x4xbf16>
    %68 = vector.shape_cast %67 : vector<1x1x8x8x4xbf16> to vector<8x8x4xbf16>
    %69 = vector.shape_cast %68 : vector<8x8x4xbf16> to vector<64x4xbf16>
    %c7 = arith.constant 7 : index
    %c0_59 = arith.constant 0 : index
    %c0_60 = arith.constant 0 : index
    %70 = vector.load %arg3[%c7, %c0_59, %c0_60] : memref<9x4x8xbf16, #tpu.memory_space<vmem>>, vector<1x4x8xbf16>
    %71 = vector.shape_cast %70 : vector<1x4x8xbf16> to vector<4x8xbf16>
    %cst_61 = arith.constant dense<0.000000e+00> : vector<64x8xf32>
    %72 = tpu.matmul %69, %71, %cst_61 {dimension_numbers = #tpu.dot_dimension_numbers<[1], [0], [0], [1], [0, 0, 1, 1], [], []>} : vector<64x4xbf16>, vector<4x8xbf16>, vector<64x8xf32> -> vector<64x8xf32>
    %73 = arith.addf %64, %72 : vector<64x8xf32>
    %c1_i32_62 = arith.constant 1 : i32
    %74 = arith.addi %0, %c1_i32_62 : i32
    %c0_63 = arith.constant 0 : index
    %c0_64 = arith.constant 0 : index
    %75 = arith.index_cast %74 : i32 to index
    %c1_65 = arith.constant 1 : index
    %c0_66 = arith.constant 0 : index
    %76 = vector.load %arg2[%c0_63, %c0_64, %75, %c1_65, %c0_66] : memref<1x4x9x9x4xbf16, #tpu.memory_space<vmem>>, vector<1x1x8x8x4xbf16>
    %77 = vector.shape_cast %76 : vector<1x1x8x8x4xbf16> to vector<8x8x4xbf16>
    %78 = vector.shape_cast %77 : vector<8x8x4xbf16> to vector<64x4xbf16>
    %c8 = arith.constant 8 : index
    %c0_67 = arith.constant 0 : index
    %c0_68 = arith.constant 0 : index
    %79 = vector.load %arg3[%c8, %c0_67, %c0_68] : memref<9x4x8xbf16, #tpu.memory_space<vmem>>, vector<1x4x8xbf16>
    %80 = vector.shape_cast %79 : vector<1x4x8xbf16> to vector<4x8xbf16>
    %cst_69 = arith.constant dense<0.000000e+00> : vector<64x8xf32>
    %81 = tpu.matmul %78, %80, %cst_69 {dimension_numbers = #tpu.dot_dimension_numbers<[1], [0], [0], [1], [0, 0, 1, 1], [], []>} : vector<64x4xbf16>, vector<4x8xbf16>, vector<64x8xf32> -> vector<64x8xf32>
    %82 = arith.addf %73, %81 : vector<64x8xf32>
    %83 = arith.truncf %82 : vector<64x8xf32> to vector<64x8xbf16>
    %c0_70 = arith.constant 0 : index
    %c0_71 = arith.constant 0 : index
    %84 = vector.load %arg4[%c0_70, %c0_71] : memref<64x8xbf16, #tpu.memory_space<vmem>>, vector<64x8xbf16>
    tpu.vector_store %arg4[%c0_70, %c0_71], %83 {strides = array<i32>} : memref<64x8xbf16, #tpu.memory_space<vmem>>, vector<64x8xbf16>,
    %cst_72 = arith.constant dense<0.000000e+00> : vector<8xf32>
    %85 = vector.multi_reduction <add>, %82, %cst_72 [0] : vector<64x8xf32> to vector<8xf32>
    %86 = vector.shape_cast %85 : vector<8xf32> to vector<1x8xf32>
    %87 = arith.mulf %82, %82 : vector<64x8xf32>
    %cst_73 = arith.constant dense<0.000000e+00> : vector<8xf32>
    %88 = vector.multi_reduction <add>, %87, %cst_73 [0] : vector<64x8xf32> to vector<8xf32>
    %89 = vector.shape_cast %88 : vector<8xf32> to vector<1x8xf32>
    %90 = tpu.concatenate %86, %89 in 0 : vector<1x8xf32>, vector<1x8xf32> -> vector<2x8xf32>
    %91 = vector.shape_cast %90 : vector<2x8xf32> to vector<1x1x2x8xf32>
    %c0_74 = arith.constant 0 : index
    %c0_75 = arith.constant 0 : index
    %c0_76 = arith.constant 0 : index
    %c0_77 = arith.constant 0 : index
    %92 = vector.load %arg5[%c0_74, %c0_75, %c0_76, %c0_77] : memref<1x1x2x8xf32, #tpu.memory_space<vmem>>, vector<1x1x2x8xf32>
    tpu.vector_store %arg5[%c0_74, %c0_75, %c0_76, %c0_77], %91 {strides = array<i32>} : memref<1x1x2x8xf32, #tpu.memory_space<vmem>>, vector<1x1x2x8xf32>,
    return
  }
  func.func @transform_0(%arg0: i32, %arg1: i32) -> (i32, i32, i32, i32, i32) {
    %c0_i32 = arith.constant 0 : i32
    %c0_i32_0 = arith.constant 0 : i32
    %c0_i32_1 = arith.constant 0 : i32
    %c0_i32_2 = arith.constant 0 : i32
    %c0_i32_3 = arith.constant 0 : i32
    return %arg0, %c0_i32, %c0_i32_0, %c0_i32_1, %c0_i32_2 : i32, i32, i32, i32, i32
  }
  func.func @transform_1(%arg0: i32, %arg1: i32) -> (i32, i32, i32) {
    %c0_i32 = arith.constant 0 : i32
    %c0_i32_0 = arith.constant 0 : i32
    %c0_i32_1 = arith.constant 0 : i32
    %c0_i32_2 = arith.constant 0 : i32
    return %c0_i32, %c0_i32_0, %c0_i32_1 : i32, i32, i32
  }
  func.func @transform_2(%arg0: i32, %arg1: i32) -> (i32, i32) {
    %c1_i32 = arith.constant 1 : i32
    %0 = arith.muli %arg0, %c1_i32 : i32
    %1 = arith.addi %0, %arg1 : i32
    %c0_i32 = arith.constant 0 : i32
    %c0_i32_0 = arith.constant 0 : i32
    return %1, %c0_i32 : i32, i32
  }
  func.func @transform_3(%arg0: i32, %arg1: i32) -> (i32, i32, i32, i32) {
    %c0_i32 = arith.constant 0 : i32
    %c0_i32_0 = arith.constant 0 : i32
    %c0_i32_1 = arith.constant 0 : i32
    return %arg0, %arg1, %c0_i32, %c0_i32_0 : i32, i32, i32, i32
  }
}

module attributes {stable_mosaic.version = 11 : i64} {
  func.func @_affine_lrelu_kernel(%arg0: i32, %arg1: memref<16x64xbf16, #tpu.memory_space<vmem>>, %arg2: memref<1x64xf32, #tpu.memory_space<vmem>>, %arg3: memref<1x64xf32, #tpu.memory_space<vmem>>, %arg4: memref<16x64xbf16, #tpu.memory_space<vmem>>) attributes {dimension_semantics = [#tpu.dimension_semantics<parallel>], iteration_bounds = array<i64: 1>, scalar_prefetch = 0 : i64, scratch_operands = 0 : i64, tpu.core_type = #tpu.core_type<tc>, window_params = [{transform_indices = @transform_0, window_bounds = array<i64: 16, 64>}, {pipeline_mode = #tpu.pipeline_mode<synchronous>, transform_indices = @transform_1, window_bounds = array<i64: 1, 64>}, {pipeline_mode = #tpu.pipeline_mode<synchronous>, transform_indices = @transform_2, window_bounds = array<i64: 1, 64>}, {transform_indices = @transform_3, window_bounds = array<i64: 16, 64>}]} {
    %c0 = arith.constant 0 : index
    %c0_0 = arith.constant 0 : index
    %0 = vector.load %arg1[%c0, %c0_0] : memref<16x64xbf16, #tpu.memory_space<vmem>>, vector<16x64xbf16>
    %1 = arith.extf %0 : vector<16x64xbf16> to vector<16x64xf32>
    %c0_1 = arith.constant 0 : index
    %c0_2 = arith.constant 0 : index
    %2 = vector.load %arg2[%c0_1, %c0_2] : memref<1x64xf32, #tpu.memory_space<vmem>>, vector<1x64xf32>
    %3 = vector.broadcast %2 : vector<1x64xf32> to vector<16x64xf32>
    %4 = arith.mulf %1, %3 : vector<16x64xf32>
    %c0_3 = arith.constant 0 : index
    %c0_4 = arith.constant 0 : index
    %5 = vector.load %arg3[%c0_3, %c0_4] : memref<1x64xf32, #tpu.memory_space<vmem>>, vector<1x64xf32>
    %6 = vector.broadcast %5 : vector<1x64xf32> to vector<16x64xf32>
    %7 = arith.addf %4, %6 : vector<16x64xf32>
    %cst = arith.constant 0.000000e+00 : f32
    %8 = vector.broadcast %cst : f32 to vector<16x64xf32>
    %9 = arith.cmpf oge, %7, %8 : vector<16x64xf32>
    %cst_5 = arith.constant 2.000000e-01 : f32
    %10 = vector.broadcast %cst_5 : f32 to vector<16x64xf32>
    %11 = arith.mulf %10, %7 : vector<16x64xf32>
    %12 = arith.select %9, %7, %11 : vector<16x64xi1>, vector<16x64xf32>
    %13 = arith.truncf %12 : vector<16x64xf32> to vector<16x64xbf16>
    %c0_6 = arith.constant 0 : index
    %c0_7 = arith.constant 0 : index
    %14 = vector.load %arg4[%c0_6, %c0_7] : memref<16x64xbf16, #tpu.memory_space<vmem>>, vector<16x64xbf16>
    tpu.vector_store %arg4[%c0_6, %c0_7], %13 {strides = array<i32>} : memref<16x64xbf16, #tpu.memory_space<vmem>>, vector<16x64xbf16>,
    return
  }
  func.func @transform_0(%arg0: i32) -> (i32, i32) {
    %c0_i32 = arith.constant 0 : i32
    %c0_i32_0 = arith.constant 0 : i32
    return %arg0, %c0_i32 : i32, i32
  }
  func.func @transform_1(%arg0: i32) -> (i32, i32) {
    %c0_i32 = arith.constant 0 : i32
    %c0_i32_0 = arith.constant 0 : i32
    %c0_i32_1 = arith.constant 0 : i32
    return %c0_i32, %c0_i32_0 : i32, i32
  }
  func.func @transform_2(%arg0: i32) -> (i32, i32) {
    %c0_i32 = arith.constant 0 : i32
    %c0_i32_0 = arith.constant 0 : i32
    %c0_i32_1 = arith.constant 0 : i32
    return %c0_i32, %c0_i32_0 : i32, i32
  }
  func.func @transform_3(%arg0: i32) -> (i32, i32) {
    %c0_i32 = arith.constant 0 : i32
    %c0_i32_0 = arith.constant 0 : i32
    return %arg0, %c0_i32 : i32, i32
  }
}

module attributes {stable_mosaic.version = 11 : i64} {
  func.func @_conv_stats_kernel(%arg0: i32, %arg1: i32, %arg2: memref<1x1x10x10x8xbf16, #tpu.memory_space<vmem>>, %arg3: memref<9x8x8xbf16, #tpu.memory_space<vmem>>, %arg4: memref<64x8xbf16, #tpu.memory_space<vmem>>, %arg5: memref<1x1x2x8xf32, #tpu.memory_space<vmem>>) attributes {dimension_semantics = [#tpu.dimension_semantics<parallel>, #tpu.dimension_semantics<arbitrary>], iteration_bounds = array<i64: 2, 1>, scalar_prefetch = 0 : i64, scratch_operands = 0 : i64, tpu.core_type = #tpu.core_type<tc>, window_params = [{transform_indices = @transform_0, window_bounds = array<i64: 1, 1, 10, 10, 8>}, {pipeline_mode = #tpu.pipeline_mode<synchronous>, transform_indices = @transform_1, window_bounds = array<i64: 9, 8, 8>}, {transform_indices = @transform_2, window_bounds = array<i64: 64, 8>}, {transform_indices = @transform_3, window_bounds = array<i64: 1, 1, 2, 8>}]} {
    %c8_i32 = arith.constant 8 : i32
    %0 = arith.muli %arg1, %c8_i32 : i32
    %cst = arith.constant 0.000000e+00 : f32
    %1 = vector.broadcast %cst : f32 to vector<64x8xf32>
    %c0_i32 = arith.constant 0 : i32
    %2 = arith.addi %0, %c0_i32 : i32
    %c0 = arith.constant 0 : index
    %c0_0 = arith.constant 0 : index
    %3 = arith.index_cast %2 : i32 to index
    %c0_1 = arith.constant 0 : index
    %c0_2 = arith.constant 0 : index
    %4 = vector.load %arg2[%c0, %c0_0, %3, %c0_1, %c0_2] : memref<1x1x10x10x8xbf16, #tpu.memory_space<vmem>>, vector<1x1x8x8x8xbf16>
    %5 = vector.shape_cast %4 : vector<1x1x8x8x8xbf16> to vector<8x8x8xbf16>
    %6 = vector.shape_cast %5 : vector<8x8x8xbf16> to vector<64x8xbf16>
    %c0_3 = arith.constant 0 : index
    %c0_4 = arith.constant 0 : index
    %c0_5 = arith.constant 0 : index
    %7 = vector.load %arg3[%c0_3, %c0_4, %c0_5] : memref<9x8x8xbf16, #tpu.memory_space<vmem>>, vector<1x8x8xbf16>
    %8 = vector.shape_cast %7 : vector<1x8x8xbf16> to vector<8x8xbf16>
    %cst_6 = arith.constant dense<0.000000e+00> : vector<64x8xf32>
    %9 = tpu.matmul %6, %8, %cst_6 {dimension_numbers = #tpu.dot_dimension_numbers<[1], [0], [0], [1], [0, 0, 1, 1], [], []>} : vector<64x8xbf16>, vector<8x8xbf16>, vector<64x8xf32> -> vector<64x8xf32>
    %10 = arith.addf %1, %9 : vector<64x8xf32>
    %c0_i32_7 = arith.constant 0 : i32
    %11 = arith.addi %0, %c0_i32_7 : i32
    %c0_8 = arith.constant 0 : index
    %c0_9 = arith.constant 0 : index
    %12 = arith.index_cast %11 : i32 to index
    %c1 = arith.constant 1 : index
    %c0_10 = arith.constant 0 : index
    %13 = vector.load %arg2[%c0_8, %c0_9, %12, %c1, %c0_10] : memref<1x1x10x10x8xbf16, #tpu.memory_space<vmem>>, vector<1x1x8x8x8xbf16>
    %14 = vector.shape_cast %13 : vector<1x1x8x8x8xbf16> to vector<8x8x8xbf16>
    %15 = vector.shape_cast %14 : vector<8x8x8xbf16> to vector<64x8xbf16>
    %c1_11 = arith.constant 1 : index
    %c0_12 = arith.constant 0 : index
    %c0_13 = arith.constant 0 : index
    %16 = vector.load %arg3[%c1_11, %c0_12, %c0_13] : memref<9x8x8xbf16, #tpu.memory_space<vmem>>, vector<1x8x8xbf16>
    %17 = vector.shape_cast %16 : vector<1x8x8xbf16> to vector<8x8xbf16>
    %cst_14 = arith.constant dense<0.000000e+00> : vector<64x8xf32>
    %18 = tpu.matmul %15, %17, %cst_14 {dimension_numbers = #tpu.dot_dimension_numbers<[1], [0], [0], [1], [0, 0, 1, 1], [], []>} : vector<64x8xbf16>, vector<8x8xbf16>, vector<64x8xf32> -> vector<64x8xf32>
    %19 = arith.addf %10, %18 : vector<64x8xf32>
    %c0_i32_15 = arith.constant 0 : i32
    %20 = arith.addi %0, %c0_i32_15 : i32
    %c0_16 = arith.constant 0 : index
    %c0_17 = arith.constant 0 : index
    %21 = arith.index_cast %20 : i32 to index
    %c2 = arith.constant 2 : index
    %c0_18 = arith.constant 0 : index
    %22 = vector.load %arg2[%c0_16, %c0_17, %21, %c2, %c0_18] : memref<1x1x10x10x8xbf16, #tpu.memory_space<vmem>>, vector<1x1x8x8x8xbf16>
    %23 = vector.shape_cast %22 : vector<1x1x8x8x8xbf16> to vector<8x8x8xbf16>
    %24 = vector.shape_cast %23 : vector<8x8x8xbf16> to vector<64x8xbf16>
    %c2_19 = arith.constant 2 : index
    %c0_20 = arith.constant 0 : index
    %c0_21 = arith.constant 0 : index
    %25 = vector.load %arg3[%c2_19, %c0_20, %c0_21] : memref<9x8x8xbf16, #tpu.memory_space<vmem>>, vector<1x8x8xbf16>
    %26 = vector.shape_cast %25 : vector<1x8x8xbf16> to vector<8x8xbf16>
    %cst_22 = arith.constant dense<0.000000e+00> : vector<64x8xf32>
    %27 = tpu.matmul %24, %26, %cst_22 {dimension_numbers = #tpu.dot_dimension_numbers<[1], [0], [0], [1], [0, 0, 1, 1], [], []>} : vector<64x8xbf16>, vector<8x8xbf16>, vector<64x8xf32> -> vector<64x8xf32>
    %28 = arith.addf %19, %27 : vector<64x8xf32>
    %c1_i32 = arith.constant 1 : i32
    %29 = arith.addi %0, %c1_i32 : i32
    %c0_23 = arith.constant 0 : index
    %c0_24 = arith.constant 0 : index
    %30 = arith.index_cast %29 : i32 to index
    %c0_25 = arith.constant 0 : index
    %c0_26 = arith.constant 0 : index
    %31 = vector.load %arg2[%c0_23, %c0_24, %30, %c0_25, %c0_26] : memref<1x1x10x10x8xbf16, #tpu.memory_space<vmem>>, vector<1x1x8x8x8xbf16>
    %32 = vector.shape_cast %31 : vector<1x1x8x8x8xbf16> to vector<8x8x8xbf16>
    %33 = vector.shape_cast %32 : vector<8x8x8xbf16> to vector<64x8xbf16>
    %c3 = arith.constant 3 : index
    %c0_27 = arith.constant 0 : index
    %c0_28 = arith.constant 0 : index
    %34 = vector.load %arg3[%c3, %c0_27, %c0_28] : memref<9x8x8xbf16, #tpu.memory_space<vmem>>, vector<1x8x8xbf16>
    %35 = vector.shape_cast %34 : vector<1x8x8xbf16> to vector<8x8xbf16>
    %cst_29 = arith.constant dense<0.000000e+00> : vector<64x8xf32>
    %36 = tpu.matmul %33, %35, %cst_29 {dimension_numbers = #tpu.dot_dimension_numbers<[1], [0], [0], [1], [0, 0, 1, 1], [], []>} : vector<64x8xbf16>, vector<8x8xbf16>, vector<64x8xf32> -> vector<64x8xf32>
    %37 = arith.addf %28, %36 : vector<64x8xf32>
    %c1_i32_30 = arith.constant 1 : i32
    %38 = arith.addi %0, %c1_i32_30 : i32
    %c0_31 = arith.constant 0 : index
    %c0_32 = arith.constant 0 : index
    %39 = arith.index_cast %38 : i32 to index
    %c1_33 = arith.constant 1 : index
    %c0_34 = arith.constant 0 : index
    %40 = vector.load %arg2[%c0_31, %c0_32, %39, %c1_33, %c0_34] : memref<1x1x10x10x8xbf16, #tpu.memory_space<vmem>>, vector<1x1x8x8x8xbf16>
    %41 = vector.shape_cast %40 : vector<1x1x8x8x8xbf16> to vector<8x8x8xbf16>
    %42 = vector.shape_cast %41 : vector<8x8x8xbf16> to vector<64x8xbf16>
    %c4 = arith.constant 4 : index
    %c0_35 = arith.constant 0 : index
    %c0_36 = arith.constant 0 : index
    %43 = vector.load %arg3[%c4, %c0_35, %c0_36] : memref<9x8x8xbf16, #tpu.memory_space<vmem>>, vector<1x8x8xbf16>
    %44 = vector.shape_cast %43 : vector<1x8x8xbf16> to vector<8x8xbf16>
    %cst_37 = arith.constant dense<0.000000e+00> : vector<64x8xf32>
    %45 = tpu.matmul %42, %44, %cst_37 {dimension_numbers = #tpu.dot_dimension_numbers<[1], [0], [0], [1], [0, 0, 1, 1], [], []>} : vector<64x8xbf16>, vector<8x8xbf16>, vector<64x8xf32> -> vector<64x8xf32>
    %46 = arith.addf %37, %45 : vector<64x8xf32>
    %c1_i32_38 = arith.constant 1 : i32
    %47 = arith.addi %0, %c1_i32_38 : i32
    %c0_39 = arith.constant 0 : index
    %c0_40 = arith.constant 0 : index
    %48 = arith.index_cast %47 : i32 to index
    %c2_41 = arith.constant 2 : index
    %c0_42 = arith.constant 0 : index
    %49 = vector.load %arg2[%c0_39, %c0_40, %48, %c2_41, %c0_42] : memref<1x1x10x10x8xbf16, #tpu.memory_space<vmem>>, vector<1x1x8x8x8xbf16>
    %50 = vector.shape_cast %49 : vector<1x1x8x8x8xbf16> to vector<8x8x8xbf16>
    %51 = vector.shape_cast %50 : vector<8x8x8xbf16> to vector<64x8xbf16>
    %c5 = arith.constant 5 : index
    %c0_43 = arith.constant 0 : index
    %c0_44 = arith.constant 0 : index
    %52 = vector.load %arg3[%c5, %c0_43, %c0_44] : memref<9x8x8xbf16, #tpu.memory_space<vmem>>, vector<1x8x8xbf16>
    %53 = vector.shape_cast %52 : vector<1x8x8xbf16> to vector<8x8xbf16>
    %cst_45 = arith.constant dense<0.000000e+00> : vector<64x8xf32>
    %54 = tpu.matmul %51, %53, %cst_45 {dimension_numbers = #tpu.dot_dimension_numbers<[1], [0], [0], [1], [0, 0, 1, 1], [], []>} : vector<64x8xbf16>, vector<8x8xbf16>, vector<64x8xf32> -> vector<64x8xf32>
    %55 = arith.addf %46, %54 : vector<64x8xf32>
    %c2_i32 = arith.constant 2 : i32
    %56 = arith.addi %0, %c2_i32 : i32
    %c0_46 = arith.constant 0 : index
    %c0_47 = arith.constant 0 : index
    %57 = arith.index_cast %56 : i32 to index
    %c0_48 = arith.constant 0 : index
    %c0_49 = arith.constant 0 : index
    %58 = vector.load %arg2[%c0_46, %c0_47, %57, %c0_48, %c0_49] : memref<1x1x10x10x8xbf16, #tpu.memory_space<vmem>>, vector<1x1x8x8x8xbf16>
    %59 = vector.shape_cast %58 : vector<1x1x8x8x8xbf16> to vector<8x8x8xbf16>
    %60 = vector.shape_cast %59 : vector<8x8x8xbf16> to vector<64x8xbf16>
    %c6 = arith.constant 6 : index
    %c0_50 = arith.constant 0 : index
    %c0_51 = arith.constant 0 : index
    %61 = vector.load %arg3[%c6, %c0_50, %c0_51] : memref<9x8x8xbf16, #tpu.memory_space<vmem>>, vector<1x8x8xbf16>
    %62 = vector.shape_cast %61 : vector<1x8x8xbf16> to vector<8x8xbf16>
    %cst_52 = arith.constant dense<0.000000e+00> : vector<64x8xf32>
    %63 = tpu.matmul %60, %62, %cst_52 {dimension_numbers = #tpu.dot_dimension_numbers<[1], [0], [0], [1], [0, 0, 1, 1], [], []>} : vector<64x8xbf16>, vector<8x8xbf16>, vector<64x8xf32> -> vector<64x8xf32>
    %64 = arith.addf %55, %63 : vector<64x8xf32>
    %c2_i32_53 = arith.constant 2 : i32
    %65 = arith.addi %0, %c2_i32_53 : i32
    %c0_54 = arith.constant 0 : index
    %c0_55 = arith.constant 0 : index
    %66 = arith.index_cast %65 : i32 to index
    %c1_56 = arith.constant 1 : index
    %c0_57 = arith.constant 0 : index
    %67 = vector.load %arg2[%c0_54, %c0_55, %66, %c1_56, %c0_57] : memref<1x1x10x10x8xbf16, #tpu.memory_space<vmem>>, vector<1x1x8x8x8xbf16>
    %68 = vector.shape_cast %67 : vector<1x1x8x8x8xbf16> to vector<8x8x8xbf16>
    %69 = vector.shape_cast %68 : vector<8x8x8xbf16> to vector<64x8xbf16>
    %c7 = arith.constant 7 : index
    %c0_58 = arith.constant 0 : index
    %c0_59 = arith.constant 0 : index
    %70 = vector.load %arg3[%c7, %c0_58, %c0_59] : memref<9x8x8xbf16, #tpu.memory_space<vmem>>, vector<1x8x8xbf16>
    %71 = vector.shape_cast %70 : vector<1x8x8xbf16> to vector<8x8xbf16>
    %cst_60 = arith.constant dense<0.000000e+00> : vector<64x8xf32>
    %72 = tpu.matmul %69, %71, %cst_60 {dimension_numbers = #tpu.dot_dimension_numbers<[1], [0], [0], [1], [0, 0, 1, 1], [], []>} : vector<64x8xbf16>, vector<8x8xbf16>, vector<64x8xf32> -> vector<64x8xf32>
    %73 = arith.addf %64, %72 : vector<64x8xf32>
    %c2_i32_61 = arith.constant 2 : i32
    %74 = arith.addi %0, %c2_i32_61 : i32
    %c0_62 = arith.constant 0 : index
    %c0_63 = arith.constant 0 : index
    %75 = arith.index_cast %74 : i32 to index
    %c2_64 = arith.constant 2 : index
    %c0_65 = arith.constant 0 : index
    %76 = vector.load %arg2[%c0_62, %c0_63, %75, %c2_64, %c0_65] : memref<1x1x10x10x8xbf16, #tpu.memory_space<vmem>>, vector<1x1x8x8x8xbf16>
    %77 = vector.shape_cast %76 : vector<1x1x8x8x8xbf16> to vector<8x8x8xbf16>
    %78 = vector.shape_cast %77 : vector<8x8x8xbf16> to vector<64x8xbf16>
    %c8 = arith.constant 8 : index
    %c0_66 = arith.constant 0 : index
    %c0_67 = arith.constant 0 : index
    %79 = vector.load %arg3[%c8, %c0_66, %c0_67] : memref<9x8x8xbf16, #tpu.memory_space<vmem>>, vector<1x8x8xbf16>
    %80 = vector.shape_cast %79 : vector<1x8x8xbf16> to vector<8x8xbf16>
    %cst_68 = arith.constant dense<0.000000e+00> : vector<64x8xf32>
    %81 = tpu.matmul %78, %80, %cst_68 {dimension_numbers = #tpu.dot_dimension_numbers<[1], [0], [0], [1], [0, 0, 1, 1], [], []>} : vector<64x8xbf16>, vector<8x8xbf16>, vector<64x8xf32> -> vector<64x8xf32>
    %82 = arith.addf %73, %81 : vector<64x8xf32>
    %83 = arith.truncf %82 : vector<64x8xf32> to vector<64x8xbf16>
    %c0_69 = arith.constant 0 : index
    %c0_70 = arith.constant 0 : index
    %84 = vector.load %arg4[%c0_69, %c0_70] : memref<64x8xbf16, #tpu.memory_space<vmem>>, vector<64x8xbf16>
    tpu.vector_store %arg4[%c0_69, %c0_70], %83 {strides = array<i32>} : memref<64x8xbf16, #tpu.memory_space<vmem>>, vector<64x8xbf16>,
    %cst_71 = arith.constant dense<0.000000e+00> : vector<8xf32>
    %85 = vector.multi_reduction <add>, %82, %cst_71 [0] : vector<64x8xf32> to vector<8xf32>
    %86 = vector.shape_cast %85 : vector<8xf32> to vector<1x8xf32>
    %87 = arith.mulf %82, %82 : vector<64x8xf32>
    %cst_72 = arith.constant dense<0.000000e+00> : vector<8xf32>
    %88 = vector.multi_reduction <add>, %87, %cst_72 [0] : vector<64x8xf32> to vector<8xf32>
    %89 = vector.shape_cast %88 : vector<8xf32> to vector<1x8xf32>
    %90 = tpu.concatenate %86, %89 in 0 : vector<1x8xf32>, vector<1x8xf32> -> vector<2x8xf32>
    %91 = vector.shape_cast %90 : vector<2x8xf32> to vector<1x1x2x8xf32>
    %c0_73 = arith.constant 0 : index
    %c0_74 = arith.constant 0 : index
    %c0_75 = arith.constant 0 : index
    %c0_76 = arith.constant 0 : index
    %92 = vector.load %arg5[%c0_73, %c0_74, %c0_75, %c0_76] : memref<1x1x2x8xf32, #tpu.memory_space<vmem>>, vector<1x1x2x8xf32>
    tpu.vector_store %arg5[%c0_73, %c0_74, %c0_75, %c0_76], %91 {strides = array<i32>} : memref<1x1x2x8xf32, #tpu.memory_space<vmem>>, vector<1x1x2x8xf32>,
    return
  }
  func.func @transform_0(%arg0: i32, %arg1: i32) -> (i32, i32, i32, i32, i32) {
    %c0_i32 = arith.constant 0 : i32
    %c0_i32_0 = arith.constant 0 : i32
    %c0_i32_1 = arith.constant 0 : i32
    %c0_i32_2 = arith.constant 0 : i32
    %c0_i32_3 = arith.constant 0 : i32
    return %arg0, %c0_i32, %c0_i32_0, %c0_i32_1, %c0_i32_2 : i32, i32, i32, i32, i32
  }
  func.func @transform_1(%arg0: i32, %arg1: i32) -> (i32, i32, i32) {
    %c0_i32 = arith.constant 0 : i32
    %c0_i32_0 = arith.constant 0 : i32
    %c0_i32_1 = arith.constant 0 : i32
    %c0_i32_2 = arith.constant 0 : i32
    return %c0_i32, %c0_i32_0, %c0_i32_1 : i32, i32, i32
  }
  func.func @transform_2(%arg0: i32, %arg1: i32) -> (i32, i32) {
    %c1_i32 = arith.constant 1 : i32
    %0 = arith.muli %arg0, %c1_i32 : i32
    %1 = arith.addi %0, %arg1 : i32
    %c0_i32 = arith.constant 0 : i32
    %c0_i32_0 = arith.constant 0 : i32
    return %1, %c0_i32 : i32, i32
  }
  func.func @transform_3(%arg0: i32, %arg1: i32) -> (i32, i32, i32, i32) {
    %c0_i32 = arith.constant 0 : i32
    %c0_i32_0 = arith.constant 0 : i32
    %c0_i32_1 = arith.constant 0 : i32
    return %arg0, %arg1, %c0_i32, %c0_i32_0 : i32, i32, i32, i32
  }
}

</mosaic_0001>

<llo_original>
// kernel: tile.23
$region0: #{tile.23}
  #allocation0 [shape = 's32[1]{0}', space=sflag, size = 0x4, scoped, tag = 'scoped memory for tile.23']
  %s0 = inlined_call_operand.vmem [shape: f32[8], index: 0, kind: input, shape index: {}]
  %s1 = inlined_call_operand.vmem [shape: f32[8,8], index: 1, kind: output, shape index: {}]
  // Predicated region
  $region2: #{tile.23} parent=0 // pred_check
    _
  $region3: #{tile.23} parent=0 // pred_check_branch
    %3 = sbr.rel (0) target = $region5
  $region4: #{tile.23} parent=0 // pred_region
    _
  $region5: #{tile.23} parent=0 // pred_fallthru
    _
  %v4 = vld [vmem:[%s0] ss:$0 sm:$0xff]
  %5 = vst [vmem:[%s1] sm:$0xff] %v4

// kernel: tile.24
$region0: #{tile.24}
  %s0 = inlined_call_operand.vmem [shape: f32[8,8], index: 0, kind: input, shape index: {}]
  %s1 = inlined_call_operand.vmem [shape: f32[1,64], index: 1, kind: output, shape index: {}]
  $region1: #{tile.24} parent=0
    #allocation0 [shape = 'u8[4096]{0}', space=vmem, size = 0x1000, scoped, tag = 'scoped mem for output reshape']
    %v2 = vld [vmem:[%s0] sm:$0x1]
    %vm3 = vcmask 64512
    %4 = vst.msk [vmem:[#allocation0] sm:$0x1] %vm3, %v2
    %s5 = scalar_lea.vmem %s0, 7
    %v6 = vld [vmem:[%s5] sm:$0x1]
    %7 = vrot.lane.b32.xlu0 %v6, 56
    %v8 = vpop.permute.xlu0 %7
    %vm9 = vcmask 523712
    %10 = vst.msk [vmem:[#allocation0] sm:$0x1] %vm9, %v8
    %s11 = scalar_lea.vmem %s0, 6
    %v12 = vld [vmem:[%s11] sm:$0x1]
    %13 = vrot.lane.b32.xlu0 %v12, 48
    %v14 = vpop.permute.xlu0 %13
    %vm15 = vcmask 458112
    %16 = vst.msk [vmem:[#allocation0] sm:$0x1] %vm15, %v14
    %s17 = scalar_lea.vmem %s0, 5
    %v18 = vld [vmem:[%s17] sm:$0x1]
    %19 = vrot.lane.b32.xlu0 %v18, 40
    %v20 = vpop.permute.xlu0 %19
    %vm21 = vcmask 392512
    %22 = vst.msk [vmem:[#allocation0] sm:$0x1] %vm21, %v20
    %s23 = scalar_lea.vmem %s0, 4
    %v24 = vld [vmem:[%s23] sm:$0x1]
    %25 = vrot.lane.b32.xlu0 %v24, 32
    %v26 = vpop.permute.xlu0 %25
    %vm27 = vcmask 326912
    %28 = vst.msk [vmem:[#allocation0] sm:$0x1] %vm27, %v26
    %s29 = scalar_lea.vmem %s0, 3
    %v30 = vld [vmem:[%s29] sm:$0x1]
    %31 = vrot.lane.b32.xlu0 %v30, 24
    %v32 = vpop.permute.xlu0 %31
    %vm33 = vcmask 261312
    %34 = vst.msk [vmem:[#allocation0] sm:$0x1] %vm33, %v32
    %s35 = scalar_lea.vmem %s0, 2
    %v36 = vld [vmem:[%s35] sm:$0x1]
    %37 = vrot.lane.b32.xlu0 %v36, 16
    %v38 = vpop.permute.xlu0 %37
    %vm39 = vcmask 195712
    %40 = vst.msk [vmem:[#allocation0] sm:$0x1] %vm39, %v38
    %s41 = scalar_lea.vmem %s0, 1
    %v42 = vld [vmem:[%s41] sm:$0x1]
    %43 = vrot.lane.b32.xlu0 %v42, 8
    %v44 = vpop.permute.xlu0 %43
    %vm45 = vcmask 130112
    %46 = vst.msk [vmem:[#allocation0] sm:$0x1] %vm45, %v44
    %s48 = sshllo.u32 0, 1
    %v50 = vld [vmem:[#allocation0] sm:%s48]
    %s51 = sshllo.u32 0, 1
    %52 = vst [vmem:[%s1] sm:%s51] %v50

// kernel: downsample_block.5
$region0: #{downsample_block.5}
  #allocation0 [shape = 'u32[]', space=smem, size = 0x4, offset = 0x4, fixed_abs, tag = 'smem constant byte address 0x4 - core index']
  #allocation1 [shape = 'u32[144,128]{1,0:T(1,128)}', space=vmem, size = 0x12000, scoped, tag = 'internal scratch']
  %s0 = inlined_call_operand.vmem [shape: bf16[16,64], index: 0, kind: input, shape index: {}]
  %s1 = inlined_call_operand.vmem [shape: f32[1,64], index: 1, kind: input, shape index: {}]
  %s2 = inlined_call_operand.vmem [shape: f32[1,64], index: 2, kind: input, shape index: {}]
  %s3 = inlined_call_operand.vmem [shape: bf16[16,64], index: 3, kind: output, shape index: {}]
  %s4 = sld [smem:[#allocation0]]
  $region22: #{downsample_block.5} parent=0
    _
  %s6 = ssub.s32 1, %s4
  %s7 = scalar_select 0, %s6, %s4
  // Predicated region
  $region2: #{downsample_block.5} parent=0 // pred_check
    _
  $region3: #{downsample_block.5} parent=0 // pred_check_branch
    %9 = sbr.rel (0) target = $region5
  $region4: #{downsample_block.5} parent=0 // pred_region
    _
  $region5: #{downsample_block.5} parent=0 // pred_fallthru
    _
  // Predicated region
  $region6: #{downsample_block.5} parent=0 // pred_check
    _
  $region7: #{downsample_block.5} parent=0 // pred_check_branch
    %11 = sbr.rel (0) target = $region9
  $region8: #{downsample_block.5} parent=0 // pred_region
    _
  $region9: #{downsample_block.5} parent=0 // pred_fallthru
    _
  // Predicated region
  $region10: #{downsample_block.5} parent=0 // pred_check
    _
  $region11: #{downsample_block.5} parent=0 // pred_check_branch
    %13 = sbr.rel (0) target = $region13
  $region12: #{downsample_block.5} parent=0 // pred_region
    _
  $region13: #{downsample_block.5} parent=0 // pred_fallthru
    _
  %v14 = vld [vmem:[%s0] sm:$0xf]
  %v15 = vld [vmem:[%s0 + $0x4] sm:$0xf]
  %v16 = vunpack.c.l.bf16 %v14
  %v17 = vunpack.c.l.bf16 %v15
  %v18 = vld [vmem:[%s1] sm:$0x1]
  %v20 = vlaneseq
  %v21 = vshrl.u32 %v20, 7
  %v22 = vsub.s32 0, %v21
  %v23 = vrot.slane %v18, %v22
  %v25 = vmul.f32 %v16, %v23
  %v26 = vmul.f32 %v17, %v23
  %v27 = vld [vmem:[%s2] sm:$0x1]
  %v29 = vlaneseq
  %v30 = vshrl.u32 %v29, 7
  %v31 = vsub.s32 0, %v30
  %v32 = vrot.slane %v27, %v31
  %v34 = vadd.f32 %v25, %v32
  %v35 = vadd.f32 %v26, %v32
  %vm36 = vcmp.ge.f32.partialorder %v34, 0.0
  %vm37 = vcmp.ge.f32.partialorder %v35, 0.0
  %v38 = vmul.f32 %v34, 0.2
  %v39 = vmul.f32 %v35, 0.2
  %v40 = vsel %vm36, %v34, %v38
  %v41 = vsel %vm37, %v35, %v39
  %v42 = vpack.c.bf16 %v41, %v40
  %v44 = vunpack.c.l.b16 %v42
  %v45 = vunpack.c.h.b16 %v42
  %v46 = vpack.c.b16 %v44, %v44
  %v47 = vpack.c.b16 %v45, %v45
  %vm50 = vcmask 519168
  %51 = vst.msk [vmem:[%s3] sm:$0xf] %vm50, %v46
  %52 = vst.msk [vmem:[%s3 + $0x4] sm:$0xf] %vm50, %v47
  // Predicated region
  $region14: #{downsample_block.5} parent=0 // pred_check
    _
  $region15: #{downsample_block.5} parent=0 // pred_check_branch
    %54 = sbr.rel (0) target = $region17
  $region16: #{downsample_block.5} parent=0 // pred_region
    _
  $region17: #{downsample_block.5} parent=0 // pred_fallthru
    _
  // Predicated region
  $region18: #{downsample_block.5} parent=0 // pred_check
    _
  $region19: #{downsample_block.5} parent=0 // pred_check_branch
    %56 = sbr.rel (0) target = $region21
  $region20: #{downsample_block.5} parent=0 // pred_region
    _
  $region21: #{downsample_block.5} parent=0 // pred_fallthru
    _

// kernel: downsample_block.4
$region0: #{downsample_block.4}
  #allocation0 [shape = 'u32[]', space=smem, size = 0x4, offset = 0x4, fixed_abs, tag = 'smem constant byte address 0x4 - core index']
  #allocation1 [shape = 'u32[144,128]{1,0:T(1,128)}', space=vmem, size = 0x12000, scoped, tag = 'internal scratch']
  %s0 = inlined_call_operand.vmem [shape: bf16[2,4,9,9,4], index: 0, kind: input, shape index: {}]
  %s1 = inlined_call_operand.vmem [shape: bf16[9,4,8], index: 1, kind: input, shape index: {}]
  %s2 = inlined_call_operand.vmem [shape: bf16[128,8], index: 2, kind: output, shape index: {0}]
  %s3 = inlined_call_operand.vmem [shape: f32[2,1,2,8], index: 3, kind: output, shape index: {1}]
  %4 = xla_tuple %s2, %s3
  %s5 = sld [smem:[#allocation0]]
  $region49: #{downsample_block.4} parent=0
    _
  %s7 = ssub.s32 1, %s5
  %s8 = scalar_select 0, %s7, %s5
  loop: start=0, step=1, limit=4
  $region2: #{downsample_block.4} parent=0 // loop_pre_header
    _
  $region3: #{downsample_block.4} parent=0 // loop_header
    %s10 = sphi 0, %s14
    %p11 = scmp.ge.s32.totalorder %s10, 4
    %s17 = sphi 0, %s29
    %s18 = sphi 0, %s25
    %s19 = sphi 0, %s17
    %s20 = sphi 0, %s18
    %s21 = sphi 0, %s19
    %s22 = sphi 0, %s20
    %s32 = sphi 0, %s34
    %s35 = sphi 0, %s32
    %s36 = sphi 0, %s35
    %s52 = sphi 0, %s36
    %s56 = sphi 0, %s56
    %s58 = sphi 0, %s56
    %s59 = sphi 0, %s58
    %s73 = sphi 0, %s59
    %s81 = sphi 0, %s83
    %s84 = sphi 0, %s81
    %s85 = sphi 0, %s84
    %s101 = sphi 0, %s85
    %s109 = sphi 0, %s111
    %s112 = sphi 0, %s109
    %s113 = sphi 0, %s112
    %s129 = sphi 0, %s113
  $region4: #{downsample_block.4} parent=0 // loop_header_branch
    %13 = sbr.rel (%p11) target = $region8
  $region5: #{downsample_block.4} parent=0 // loop_body
    %s15 = ssub.s32 %s10, 1
    %s16 = ssub.s32 %s10, 2
    %s23 = sadd.s32 1, %s18
    %p24 = scmp.ge.s32.totalorder %s23, 1
    %s25 = scalar_select %p24, 0, %s23
    %s26 = sadd.s32 1, %s17
    %s27 = scalar_select %p24, %s26, %s17
    %p28 = scmp.ge.s32.totalorder %s27, 2
    %s29 = scalar_select %p28, 0, %s27
    %s30 = ssub.s32 %s17, %s29
    %p31 = scmp.eq.s32.totalorder %s30, 0
    %s33 = sadd.s32 %s32, 1
    %s34 = scalar_select %p31, %s32, %s33
    %p37 = pneg %p31
    %p38 = scmp.eq.s32.totalorder %s10, 1
    %p39 = por %p37, %p38
    %p40 = scmp.ne.s32.totalorder %s32, %s35
    %p41 = scmp.eq.s32.totalorder %s10, 0
    %p42 = por %p40, %p41
    %p43 = scmp.ne.s32.totalorder %s32, %s35
    %p44 = scmp.eq.s32.totalorder %s15, 1
    %p45 = por %p43, %p44
    %p46 = scmp.ne.s32.totalorder %s35, %s36
    %p47 = scmp.eq.s32.totalorder %s15, 0
    %p48 = por %p46, %p47
    %p49 = scmp.ne.s32.totalorder %s35, %s36
    %p50 = scmp.eq.s32.totalorder %s16, 1
    %p51 = por %p49, %p50
    %p53 = scmp.ne.s32.totalorder %s36, %s52
    %p54 = scmp.eq.s32.totalorder %s16, 0
    %p55 = por %p53, %p54
    %s57 = sadd.s32 %s56, 1
    %p60 = scmp.eq.s32.totalorder %s10, 1
    %p61 = scmp.ne.s32.totalorder %s56, %s58
    %p62 = scmp.eq.s32.totalorder %s10, 0
    %p63 = por %p61, %p62
    %p64 = scmp.ne.s32.totalorder %s56, %s58
    %p65 = scmp.eq.s32.totalorder %s15, 1
    %p66 = por %p64, %p65
    %p67 = scmp.ne.s32.totalorder %s58, %s59
    %p68 = scmp.eq.s32.totalorder %s15, 0
    %p69 = por %p67, %p68
    %p70 = scmp.ne.s32.totalorder %s58, %s59
    %p71 = scmp.eq.s32.totalorder %s16, 1
    %p72 = por %p70, %p71
    %p74 = scmp.ne.s32.totalorder %s59, %s73
    %p75 = scmp.eq.s32.totalorder %s16, 0
    %p76 = por %p74, %p75
    %s77 = sadd.s32 %s17, %s18
    %s78 = sadd.s32 %s29, %s25
    %s79 = ssub.s32 %s77, %s78
    %p80 = scmp.eq.s32.totalorder %s79, 0
    %s82 = sadd.s32 %s81, 1
    %s83 = scalar_select %p80, %s81, %s82
    %p86 = pneg %p80
    %p87 = scmp.eq.s32.totalorder %s10, 1
    %p88 = por %p86, %p87
    %p89 = scmp.ne.s32.totalorder %s81, %s84
    %p90 = scmp.eq.s32.totalorder %s10, 0
    %p91 = por %p89, %p90
    %p92 = scmp.ne.s32.totalorder %s81, %s84
    %p93 = scmp.eq.s32.totalorder %s15, 1
    %p94 = por %p92, %p93
    %p95 = scmp.ne.s32.totalorder %s84, %s85
    %p96 = scmp.eq.s32.totalorder %s15, 0
    %p97 = por %p95, %p96
    %p98 = scmp.ne.s32.totalorder %s84, %s85
    %p99 = scmp.eq.s32.totalorder %s16, 1
    %p100 = por %p98, %p99
    %p102 = scmp.ne.s32.totalorder %s85, %s101
    %p103 = scmp.eq.s32.totalorder %s16, 0
    %p104 = por %p102, %p103
    %s105 = ssub.s32 %s17, %s29
    %s106 = ssub.s32 %s18, %s25
    %s107 = sor.u32 %s105, %s106
    %p108 = scmp.eq.s32.totalorder %s107, 0
    %s110 = sadd.s32 %s109, 1
    %s111 = scalar_select %p108, %s109, %s110
    %p114 = pneg %p108
    %p115 = scmp.eq.s32.totalorder %s10, 1
    %p116 = por %p114, %p115
    %p117 = scmp.ne.s32.totalorder %s109, %s112
    %p118 = scmp.eq.s32.totalorder %s10, 0
    %p119 = por %p117, %p118
    %p120 = scmp.ne.s32.totalorder %s109, %s112
    %p121 = scmp.eq.s32.totalorder %s15, 1
    %p122 = por %p120, %p121
    %p123 = scmp.ne.s32.totalorder %s112, %s113
    %p124 = scmp.eq.s32.totalorder %s15, 0
    %p125 = por %p123, %p124
    %p126 = scmp.ne.s32.totalorder %s112, %s113
    %p127 = scmp.eq.s32.totalorder %s16, 1
    %p128 = por %p126, %p127
    %p130 = scmp.ne.s32.totalorder %s113, %s129
    %p131 = scmp.eq.s32.totalorder %s16, 0
    %p132 = por %p130, %p131
    %p133 = scmp.le.s32.totalorder 1, %s10
    %p134 = scmp.lt.s32.totalorder %s10, 3
    %p135 = pnand %p133, %p134
    %p136 = pneg %p135
    // Predicated region
    $region9: #{downsample_block.4} parent=5 // pred_check
      _
    $region10: #{downsample_block.4} parent=5 // pred_check_branch
      %138 = sbr.rel (%p135) target = $region12
    $region11: #{downsample_block.4} parent=5 // pred_region
      %s139 = ssub.s32 %s10, 1
      // Predicated region
      $region13: #{downsample_block.4} parent=11 // pred_check
        %p140 = pneg %p69
      $region14: #{downsample_block.4} parent=11 // pred_check_branch
        %142 = sbr.rel (%p140) target = $region16
      $region15: #{downsample_block.4} parent=11 // pred_region
        _
      $region16: #{downsample_block.4} parent=11 // pred_fallthru
        _
    $region12: #{downsample_block.4} parent=5 // pred_fallthru
      _
    %p143 = scmp.lt.s32.totalorder %s10, 2
    // Predicated region
    $region17: #{downsample_block.4} parent=5 // pred_check
      %p144 = pneg %p143
    $region18: #{downsample_block.4} parent=5 // pred_check_branch
      %146 = sbr.rel (%p144) target = $region20
    $region19: #{downsample_block.4} parent=5 // pred_region
      // Predicated region
      $region21: #{downsample_block.4} parent=19 // pred_check
        %p147 = pneg %p42
      $region22: #{downsample_block.4} parent=19 // pred_check_branch
        %149 = sbr.rel (%p147) target = $region24
      $region23: #{downsample_block.4} parent=19 // pred_region
        %p150 = scmp.lt.s32.totalorder %s17, 1
        %s151 = scalar_select %p150, %s17, 1
        %s152 = smul.addr %s151, 72
        %s153 = smul.addr %s152, 4
        %s154 = scalar_lea.vmem %s0, %s153
      $region24: #{downsample_block.4} parent=19 // pred_fallthru
        _
    $region20: #{downsample_block.4} parent=5 // pred_fallthru
      _
    %p155 = scmp.le.s32.totalorder 1, %s10
    %p156 = scmp.lt.s32.totalorder %s10, 3
    %p157 = pnand %p155, %p156
    %p158 = pneg %p157
    // Predicated region
    $region25: #{downsample_block.4} parent=5 // pred_check
      _
    $region26: #{downsample_block.4} parent=5 // pred_check_branch
      %160 = sbr.rel (%p157) target = $region28
    $region27: #{downsample_block.4} parent=5 // pred_region
      %s161 = ssub.s32 %s10, 1
      %p162 = scmp.lt.s32.totalorder %s19, 1
      %s163 = scalar_select %p162, %s19, 1
      %s164 = smul.addr %s163, 72
      %s165 = smul.addr %s164, 4
      %s166 = scalar_lea.vmem %s0, %s165
      %p167 = pneg %p48
      %p168 = pneg %p45
      %p169 = pneg %p69
      %p170 = pneg %p66
      %p171 = pneg %p97
      %p172 = pneg %p94
      %s173 = sadd.s32 %s19, %s20
      %s174 = smul.u32 8, %s173
      %p175 = scmp.lt.s32.totalorder %s174, 15
      %s176 = scalar_select %p175, %s174, 15
      %s177 = smul.addr %s176, 4
      %s178 = scalar_lea.vmem %s2, %s177
      %p179 = pneg %p125
      %p180 = pneg %p122
      %p181 = scmp.lt.s32.totalorder %s19, 1
      %s182 = scalar_select %p181, %s19, 1
      %p183 = scmp.lt.s32.totalorder %s20, 0
      %s184 = scalar_select %p183, %s20, 0
      %s185 = sadd.s32 %s184, %s182
      %s186 = smul.addr %s185, 2
      %s187 = scalar_lea.vmem %s3, %s186
      %p188 = scmp.lt.s32.totalorder %s19, 1
      %s189 = scalar_select %p188, %s19, 1
      %s190 = smul.addr %s189, 72
      %s191 = smul.addr %s190, 4
      %s192 = scalar_lea.vmem %s0, %s191
      %s193 = sadd.s32 %s19, %s20
      %s194 = smul.u32 8, %s193
      %p195 = scmp.lt.s32.totalorder %s194, 15
      %s196 = scalar_select %p195, %s194, 15
      %s197 = smul.addr %s196, 4
      %s198 = scalar_lea.vmem %s2, %s197
      %s199 = sadd.s32 %s19, %s20
      %s200 = smul.u32 8, %s199
      %p201 = scmp.lt.s32.totalorder %s19, 1
      %s202 = scalar_select %p201, %s19, 1
      %p203 = scmp.lt.s32.totalorder %s20, 0
      %s204 = scalar_select %p203, %s20, 0
      %s205 = sadd.s32 %s204, %s202
      %s206 = smul.addr %s205, 2
      %s207 = scalar_lea.vmem %s3, %s206
      %s209 = smul.u32 %s20, 8
      %s210 = smul.u32 %s209, 2
      %s211 = smul.addr %s210, 4
      %s212 = scalar_lea.vmem %s192, %s211
      %v213 = vld [vmem:[%s212] sm:$0xf]
      %v214 = vld [vmem:[%s212 + $0x8] sm:$0xf]
      %v215 = vld [vmem:[%s212 + $0x10] sm:$0xf]
      %v216 = vld [vmem:[%s212 + $0x18] sm:$0xf]
      %v217 = vld [vmem:[%s212 + $0x20] sm:$0xf]
      %v218 = vld [vmem:[%s212 + $0x28] sm:$0xf]
      %v219 = vld [vmem:[%s212 + $0x30] sm:$0xf]
      %v220 = vld [vmem:[%s212 + $0x38] sm:$0xf]
      %v221 = vld [vmem:[%s1] sm:$0x3]
      %s222 = sadd.s32 %s210, 18
      %s223 = smul.addr %s222, 4
      %s224 = scalar_lea.vmem %s192, %s223
      %v225 = vld [vmem:[%s224] sm:$0xf]
      %v226 = vld [vmem:[%s224 + $0x8] sm:$0xf]
      %v227 = vld [vmem:[%s224 + $0x10] sm:$0xf]
      %v228 = vld [vmem:[%s224 + $0x18] sm:$0xf]
      %v229 = vld [vmem:[%s224 + $0x20] sm:$0xf]
      %v230 = vld [vmem:[%s224 + $0x28] sm:$0xf]
      %v231 = vld [vmem:[%s224 + $0x30] sm:$0xf]
      %v232 = vld [vmem:[%s224 + $0x38] sm:$0xf]
      %s233 = scalar_lea.vmem %s1, 2
      %v234 = vld [vmem:[%s233] sm:$0x3]
      %v243 = vunpack.c.l.b16 %v225
      %v244 = vunpack.c.l.b16 %v226
      %v245 = vunpack.c.l.b16 %v227
      %v246 = vunpack.c.l.b16 %v228
      %v247 = vunpack.c.l.b16 %v229
      %v248 = vunpack.c.l.b16 %v230
      %v249 = vunpack.c.l.b16 %v231
      %v250 = vunpack.c.l.b16 %v232
      %v251 = vpack.c.b16 %v244, %v243
      %v252 = vpack.c.b16 %v246, %v245
      %v253 = vpack.c.b16 %v248, %v247
      %v254 = vpack.c.b16 %v250, %v249
      %vm255 = vcmask 31744
      %v257 = vsel %vm255, %v251, 0
      %v260 = vsel %vm255, %v252, 0
      %v263 = vsel %vm255, %v253, 0
      %v266 = vsel %vm255, %v254, 0
      %vm268 = vcmask 1041408
      %v270 = vsel %vm268, %v234, 0
      %272 = vmatprep.subr.bf16.mxu0 0
      %273 = vmatpush1.bf16.msra.mxu0 %v270
      %274 = vmatprep.subr.bf16.mxu0 0
      %275 = vmatpush1.bf16.msra.mxu0 0
      %276 = vmatprep.subr.bf16.mxu0 0
      %277 = vmatpush1.bf16.msra.mxu0 0
      %278 = vmatprep.subr.bf16.mxu0 0
      %279 = vmatpush1.bf16.msra.mxu0 0
      %280 = vmatprep.subr.bf16.mxu0 0
      %281 = vmatpush1.bf16.msra.mxu0 0
      %282 = vmatprep.subr.bf16.mxu0 0
      %283 = vmatpush1.bf16.msra.mxu0 0
      %284 = vmatprep.subr.bf16.mxu0 0
      %285 = vmatpush1.bf16.msra.mxu0 0
      %286 = vmatprep.subr.bf16.mxu0 0
      %287 = vmatpush1.bf16.msra.mxu0 0
      %288 = vmatprep.subr.bf16.mxu0 0
      %289 = vmatpush1.bf16.msra.mxu0 0
      %290 = vmatprep.subr.bf16.mxu0 0
      %291 = vmatpush1.bf16.msra.mxu0 0
      %292 = vmatprep.subr.bf16.mxu0 0
      %293 = vmatpush1.bf16.msra.mxu0 0
      %294 = vmatprep.subr.bf16.mxu0 0
      %295 = vmatpush1.bf16.msra.mxu0 0
      %296 = vmatprep.subr.bf16.mxu0 0
      %297 = vmatpush1.bf16.msra.mxu0 0
      %298 = vmatprep.subr.bf16.mxu0 0
      %299 = vmatpush1.bf16.msra.mxu0 0
      %300 = vmatprep.subr.bf16.mxu0 0
      %301 = vmatpush1.bf16.msra.mxu0 0
      %302 = vmatprep.subr.bf16.mxu0 0
      %303 = vmatpush1.bf16.msra.mxu0 0
      %304 = vmatprep.mubr.bf16.mxu0 0
      %305 = vmatmul.mubr.bf16.gmra.mrb[0].mxu0 %v257
      %v306 = vpop.f32.mrb[0].mxu0
      %v307 = vadd.f32 0.0, %v306
      %v308 = vpop.f32.mrb[0].mxu0
      %v309 = vpop.f32.mrb[0].mxu0
      %v310 = vadd.f32 0.0, %v309
      %v311 = vpop.f32.mrb[0].mxu0
      %312 = vmatprep.mubr.bf16.mxu0 0
      %313 = vmatmul.mubr.bf16.gmra.mrb[0].mxu0 %v260
      %v314 = vpop.f32.mrb[0].mxu0
      %v315 = vadd.f32 0.0, %v314
      %v316 = vpop.f32.mrb[0].mxu0
      %v317 = vpop.f32.mrb[0].mxu0
      %v318 = vadd.f32 0.0, %v317
      %v319 = vpop.f32.mrb[0].mxu0
      %320 = vmatprep.mubr.bf16.mxu0 0
      %321 = vmatmul.mubr.bf16.gmra.mrb[0].mxu0 %v263
      %v322 = vpop.f32.mrb[0].mxu0
      %v323 = vadd.f32 0.0, %v322
      %v324 = vpop.f32.mrb[0].mxu0
      %v325 = vpop.f32.mrb[0].mxu0
      %v326 = vadd.f32 0.0, %v325
      %v327 = vpop.f32.mrb[0].mxu0
      %328 = vmatprep.mubr.bf16.mxu0 0
      %329 = vmatmul.mubr.bf16.gmra.mrb[0].mxu0 %v266
      %v330 = vpop.f32.mrb[0].mxu0
      %v331 = vadd.f32 0.0, %v330
      %v332 = vpop.f32.mrb[0].mxu0
      %v333 = vpop.f32.mrb[0].mxu0
      %v334 = vadd.f32 0.0, %v333
      %v335 = vpop.f32.mrb[0].mxu0
      %336 = vdwg.mxu0
      %v345 = vunpack.c.l.b16 %v213
      %v346 = vunpack.c.l.b16 %v214
      %v347 = vunpack.c.l.b16 %v215
      %v348 = vunpack.c.l.b16 %v216
      %v349 = vunpack.c.l.b16 %v217
      %v350 = vunpack.c.l.b16 %v218
      %v351 = vunpack.c.l.b16 %v219
      %v352 = vunpack.c.l.b16 %v220
      %v353 = vpack.c.b16 %v346, %v345
      %v354 = vpack.c.b16 %v348, %v347
      %v355 = vpack.c.b16 %v350, %v349
      %v356 = vpack.c.b16 %v352, %v351
      %v358 = vsel %vm255, %v353, 0
      %v361 = vsel %vm255, %v354, 0
      %v364 = vsel %vm255, %v355, 0
      %v367 = vsel %vm255, %v356, 0
      %v370 = vsel %vm268, %v221, 0
      %372 = vmatprep.subr.bf16.mxu0 0
      %373 = vmatpush1.bf16.msra.mxu0 %v370
      %374 = vmatprep.subr.bf16.mxu0 0
      %375 = vmatpush1.bf16.msra.mxu0 0
      %376 = vmatprep.subr.bf16.mxu0 0
      %377 = vmatpush1.bf16.msra.mxu0 0
      %378 = vmatprep.subr.bf16.mxu0 0
      %379 = vmatpush1.bf16.msra.mxu0 0
      %380 = vmatprep.subr.bf16.mxu0 0
      %381 = vmatpush1.bf16.msra.mxu0 0
      %382 = vmatprep.subr.bf16.mxu0 0
      %383 = vmatpush1.bf16.msra.mxu0 0
      %384 = vmatprep.subr.bf16.mxu0 0
      %385 = vmatpush1.bf16.msra.mxu0 0
      %386 = vmatprep.subr.bf16.mxu0 0
      %387 = vmatpush1.bf16.msra.mxu0 0
      %388 = vmatprep.subr.bf16.mxu0 0
      %389 = vmatpush1.bf16.msra.mxu0 0
      %390 = vmatprep.subr.bf16.mxu0 0
      %391 = vmatpush1.bf16.msra.mxu0 0
      %392 = vmatprep.subr.bf16.mxu0 0
      %393 = vmatpush1.bf16.msra.mxu0 0
      %394 = vmatprep.subr.bf16.mxu0 0
      %395 = vmatpush1.bf16.msra.mxu0 0
      %396 = vmatprep.subr.bf16.mxu0 0
      %397 = vmatpush1.bf16.msra.mxu0 0
      %398 = vmatprep.subr.bf16.mxu0 0
      %399 = vmatpush1.bf16.msra.mxu0 0
      %400 = vmatprep.subr.bf16.mxu0 0
      %401 = vmatpush1.bf16.msra.mxu0 0
      %402 = vmatprep.subr.bf16.mxu0 0
      %403 = vmatpush1.bf16.msra.mxu0 0
      %404 = vmatprep.mubr.bf16.mxu0 0
      %405 = vmatmul.mubr.bf16.gmra.mrb[0].mxu0 %v358
      %v406 = vpop.f32.mrb[0].mxu0
      %v407 = vadd.f32 %v307, %v406
      %v408 = vpop.f32.mrb[0].mxu0
      %v409 = vpop.f32.mrb[0].mxu0
      %v410 = vadd.f32 %v310, %v409
      %v411 = vpop.f32.mrb[0].mxu0
      %412 = vmatprep.mubr.bf16.mxu0 0
      %413 = vmatmul.mubr.bf16.gmra.mrb[0].mxu0 %v361
      %v414 = vpop.f32.mrb[0].mxu0
      %v415 = vadd.f32 %v315, %v414
      %v416 = vpop.f32.mrb[0].mxu0
      %v417 = vpop.f32.mrb[0].mxu0
      %v418 = vadd.f32 %v318, %v417
      %v419 = vpop.f32.mrb[0].mxu0
      %420 = vmatprep.mubr.bf16.mxu0 0
      %421 = vmatmul.mubr.bf16.gmra.mrb[0].mxu0 %v364
      %v422 = vpop.f32.mrb[0].mxu0
      %v423 = vadd.f32 %v323, %v422
      %v424 = vpop.f32.mrb[0].mxu0
      %v425 = vpop.f32.mrb[0].mxu0
      %v426 = vadd.f32 %v326, %v425
      %v427 = vpop.f32.mrb[0].mxu0
      %428 = vmatprep.mubr.bf16.mxu0 0
      %429 = vmatmul.mubr.bf16.gmra.mrb[0].mxu0 %v367
      %v430 = vpop.f32.mrb[0].mxu0
      %v431 = vadd.f32 %v331, %v430
      %v432 = vpop.f32.mrb[0].mxu0
      %v433 = vpop.f32.mrb[0].mxu0
      %v434 = vadd.f32 %v334, %v433
      %v435 = vpop.f32.mrb[0].mxu0
      %436 = vdwg.mxu0
      %v437 = vld [vmem:[%s212] sm:$0xf]
      %v438 = vld [vmem:[%s212 + $0x4] sm:$0x1]
      %v439 = vld [vmem:[%s212 + $0x8] sm:$0xf]
      %v440 = vld [vmem:[%s212 + $0xc] sm:$0x1]
      %v441 = vld [vmem:[%s212 + $0x10] sm:$0xf]
      %v442 = vld [vmem:[%s212 + $0x14] sm:$0x1]
      %v443 = vld [vmem:[%s212 + $0x18] sm:$0xf]
      %v444 = vld [vmem:[%s212 + $0x1c] sm:$0x1]
      %v445 = vld [vmem:[%s212 + $0x20] sm:$0xf]
      %v446 = vld [vmem:[%s212 + $0x24] sm:$0x1]
      %v447 = vld [vmem:[%s212 + $0x28] sm:$0xf]
      %v448 = vld [vmem:[%s212 + $0x2c] sm:$0x1]
      %v449 = vld [vmem:[%s212 + $0x30] sm:$0xf]
      %v450 = vld [vmem:[%s212 + $0x34] sm:$0x1]
      %v451 = vld [vmem:[%s212 + $0x38] sm:$0xf]
      %v452 = vld [vmem:[%s212 + $0x3c] sm:$0x1]
      %vm453 = vsmask.f32 3328
      %vm454 = vsmask.f32 7440
      %vm455 = vmor %vm453, %vm454
      %v457 = vshrl.u32 %v437, 16
      %v459 = vrot.slane %v457, 4
      %v460 = vshll.u32 %v437, 16
      %v462 = vrot.slane %v460, 5
      %v463 = vor.u32 %v459, %v462
      %v464 = vrot.slane %v463, 4
      %v466 = vshll.u32 %v438, 16
      %v468 = vrot.slane %v466, 5
      %v469 = vsel %vm455, %v464, %v468
      %v471 = vshrl.u32 %v439, 16
      %v473 = vrot.slane %v471, 4
      %v474 = vshll.u32 %v439, 16
      %v476 = vrot.slane %v474, 5
      %v477 = vor.u32 %v473, %v476
      %v478 = vrot.slane %v477, 4
      %v480 = vshll.u32 %v440, 16
      %v482 = vrot.slane %v480, 5
      %v483 = vsel %vm455, %v478, %v482
      %v485 = vshrl.u32 %v441, 16
      %v487 = vrot.slane %v485, 4
      %v488 = vshll.u32 %v441, 16
      %v490 = vrot.slane %v488, 5
      %v491 = vor.u32 %v487, %v490
      %v492 = vrot.slane %v491, 4
      %v494 = vshll.u32 %v442, 16
      %v496 = vrot.slane %v494, 5
      %v497 = vsel %vm455, %v492, %v496
      %v499 = vshrl.u32 %v443, 16
      %v501 = vrot.slane %v499, 4
      %v502 = vshll.u32 %v443, 16
      %v504 = vrot.slane %v502, 5
      %v505 = vor.u32 %v501, %v504
      %v506 = vrot.slane %v505, 4
      %v508 = vshll.u32 %v444, 16
      %v510 = vrot.slane %v508, 5
      %v511 = vsel %vm455, %v506, %v510
      %v513 = vshrl.u32 %v445, 16
      %v515 = vrot.slane %v513, 4
      %v516 = vshll.u32 %v445, 16
      %v518 = vrot.slane %v516, 5
      %v519 = vor.u32 %v515, %v518
      %v520 = vrot.slane %v519, 4
      %v522 = vshll.u32 %v446, 16
      %v524 = vrot.slane %v522, 5
      %v525 = vsel %vm455, %v520, %v524
      %v527 = vshrl.u32 %v447, 16
      %v529 = vrot.slane %v527, 4
      %v530 = vshll.u32 %v447, 16
      %v532 = vrot.slane %v530, 5
      %v533 = vor.u32 %v529, %v532
      %v534 = vrot.slane %v533, 4
      %v536 = vshll.u32 %v448, 16
      %v538 = vrot.slane %v536, 5
      %v539 = vsel %vm455, %v534, %v538
      %v541 = vshrl.u32 %v449, 16
      %v543 = vrot.slane %v541, 4
      %v544 = vshll.u32 %v449, 16
      %v546 = vrot.slane %v544, 5
      %v547 = vor.u32 %v543, %v546
      %v548 = vrot.slane %v547, 4
      %v550 = vshll.u32 %v450, 16
      %v552 = vrot.slane %v550, 5
      %v553 = vsel %vm455, %v548, %v552
      %v555 = vshrl.u32 %v451, 16
      %v557 = vrot.slane %v555, 4
      %v558 = vshll.u32 %v451, 16
      %v560 = vrot.slane %v558, 5
      %v561 = vor.u32 %v557, %v560
      %v562 = vrot.slane %v561, 4
      %v564 = vshll.u32 %v452, 16
      %v566 = vrot.slane %v564, 5
      %v567 = vsel %vm455, %v562, %v566
      %s568 = scalar_lea.vmem %s1, 4
      %v569 = vld [vmem:[%s568] sm:$0x3]
      %v570 = vunpack.c.l.b16 %v469
      %v571 = vunpack.c.l.b16 %v483
      %v572 = vunpack.c.l.b16 %v497
      %v573 = vunpack.c.l.b16 %v511
      %v574 = vunpack.c.l.b16 %v525
      %v575 = vunpack.c.l.b16 %v539
      %v576 = vunpack.c.l.b16 %v553
      %v577 = vunpack.c.l.b16 %v567
      %v578 = vpack.c.b16 %v571, %v570
      %v579 = vpack.c.b16 %v573, %v572
      %v580 = vpack.c.b16 %v575, %v574
      %v581 = vpack.c.b16 %v577, %v576
      %v583 = vsel %vm255, %v578, 0
      %v586 = vsel %vm255, %v579, 0
      %v589 = vsel %vm255, %v580, 0
      %v592 = vsel %vm255, %v581, 0
      %v595 = vsel %vm268, %v569, 0
      %597 = vmatprep.subr.bf16.mxu0 0
      %598 = vmatpush1.bf16.msra.mxu0 %v595
      %599 = vmatprep.subr.bf16.mxu0 0
      %600 = vmatpush1.bf16.msra.mxu0 0
      %601 = vmatprep.subr.bf16.mxu0 0
      %602 = vmatpush1.bf16.msra.mxu0 0
      %603 = vmatprep.subr.bf16.mxu0 0
      %604 = vmatpush1.bf16.msra.mxu0 0
      %605 = vmatprep.subr.bf16.mxu0 0
      %606 = vmatpush1.bf16.msra.mxu0 0
      %607 = vmatprep.subr.bf16.mxu0 0
      %608 = vmatpush1.bf16.msra.mxu0 0
      %609 = vmatprep.subr.bf16.mxu0 0
      %610 = vmatpush1.bf16.msra.mxu0 0
      %611 = vmatprep.subr.bf16.mxu0 0
      %612 = vmatpush1.bf16.msra.mxu0 0
      %613 = vmatprep.subr.bf16.mxu0 0
      %614 = vmatpush1.bf16.msra.mxu0 0
      %615 = vmatprep.subr.bf16.mxu0 0
      %616 = vmatpush1.bf16.msra.mxu0 0
      %617 = vmatprep.subr.bf16.mxu0 0
      %618 = vmatpush1.bf16.msra.mxu0 0
      %619 = vmatprep.subr.bf16.mxu0 0
      %620 = vmatpush1.bf16.msra.mxu0 0
      %621 = vmatprep.subr.bf16.mxu0 0
      %622 = vmatpush1.bf16.msra.mxu0 0
      %623 = vmatprep.subr.bf16.mxu0 0
      %624 = vmatpush1.bf16.msra.mxu0 0
      %625 = vmatprep.subr.bf16.mxu0 0
      %626 = vmatpush1.bf16.msra.mxu0 0
      %627 = vmatprep.subr.bf16.mxu0 0
      %628 = vmatpush1.bf16.msra.mxu0 0
      %629 = vmatprep.mubr.bf16.mxu0 0
      %630 = vmatmul.mubr.bf16.gmra.mrb[0].mxu0 %v583
      %v631 = vpop.f32.mrb[0].mxu0
      %v632 = vadd.f32 0.0, %v631
      %v633 = vpop.f32.mrb[0].mxu0
      %v634 = vpop.f32.mrb[0].mxu0
      %v635 = vadd.f32 0.0, %v634
      %v636 = vpop.f32.mrb[0].mxu0
      %637 = vmatprep.mubr.bf16.mxu0 0
      %638 = vmatmul.mubr.bf16.gmra.mrb[0].mxu0 %v586
      %v639 = vpop.f32.mrb[0].mxu0
      %v640 = vadd.f32 0.0, %v639
      %v641 = vpop.f32.mrb[0].mxu0
      %v642 = vpop.f32.mrb[0].mxu0
      %v643 = vadd.f32 0.0, %v642
      %v644 = vpop.f32.mrb[0].mxu0
      %645 = vmatprep.mubr.bf16.mxu0 0
      %646 = vmatmul.mubr.bf16.gmra.mrb[0].mxu0 %v589
      %v647 = vpop.f32.mrb[0].mxu0
      %v648 = vadd.f32 0.0, %v647
      %v649 = vpop.f32.mrb[0].mxu0
      %v650 = vpop.f32.mrb[0].mxu0
      %v651 = vadd.f32 0.0, %v650
      %v652 = vpop.f32.mrb[0].mxu0
      %653 = vmatprep.mubr.bf16.mxu0 0
      %654 = vmatmul.mubr.bf16.gmra.mrb[0].mxu0 %v592
      %v655 = vpop.f32.mrb[0].mxu0
      %v656 = vadd.f32 0.0, %v655
      %v657 = vpop.f32.mrb[0].mxu0
      %v658 = vpop.f32.mrb[0].mxu0
      %v659 = vadd.f32 0.0, %v658
      %v660 = vpop.f32.mrb[0].mxu0
      %661 = vdwg.mxu0
      %v662 = vadd.f32 %v407, %v632
      %v663 = vadd.f32 %v410, %v635
      %v664 = vadd.f32 %v415, %v640
      %v665 = vadd.f32 %v418, %v643
      %v666 = vadd.f32 %v423, %v648
      %v667 = vadd.f32 %v426, %v651
      %v668 = vadd.f32 %v431, %v656
      %v669 = vadd.f32 %v434, %v659
      %s670 = sadd.s32 %s210, 36
      %s671 = smul.addr %s670, 4
      %s672 = scalar_lea.vmem %s192, %s671
      %v673 = vld [vmem:[%s672] sm:$0xf]
      %v674 = vld [vmem:[%s672 + $0x8] sm:$0xf]
      %v675 = vld [vmem:[%s672 + $0x10] sm:$0xf]
      %v676 = vld [vmem:[%s672 + $0x18] sm:$0xf]
      %v677 = vld [vmem:[%s672 + $0x20] sm:$0xf]
      %v678 = vld [vmem:[%s672 + $0x28] sm:$0xf]
      %v679 = vld [vmem:[%s672 + $0x30] sm:$0xf]
      %v680 = vld [vmem:[%s672 + $0x38] sm:$0xf]
      %s681 = scalar_lea.vmem %s1, 6
      %v682 = vld [vmem:[%s681] sm:$0x3]
      %v691 = vunpack.c.l.b16 %v673
      %v692 = vunpack.c.l.b16 %v674
      %v693 = vunpack.c.l.b16 %v675
      %v694 = vunpack.c.l.b16 %v676
      %v695 = vunpack.c.l.b16 %v677
      %v696 = vunpack.c.l.b16 %v678
      %v697 = vunpack.c.l.b16 %v679
      %v698 = vunpack.c.l.b16 %v680
      %v699 = vpack.c.b16 %v692, %v691
      %v700 = vpack.c.b16 %v694, %v693
      %v701 = vpack.c.b16 %v696, %v695
      %v702 = vpack.c.b16 %v698, %v697
      %v704 = vsel %vm255, %v699, 0
      %v707 = vsel %vm255, %v700, 0
      %v710 = vsel %vm255, %v701, 0
      %v713 = vsel %vm255, %v702, 0
      %v716 = vsel %vm268, %v682, 0
      %718 = vmatprep.subr.bf16.mxu0 0
      %719 = vmatpush1.bf16.msra.mxu0 %v716
      %720 = vmatprep.subr.bf16.mxu0 0
      %721 = vmatpush1.bf16.msra.mxu0 0
      %722 = vmatprep.subr.bf16.mxu0 0
      %723 = vmatpush1.bf16.msra.mxu0 0
      %724 = vmatprep.subr.bf16.mxu0 0
      %725 = vmatpush1.bf16.msra.mxu0 0
      %726 = vmatprep.subr.bf16.mxu0 0
      %727 = vmatpush1.bf16.msra.mxu0 0
      %728 = vmatprep.subr.bf16.mxu0 0
      %729 = vmatpush1.bf16.msra.mxu0 0
      %730 = vmatprep.subr.bf16.mxu0 0
      %731 = vmatpush1.bf16.msra.mxu0 0
      %732 = vmatprep.subr.bf16.mxu0 0
      %733 = vmatpush1.bf16.msra.mxu0 0
      %734 = vmatprep.subr.bf16.mxu0 0
      %735 = vmatpush1.bf16.msra.mxu0 0
      %736 = vmatprep.subr.bf16.mxu0 0
      %737 = vmatpush1.bf16.msra.mxu0 0
      %738 = vmatprep.subr.bf16.mxu0 0
      %739 = vmatpush1.bf16.msra.mxu0 0
      %740 = vmatprep.subr.bf16.mxu0 0
      %741 = vmatpush1.bf16.msra.mxu0 0
      %742 = vmatprep.subr.bf16.mxu0 0
      %743 = vmatpush1.bf16.msra.mxu0 0
      %744 = vmatprep.subr.bf16.mxu0 0
      %745 = vmatpush1.bf16.msra.mxu0 0
      %746 = vmatprep.subr.bf16.mxu0 0
      %747 = vmatpush1.bf16.msra.mxu0 0
      %748 = vmatprep.subr.bf16.mxu0 0
      %749 = vmatpush1.bf16.msra.mxu0 0
      %750 = vmatprep.mubr.bf16.mxu0 0
      %751 = vmatmul.mubr.bf16.gmra.mrb[0].mxu0 %v704
      %v752 = vpop.f32.mrb[0].mxu0
      %v753 = vadd.f32 0.0, %v752
      %v754 = vpop.f32.mrb[0].mxu0
      %v755 = vpop.f32.mrb[0].mxu0
      %v756 = vadd.f32 0.0, %v755
      %v757 = vpop.f32.mrb[0].mxu0
      %758 = vmatprep.mubr.bf16.mxu0 0
      %759 = vmatmul.mubr.bf16.gmra.mrb[0].mxu0 %v707
      %v760 = vpop.f32.mrb[0].mxu0
      %v761 = vadd.f32 0.0, %v760
      %v762 = vpop.f32.mrb[0].mxu0
      %v763 = vpop.f32.mrb[0].mxu0
      %v764 = vadd.f32 0.0, %v763
      %v765 = vpop.f32.mrb[0].mxu0
      %766 = vmatprep.mubr.bf16.mxu0 0
      %767 = vmatmul.mubr.bf16.gmra.mrb[0].mxu0 %v710
      %v768 = vpop.f32.mrb[0].mxu0
      %v769 = vadd.f32 0.0, %v768
      %v770 = vpop.f32.mrb[0].mxu0
      %v771 = vpop.f32.mrb[0].mxu0
      %v772 = vadd.f32 0.0, %v771
      %v773 = vpop.f32.mrb[0].mxu0
      %774 = vmatprep.mubr.bf16.mxu0 0
      %775 = vmatmul.mubr.bf16.gmra.mrb[0].mxu0 %v713
      %v776 = vpop.f32.mrb[0].mxu0
      %v777 = vadd.f32 0.0, %v776
      %v778 = vpop.f32.mrb[0].mxu0
      %v779 = vpop.f32.mrb[0].mxu0
      %v780 = vadd.f32 0.0, %v779
      %v781 = vpop.f32.mrb[0].mxu0
      %782 = vdwg.mxu0
      %v783 = vadd.f32 %v662, %v753
      %v784 = vadd.f32 %v663, %v756
      %v785 = vadd.f32 %v664, %v761
      %v786 = vadd.f32 %v665, %v764
      %v787 = vadd.f32 %v666, %v769
      %v788 = vadd.f32 %v667, %v772
      %v789 = vadd.f32 %v668, %v777
      %v790 = vadd.f32 %v669, %v780
      %s791 = sadd.s32 %s210, 54
      %s792 = smul.addr %s791, 4
      %s793 = scalar_lea.vmem %s192, %s792
      %v794 = vld [vmem:[%s793] sm:$0xf]
      %v795 = vld [vmem:[%s793 + $0x8] sm:$0xf]
      %v796 = vld [vmem:[%s793 + $0x10] sm:$0xf]
      %v797 = vld [vmem:[%s793 + $0x18] sm:$0xf]
      %v798 = vld [vmem:[%s793 + $0x20] sm:$0xf]
      %v799 = vld [vmem:[%s793 + $0x28] sm:$0xf]
      %v800 = vld [vmem:[%s793 + $0x30] sm:$0xf]
      %v801 = vld [vmem:[%s793 + $0x38] sm:$0xf]
      %s802 = scalar_lea.vmem %s1, 8
      %v803 = vld [vmem:[%s802] sm:$0x3]
      %v812 = vunpack.c.l.b16 %v794
      %v813 = vunpack.c.l.b16 %v795
      %v814 = vunpack.c.l.b16 %v796
      %v815 = vunpack.c.l.b16 %v797
      %v816 = vunpack.c.l.b16 %v798
      %v817 = vunpack.c.l.b16 %v799
      %v818 = vunpack.c.l.b16 %v800
      %v819 = vunpack.c.l.b16 %v801
      %v820 = vpack.c.b16 %v813, %v812
      %v821 = vpack.c.b16 %v815, %v814
      %v822 = vpack.c.b16 %v817, %v816
      %v823 = vpack.c.b16 %v819, %v818
      %v825 = vsel %vm255, %v820, 0
      %v828 = vsel %vm255, %v821, 0
      %v831 = vsel %vm255, %v822, 0
      %v834 = vsel %vm255, %v823, 0
      %v837 = vsel %vm268, %v803, 0
      %839 = vmatprep.subr.bf16.mxu0 0
      %840 = vmatpush1.bf16.msra.mxu0 %v837
      %841 = vmatprep.subr.bf16.mxu0 0
      %842 = vmatpush1.bf16.msra.mxu0 0
      %843 = vmatprep.subr.bf16.mxu0 0
      %844 = vmatpush1.bf16.msra.mxu0 0
      %845 = vmatprep.subr.bf16.mxu0 0
      %846 = vmatpush1.bf16.msra.mxu0 0
      %847 = vmatprep.subr.bf16.mxu0 0
      %848 = vmatpush1.bf16.msra.mxu0 0
      %849 = vmatprep.subr.bf16.mxu0 0
      %850 = vmatpush1.bf16.msra.mxu0 0
      %851 = vmatprep.subr.bf16.mxu0 0
      %852 = vmatpush1.bf16.msra.mxu0 0
      %853 = vmatprep.subr.bf16.mxu0 0
      %854 = vmatpush1.bf16.msra.mxu0 0
      %855 = vmatprep.subr.bf16.mxu0 0
      %856 = vmatpush1.bf16.msra.mxu0 0
      %857 = vmatprep.subr.bf16.mxu0 0
      %858 = vmatpush1.bf16.msra.mxu0 0
      %859 = vmatprep.subr.bf16.mxu0 0
      %860 = vmatpush1.bf16.msra.mxu0 0
      %861 = vmatprep.subr.bf16.mxu0 0
      %862 = vmatpush1.bf16.msra.mxu0 0
      %863 = vmatprep.subr.bf16.mxu0 0
      %864 = vmatpush1.bf16.msra.mxu0 0
      %865 = vmatprep.subr.bf16.mxu0 0
      %866 = vmatpush1.bf16.msra.mxu0 0
      %867 = vmatprep.subr.bf16.mxu0 0
      %868 = vmatpush1.bf16.msra.mxu0 0
      %869 = vmatprep.subr.bf16.mxu0 0
      %870 = vmatpush1.bf16.msra.mxu0 0
      %871 = vmatprep.mubr.bf16.mxu0 0
      %872 = vmatmul.mubr.bf16.gmra.mrb[0].mxu0 %v825
      %v873 = vpop.f32.mrb[0].mxu0
      %v874 = vadd.f32 0.0, %v873
      %v875 = vpop.f32.mrb[0].mxu0
      %v876 = vpop.f32.mrb[0].mxu0
      %v877 = vadd.f32 0.0, %v876
      %v878 = vpop.f32.mrb[0].mxu0
      %879 = vmatprep.mubr.bf16.mxu0 0
      %880 = vmatmul.mubr.bf16.gmra.mrb[0].mxu0 %v828
      %v881 = vpop.f32.mrb[0].mxu0
      %v882 = vadd.f32 0.0, %v881
      %v883 = vpop.f32.mrb[0].mxu0
      %v884 = vpop.f32.mrb[0].mxu0
      %v885 = vadd.f32 0.0, %v884
      %v886 = vpop.f32.mrb[0].mxu0
      %887 = vmatprep.mubr.bf16.mxu0 0
      %888 = vmatmul.mubr.bf16.gmra.mrb[0].mxu0 %v831
      %v889 = vpop.f32.mrb[0].mxu0
      %v890 = vadd.f32 0.0, %v889
      %v891 = vpop.f32.mrb[0].mxu0
      %v892 = vpop.f32.mrb[0].mxu0
      %v893 = vadd.f32 0.0, %v892
      %v894 = vpop.f32.mrb[0].mxu0
      %895 = vmatprep.mubr.bf16.mxu0 0
      %896 = vmatmul.mubr.bf16.gmra.mrb[0].mxu0 %v834
      %v897 = vpop.f32.mrb[0].mxu0
      %v898 = vadd.f32 0.0, %v897
      %v899 = vpop.f32.mrb[0].mxu0
      %v900 = vpop.f32.mrb[0].mxu0
      %v901 = vadd.f32 0.0, %v900
      %v902 = vpop.f32.mrb[0].mxu0
      %903 = vdwg.mxu0
      %v904 = vadd.f32 %v783, %v874
      %v905 = vadd.f32 %v784, %v877
      %v906 = vadd.f32 %v785, %v882
      %v907 = vadd.f32 %v786, %v885
      %v908 = vadd.f32 %v787, %v890
      %v909 = vadd.f32 %v788, %v893
      %v910 = vadd.f32 %v789, %v898
      %v911 = vadd.f32 %v790, %v901
      %v912 = vld [vmem:[%s672] sm:$0xf]
      %v913 = vld [vmem:[%s672 + $0x4] sm:$0x1]
      %v914 = vld [vmem:[%s672 + $0x8] sm:$0xf]
      %v915 = vld [vmem:[%s672 + $0xc] sm:$0x1]
      %v916 = vld [vmem:[%s672 + $0x10] sm:$0xf]
      %v917 = vld [vmem:[%s672 + $0x14] sm:$0x1]
      %v918 = vld [vmem:[%s672 + $0x18] sm:$0xf]
      %v919 = vld [vmem:[%s672 + $0x1c] sm:$0x1]
      %v920 = vld [vmem:[%s672 + $0x20] sm:$0xf]
      %v921 = vld [vmem:[%s672 + $0x24] sm:$0x1]
      %v922 = vld [vmem:[%s672 + $0x28] sm:$0xf]
      %v923 = vld [vmem:[%s672 + $0x2c] sm:$0x1]
      %v924 = vld [vmem:[%s672 + $0x30] sm:$0xf]
      %v925 = vld [vmem:[%s672 + $0x34] sm:$0x1]
      %v926 = vld [vmem:[%s672 + $0x38] sm:$0xf]
      %v927 = vld [vmem:[%s672 + $0x3c] sm:$0x1]
      %v929 = vshrl.u32 %v912, 16
      %v931 = vrot.slane %v929, 4
      %v932 = vshll.u32 %v912, 16
      %v934 = vrot.slane %v932, 5
      %v935 = vor.u32 %v931, %v934
      %v936 = vrot.slane %v935, 4
      %v938 = vshll.u32 %v913, 16
      %v940 = vrot.slane %v938, 5
      %v941 = vsel %vm455, %v936, %v940
      %v943 = vshrl.u32 %v914, 16
      %v945 = vrot.slane %v943, 4
      %v946 = vshll.u32 %v914, 16
      %v948 = vrot.slane %v946, 5
      %v949 = vor.u32 %v945, %v948
      %v950 = vrot.slane %v949, 4
      %v952 = vshll.u32 %v915, 16
      %v954 = vrot.slane %v952, 5
      %v955 = vsel %vm455, %v950, %v954
      %v957 = vshrl.u32 %v916, 16
      %v959 = vrot.slane %v957, 4
      %v960 = vshll.u32 %v916, 16
      %v962 = vrot.slane %v960, 5
      %v963 = vor.u32 %v959, %v962
      %v964 = vrot.slane %v963, 4
      %v966 = vshll.u32 %v917, 16
      %v968 = vrot.slane %v966, 5
      %v969 = vsel %vm455, %v964, %v968
      %v971 = vshrl.u32 %v918, 16
      %v973 = vrot.slane %v971, 4
      %v974 = vshll.u32 %v918, 16
      %v976 = vrot.slane %v974, 5
      %v977 = vor.u32 %v973, %v976
      %v978 = vrot.slane %v977, 4
      %v980 = vshll.u32 %v919, 16
      %v982 = vrot.slane %v980, 5
      %v983 = vsel %vm455, %v978, %v982
      %v985 = vshrl.u32 %v920, 16
      %v987 = vrot.slane %v985, 4
      %v988 = vshll.u32 %v920, 16
      %v990 = vrot.slane %v988, 5
      %v991 = vor.u32 %v987, %v990
      %v992 = vrot.slane %v991, 4
      %v994 = vshll.u32 %v921, 16
      %v996 = vrot.slane %v994, 5
      %v997 = vsel %vm455, %v992, %v996
      %v999 = vshrl.u32 %v922, 16
      %v1001 = vrot.slane %v999, 4
      %v1002 = vshll.u32 %v922, 16
      %v1004 = vrot.slane %v1002, 5
      %v1005 = vor.u32 %v1001, %v1004
      %v1006 = vrot.slane %v1005, 4
      %v1008 = vshll.u32 %v923, 16
      %v1010 = vrot.slane %v1008, 5
      %v1011 = vsel %vm455, %v1006, %v1010
      %v1013 = vshrl.u32 %v924, 16
      %v1015 = vrot.slane %v1013, 4
      %v1016 = vshll.u32 %v924, 16
      %v1018 = vrot.slane %v1016, 5
      %v1019 = vor.u32 %v1015, %v1018
      %v1020 = vrot.slane %v1019, 4
      %v1022 = vshll.u32 %v925, 16
      %v1024 = vrot.slane %v1022, 5
      %v1025 = vsel %vm455, %v1020, %v1024
      %v1027 = vshrl.u32 %v926, 16
      %v1029 = vrot.slane %v1027, 4
      %v1030 = vshll.u32 %v926, 16
      %v1032 = vrot.slane %v1030, 5
      %v1033 = vor.u32 %v1029, %v1032
      %v1034 = vrot.slane %v1033, 4
      %v1036 = vshll.u32 %v927, 16
      %v1038 = vrot.slane %v1036, 5
      %v1039 = vsel %vm455, %v1034, %v1038
      %s1040 = scalar_lea.vmem %s1, 10
      %v1041 = vld [vmem:[%s1040] sm:$0x3]
      %v1042 = vunpack.c.l.b16 %v941
      %v1043 = vunpack.c.l.b16 %v955
      %v1044 = vunpack.c.l.b16 %v969
      %v1045 = vunpack.c.l.b16 %v983
      %v1046 = vunpack.c.l.b16 %v997
      %v1047 = vunpack.c.l.b16 %v1011
      %v1048 = vunpack.c.l.b16 %v1025
      %v1049 = vunpack.c.l.b16 %v1039
      %v1050 = vpack.c.b16 %v1043, %v1042
      %v1051 = vpack.c.b16 %v1045, %v1044
      %v1052 = vpack.c.b16 %v1047, %v1046
      %v1053 = vpack.c.b16 %v1049, %v1048
      %v1055 = vsel %vm255, %v1050, 0
      %v1058 = vsel %vm255, %v1051, 0
      %v1061 = vsel %vm255, %v1052, 0
      %v1064 = vsel %vm255, %v1053, 0
      %v1067 = vsel %vm268, %v1041, 0
      %1069 = vmatprep.subr.bf16.mxu0 0
      %1070 = vmatpush1.bf16.msra.mxu0 %v1067
      %1071 = vmatprep.subr.bf16.mxu0 0
      %1072 = vmatpush1.bf16.msra.mxu0 0
      %1073 = vmatprep.subr.bf16.mxu0 0
      %1074 = vmatpush1.bf16.msra.mxu0 0
      %1075 = vmatprep.subr.bf16.mxu0 0
      %1076 = vmatpush1.bf16.msra.mxu0 0
      %1077 = vmatprep.subr.bf16.mxu0 0
      %1078 = vmatpush1.bf16.msra.mxu0 0
      %1079 = vmatprep.subr.bf16.mxu0 0
      %1080 = vmatpush1.bf16.msra.mxu0 0
      %1081 = vmatprep.subr.bf16.mxu0 0
      %1082 = vmatpush1.bf16.msra.mxu0 0
      %1083 = vmatprep.subr.bf16.mxu0 0
      %1084 = vmatpush1.bf16.msra.mxu0 0
      %1085 = vmatprep.subr.bf16.mxu0 0
      %1086 = vmatpush1.bf16.msra.mxu0 0
      %1087 = vmatprep.subr.bf16.mxu0 0
      %1088 = vmatpush1.bf16.msra.mxu0 0
      %1089 = vmatprep.subr.bf16.mxu0 0
      %1090 = vmatpush1.bf16.msra.mxu0 0
      %1091 = vmatprep.subr.bf16.mxu0 0
      %1092 = vmatpush1.bf16.msra.mxu0 0
      %1093 = vmatprep.subr.bf16.mxu0 0
      %1094 = vmatpush1.bf16.msra.mxu0 0
      %1095 = vmatprep.subr.bf16.mxu0 0
      %1096 = vmatpush1.bf16.msra.mxu0 0
      %1097 = vmatprep.subr.bf16.mxu0 0
      %1098 = vmatpush1.bf16.msra.mxu0 0
      %1099 = vmatprep.subr.bf16.mxu0 0
      %1100 = vmatpush1.bf16.msra.mxu0 0
      %1101 = vmatprep.mubr.bf16.mxu0 0
      %1102 = vmatmul.mubr.bf16.gmra.mrb[0].mxu0 %v1055
      %v1103 = vpop.f32.mrb[0].mxu0
      %v1104 = vadd.f32 0.0, %v1103
      %v1105 = vpop.f32.mrb[0].mxu0
      %v1106 = vpop.f32.mrb[0].mxu0
      %v1107 = vadd.f32 0.0, %v1106
      %v1108 = vpop.f32.mrb[0].mxu0
      %1109 = vmatprep.mubr.bf16.mxu0 0
      %1110 = vmatmul.mubr.bf16.gmra.mrb[0].mxu0 %v1058
      %v1111 = vpop.f32.mrb[0].mxu0
      %v1112 = vadd.f32 0.0, %v1111
      %v1113 = vpop.f32.mrb[0].mxu0
      %v1114 = vpop.f32.mrb[0].mxu0
      %v1115 = vadd.f32 0.0, %v1114
      %v1116 = vpop.f32.mrb[0].mxu0
      %1117 = vmatprep.mubr.bf16.mxu0 0
      %1118 = vmatmul.mubr.bf16.gmra.mrb[0].mxu0 %v1061
      %v1119 = vpop.f32.mrb[0].mxu0
      %v1120 = vadd.f32 0.0, %v1119
      %v1121 = vpop.f32.mrb[0].mxu0
      %v1122 = vpop.f32.mrb[0].mxu0
      %v1123 = vadd.f32 0.0, %v1122
      %v1124 = vpop.f32.mrb[0].mxu0
      %1125 = vmatprep.mubr.bf16.mxu0 0
      %1126 = vmatmul.mubr.bf16.gmra.mrb[0].mxu0 %v1064
      %v1127 = vpop.f32.mrb[0].mxu0
      %v1128 = vadd.f32 0.0, %v1127
      %v1129 = vpop.f32.mrb[0].mxu0
      %v1130 = vpop.f32.mrb[0].mxu0
      %v1131 = vadd.f32 0.0, %v1130
      %v1132 = vpop.f32.mrb[0].mxu0
      %1133 = vdwg.mxu0
      %v1134 = vadd.f32 %v904, %v1104
      %v1135 = vadd.f32 %v905, %v1107
      %v1136 = vadd.f32 %v906, %v1112
      %v1137 = vadd.f32 %v907, %v1115
      %v1138 = vadd.f32 %v908, %v1120
      %v1139 = vadd.f32 %v909, %v1123
      %v1140 = vadd.f32 %v910, %v1128
      %v1141 = vadd.f32 %v911, %v1131
      %s1142 = sadd.s32 %s209, 1
      %s1143 = smul.u32 %s1142, 2
      %s1144 = smul.addr %s1143, 4
      %s1145 = scalar_lea.vmem %s192, %s1144
      %v1146 = vld [vmem:[%s1145] sm:$0xf]
      %v1147 = vld [vmem:[%s1145 + $0x8] sm:$0xf]
      %v1148 = vld [vmem:[%s1145 + $0x10] sm:$0xf]
      %v1149 = vld [vmem:[%s1145 + $0x18] sm:$0xf]
      %v1150 = vld [vmem:[%s1145 + $0x20] sm:$0xf]
      %v1151 = vld [vmem:[%s1145 + $0x28] sm:$0xf]
      %v1152 = vld [vmem:[%s1145 + $0x30] sm:$0xf]
      %v1153 = vld [vmem:[%s1145 + $0x38] sm:$0xf]
      %s1154 = scalar_lea.vmem %s1, 12
      %v1155 = vld [vmem:[%s1154] sm:$0x3]
      %v1164 = vunpack.c.l.b16 %v1146
      %v1165 = vunpack.c.l.b16 %v1147
      %v1166 = vunpack.c.l.b16 %v1148
      %v1167 = vunpack.c.l.b16 %v1149
      %v1168 = vunpack.c.l.b16 %v1150
      %v1169 = vunpack.c.l.b16 %v1151
      %v1170 = vunpack.c.l.b16 %v1152
      %v1171 = vunpack.c.l.b16 %v1153
      %v1172 = vpack.c.b16 %v1165, %v1164
      %v1173 = vpack.c.b16 %v1167, %v1166
      %v1174 = vpack.c.b16 %v1169, %v1168
      %v1175 = vpack.c.b16 %v1171, %v1170
      %v1177 = vsel %vm255, %v1172, 0
      %v1180 = vsel %vm255, %v1173, 0
      %v1183 = vsel %vm255, %v1174, 0
      %v1186 = vsel %vm255, %v1175, 0
      %v1189 = vsel %vm268, %v1155, 0
      %1191 = vmatprep.subr.bf16.mxu0 0
      %1192 = vmatpush1.bf16.msra.mxu0 %v1189
      %1193 = vmatprep.subr.bf16.mxu0 0
      %1194 = vmatpush1.bf16.msra.mxu0 0
      %1195 = vmatprep.subr.bf16.mxu0 0
      %1196 = vmatpush1.bf16.msra.mxu0 0
      %1197 = vmatprep.subr.bf16.mxu0 0
      %1198 = vmatpush1.bf16.msra.mxu0 0
      %1199 = vmatprep.subr.bf16.mxu0 0
      %1200 = vmatpush1.bf16.msra.mxu0 0
      %1201 = vmatprep.subr.bf16.mxu0 0
      %1202 = vmatpush1.bf16.msra.mxu0 0
      %1203 = vmatprep.subr.bf16.mxu0 0
      %1204 = vmatpush1.bf16.msra.mxu0 0
      %1205 = vmatprep.subr.bf16.mxu0 0
      %1206 = vmatpush1.bf16.msra.mxu0 0
      %1207 = vmatprep.subr.bf16.mxu0 0
      %1208 = vmatpush1.bf16.msra.mxu0 0
      %1209 = vmatprep.subr.bf16.mxu0 0
      %1210 = vmatpush1.bf16.msra.mxu0 0
      %1211 = vmatprep.subr.bf16.mxu0 0
      %1212 = vmatpush1.bf16.msra.mxu0 0
      %1213 = vmatprep.subr.bf16.mxu0 0
      %1214 = vmatpush1.bf16.msra.mxu0 0
      %1215 = vmatprep.subr.bf16.mxu0 0
      %1216 = vmatpush1.bf16.msra.mxu0 0
      %1217 = vmatprep.subr.bf16.mxu0 0
      %1218 = vmatpush1.bf16.msra.mxu0 0
      %1219 = vmatprep.subr.bf16.mxu0 0
      %1220 = vmatpush1.bf16.msra.mxu0 0
      %1221 = vmatprep.subr.bf16.mxu0 0
      %1222 = vmatpush1.bf16.msra.mxu0 0
      %1223 = vmatprep.mubr.bf16.mxu0 0
      %1224 = vmatmul.mubr.bf16.gmra.mrb[0].mxu0 %v1177
      %v1225 = vpop.f32.mrb[0].mxu0
      %v1226 = vadd.f32 0.0, %v1225
      %v1227 = vpop.f32.mrb[0].mxu0
      %v1228 = vpop.f32.mrb[0].mxu0
      %v1229 = vadd.f32 0.0, %v1228
      %v1230 = vpop.f32.mrb[0].mxu0
      %1231 = vmatprep.mubr.bf16.mxu0 0
      %1232 = vmatmul.mubr.bf16.gmra.mrb[0].mxu0 %v1180
      %v1233 = vpop.f32.mrb[0].mxu0
      %v1234 = vadd.f32 0.0, %v1233
      %v1235 = vpop.f32.mrb[0].mxu0
      %v1236 = vpop.f32.mrb[0].mxu0
      %v1237 = vadd.f32 0.0, %v1236
      %v1238 = vpop.f32.mrb[0].mxu0
      %1239 = vmatprep.mubr.bf16.mxu0 0
      %1240 = vmatmul.mubr.bf16.gmra.mrb[0].mxu0 %v1183
      %v1241 = vpop.f32.mrb[0].mxu0
      %v1242 = vadd.f32 0.0, %v1241
      %v1243 = vpop.f32.mrb[0].mxu0
      %v1244 = vpop.f32.mrb[0].mxu0
      %v1245 = vadd.f32 0.0, %v1244
      %v1246 = vpop.f32.mrb[0].mxu0
      %1247 = vmatprep.mubr.bf16.mxu0 0
      %1248 = vmatmul.mubr.bf16.gmra.mrb[0].mxu0 %v1186
      %v1249 = vpop.f32.mrb[0].mxu0
      %v1250 = vadd.f32 0.0, %v1249
      %v1251 = vpop.f32.mrb[0].mxu0
      %v1252 = vpop.f32.mrb[0].mxu0
      %v1253 = vadd.f32 0.0, %v1252
      %v1254 = vpop.f32.mrb[0].mxu0
      %1255 = vdwg.mxu0
      %v1256 = vadd.f32 %v1134, %v1226
      %v1257 = vadd.f32 %v1135, %v1229
      %v1258 = vadd.f32 %v1136, %v1234
      %v1259 = vadd.f32 %v1137, %v1237
      %v1260 = vadd.f32 %v1138, %v1242
      %v1261 = vadd.f32 %v1139, %v1245
      %v1262 = vadd.f32 %v1140, %v1250
      %v1263 = vadd.f32 %v1141, %v1253
      %s1264 = sadd.s32 %s1143, 18
      %s1265 = smul.addr %s1264, 4
      %s1266 = scalar_lea.vmem %s192, %s1265
      %v1267 = vld [vmem:[%s1266] sm:$0xf]
      %v1268 = vld [vmem:[%s1266 + $0x8] sm:$0xf]
      %v1269 = vld [vmem:[%s1266 + $0x10] sm:$0xf]
      %v1270 = vld [vmem:[%s1266 + $0x18] sm:$0xf]
      %v1271 = vld [vmem:[%s1266 + $0x20] sm:$0xf]
      %v1272 = vld [vmem:[%s1266 + $0x28] sm:$0xf]
      %v1273 = vld [vmem:[%s1266 + $0x30] sm:$0xf]
      %v1274 = vld [vmem:[%s1266 + $0x38] sm:$0xf]
      %s1275 = scalar_lea.vmem %s1, 14
      %v1276 = vld [vmem:[%s1275] sm:$0x3]
      %v1285 = vunpack.c.l.b16 %v1267
      %v1286 = vunpack.c.l.b16 %v1268
      %v1287 = vunpack.c.l.b16 %v1269
      %v1288 = vunpack.c.l.b16 %v1270
      %v1289 = vunpack.c.l.b16 %v1271
      %v1290 = vunpack.c.l.b16 %v1272
      %v1291 = vunpack.c.l.b16 %v1273
      %v1292 = vunpack.c.l.b16 %v1274
      %v1293 = vpack.c.b16 %v1286, %v1285
      %v1294 = vpack.c.b16 %v1288, %v1287
      %v1295 = vpack.c.b16 %v1290, %v1289
      %v1296 = vpack.c.b16 %v1292, %v1291
      %v1298 = vsel %vm255, %v1293, 0
      %v1301 = vsel %vm255, %v1294, 0
      %v1304 = vsel %vm255, %v1295, 0
      %v1307 = vsel %vm255, %v1296, 0
      %v1310 = vsel %vm268, %v1276, 0
      %1312 = vmatprep.subr.bf16.mxu0 0
      %1313 = vmatpush1.bf16.msra.mxu0 %v1310
      %1314 = vmatprep.subr.bf16.mxu0 0
      %1315 = vmatpush1.bf16.msra.mxu0 0
      %1316 = vmatprep.subr.bf16.mxu0 0
      %1317 = vmatpush1.bf16.msra.mxu0 0
      %1318 = vmatprep.subr.bf16.mxu0 0
      %1319 = vmatpush1.bf16.msra.mxu0 0
      %1320 = vmatprep.subr.bf16.mxu0 0
      %1321 = vmatpush1.bf16.msra.mxu0 0
      %1322 = vmatprep.subr.bf16.mxu0 0
      %1323 = vmatpush1.bf16.msra.mxu0 0
      %1324 = vmatprep.subr.bf16.mxu0 0
      %1325 = vmatpush1.bf16.msra.mxu0 0
      %1326 = vmatprep.subr.bf16.mxu0 0
      %1327 = vmatpush1.bf16.msra.mxu0 0
      %1328 = vmatprep.subr.bf16.mxu0 0
      %1329 = vmatpush1.bf16.msra.mxu0 0
      %1330 = vmatprep.subr.bf16.mxu0 0
      %1331 = vmatpush1.bf16.msra.mxu0 0
      %1332 = vmatprep.subr.bf16.mxu0 0
      %1333 = vmatpush1.bf16.msra.mxu0 0
      %1334 = vmatprep.subr.bf16.mxu0 0
      %1335 = vmatpush1.bf16.msra.mxu0 0
      %1336 = vmatprep.subr.bf16.mxu0 0
      %1337 = vmatpush1.bf16.msra.mxu0 0
      %1338 = vmatprep.subr.bf16.mxu0 0
      %1339 = vmatpush1.bf16.msra.mxu0 0
      %1340 = vmatprep.subr.bf16.mxu0 0
      %1341 = vmatpush1.bf16.msra.mxu0 0
      %1342 = vmatprep.subr.bf16.mxu0 0
      %1343 = vmatpush1.bf16.msra.mxu0 0
      %1344 = vmatprep.mubr.bf16.mxu0 0
      %1345 = vmatmul.mubr.bf16.gmra.mrb[0].mxu0 %v1298
      %v1346 = vpop.f32.mrb[0].mxu0
      %v1347 = vadd.f32 0.0, %v1346
      %v1348 = vpop.f32.mrb[0].mxu0
      %v1349 = vpop.f32.mrb[0].mxu0
      %v1350 = vadd.f32 0.0, %v1349
      %v1351 = vpop.f32.mrb[0].mxu0
      %1352 = vmatprep.mubr.bf16.mxu0 0
      %1353 = vmatmul.mubr.bf16.gmra.mrb[0].mxu0 %v1301
      %v1354 = vpop.f32.mrb[0].mxu0
      %v1355 = vadd.f32 0.0, %v1354
      %v1356 = vpop.f32.mrb[0].mxu0
      %v1357 = vpop.f32.mrb[0].mxu0
      %v1358 = vadd.f32 0.0, %v1357
      %v1359 = vpop.f32.mrb[0].mxu0
      %1360 = vmatprep.mubr.bf16.mxu0 0
      %1361 = vmatmul.mubr.bf16.gmra.mrb[0].mxu0 %v1304
      %v1362 = vpop.f32.mrb[0].mxu0
      %v1363 = vadd.f32 0.0, %v1362
      %v1364 = vpop.f32.mrb[0].mxu0
      %v1365 = vpop.f32.mrb[0].mxu0
      %v1366 = vadd.f32 0.0, %v1365
      %v1367 = vpop.f32.mrb[0].mxu0
      %1368 = vmatprep.mubr.bf16.mxu0 0
      %1369 = vmatmul.mubr.bf16.gmra.mrb[0].mxu0 %v1307
      %v1370 = vpop.f32.mrb[0].mxu0
      %v1371 = vadd.f32 0.0, %v1370
      %v1372 = vpop.f32.mrb[0].mxu0
      %v1373 = vpop.f32.mrb[0].mxu0
      %v1374 = vadd.f32 0.0, %v1373
      %v1375 = vpop.f32.mrb[0].mxu0
      %1376 = vdwg.mxu0
      %v1377 = vadd.f32 %v1256, %v1347
      %v1378 = vadd.f32 %v1257, %v1350
      %v1379 = vadd.f32 %v1258, %v1355
      %v1380 = vadd.f32 %v1259, %v1358
      %v1381 = vadd.f32 %v1260, %v1363
      %v1382 = vadd.f32 %v1261, %v1366
      %v1383 = vadd.f32 %v1262, %v1371
      %v1384 = vadd.f32 %v1263, %v1374
      %v1385 = vld [vmem:[%s1145] sm:$0xf]
      %v1386 = vld [vmem:[%s1145 + $0x4] sm:$0x1]
      %v1387 = vld [vmem:[%s1145 + $0x8] sm:$0xf]
      %v1388 = vld [vmem:[%s1145 + $0xc] sm:$0x1]
      %v1389 = vld [vmem:[%s1145 + $0x10] sm:$0xf]
      %v1390 = vld [vmem:[%s1145 + $0x14] sm:$0x1]
      %v1391 = vld [vmem:[%s1145 + $0x18] sm:$0xf]
      %v1392 = vld [vmem:[%s1145 + $0x1c] sm:$0x1]
      %v1393 = vld [vmem:[%s1145 + $0x20] sm:$0xf]
      %v1394 = vld [vmem:[%s1145 + $0x24] sm:$0x1]
      %v1395 = vld [vmem:[%s1145 + $0x28] sm:$0xf]
      %v1396 = vld [vmem:[%s1145 + $0x2c] sm:$0x1]
      %v1397 = vld [vmem:[%s1145 + $0x30] sm:$0xf]
      %v1398 = vld [vmem:[%s1145 + $0x34] sm:$0x1]
      %v1399 = vld [vmem:[%s1145 + $0x38] sm:$0xf]
      %v1400 = vld [vmem:[%s1145 + $0x3c] sm:$0x1]
      %v1402 = vshrl.u32 %v1385, 16
      %v1404 = vrot.slane %v1402, 4
      %v1405 = vshll.u32 %v1385, 16
      %v1407 = vrot.slane %v1405, 5
      %v1408 = vor.u32 %v1404, %v1407
      %v1409 = vrot.slane %v1408, 4
      %v1411 = vshll.u32 %v1386, 16
      %v1413 = vrot.slane %v1411, 5
      %v1414 = vsel %vm455, %v1409, %v1413
      %v1416 = vshrl.u32 %v1387, 16
      %v1418 = vrot.slane %v1416, 4
      %v1419 = vshll.u32 %v1387, 16
      %v1421 = vrot.slane %v1419, 5
      %v1422 = vor.u32 %v1418, %v1421
      %v1423 = vrot.slane %v1422, 4
      %v1425 = vshll.u32 %v1388, 16
      %v1427 = vrot.slane %v1425, 5
      %v1428 = vsel %vm455, %v1423, %v1427
      %v1430 = vshrl.u32 %v1389, 16
      %v1432 = vrot.slane %v1430, 4
      %v1433 = vshll.u32 %v1389, 16
      %v1435 = vrot.slane %v1433, 5
      %v1436 = vor.u32 %v1432, %v1435
      %v1437 = vrot.slane %v1436, 4
      %v1439 = vshll.u32 %v1390, 16
      %v1441 = vrot.slane %v1439, 5
      %v1442 = vsel %vm455, %v1437, %v1441
      %v1444 = vshrl.u32 %v1391, 16
      %v1446 = vrot.slane %v1444, 4
      %v1447 = vshll.u32 %v1391, 16
      %v1449 = vrot.slane %v1447, 5
      %v1450 = vor.u32 %v1446, %v1449
      %v1451 = vrot.slane %v1450, 4
      %v1453 = vshll.u32 %v1392, 16
      %v1455 = vrot.slane %v1453, 5
      %v1456 = vsel %vm455, %v1451, %v1455
      %v1458 = vshrl.u32 %v1393, 16
      %v1460 = vrot.slane %v1458, 4
      %v1461 = vshll.u32 %v1393, 16
      %v1463 = vrot.slane %v1461, 5
      %v1464 = vor.u32 %v1460, %v1463
      %v1465 = vrot.slane %v1464, 4
      %v1467 = vshll.u32 %v1394, 16
      %v1469 = vrot.slane %v1467, 5
      %v1470 = vsel %vm455, %v1465, %v1469
      %v1472 = vshrl.u32 %v1395, 16
      %v1474 = vrot.slane %v1472, 4
      %v1475 = vshll.u32 %v1395, 16
      %v1477 = vrot.slane %v1475, 5
      %v1478 = vor.u32 %v1474, %v1477
      %v1479 = vrot.slane %v1478, 4
      %v1481 = vshll.u32 %v1396, 16
      %v1483 = vrot.slane %v1481, 5
      %v1484 = vsel %vm455, %v1479, %v1483
      %v1486 = vshrl.u32 %v1397, 16
      %v1488 = vrot.slane %v1486, 4
      %v1489 = vshll.u32 %v1397, 16
      %v1491 = vrot.slane %v1489, 5
      %v1492 = vor.u32 %v1488, %v1491
      %v1493 = vrot.slane %v1492, 4
      %v1495 = vshll.u32 %v1398, 16
      %v1497 = vrot.slane %v1495, 5
      %v1498 = vsel %vm455, %v1493, %v1497
      %v1500 = vshrl.u32 %v1399, 16
      %v1502 = vrot.slane %v1500, 4
      %v1503 = vshll.u32 %v1399, 16
      %v1505 = vrot.slane %v1503, 5
      %v1506 = vor.u32 %v1502, %v1505
      %v1507 = vrot.slane %v1506, 4
      %v1509 = vshll.u32 %v1400, 16
      %v1511 = vrot.slane %v1509, 5
      %v1512 = vsel %vm455, %v1507, %v1511
      %s1513 = scalar_lea.vmem %s1, 16
      %v1514 = vld [vmem:[%s1513] sm:$0x3]
      %v1515 = vunpack.c.l.b16 %v1414
      %v1516 = vunpack.c.l.b16 %v1428
      %v1517 = vunpack.c.l.b16 %v1442
      %v1518 = vunpack.c.l.b16 %v1456
      %v1519 = vunpack.c.l.b16 %v1470
      %v1520 = vunpack.c.l.b16 %v1484
      %v1521 = vunpack.c.l.b16 %v1498
      %v1522 = vunpack.c.l.b16 %v1512
      %v1523 = vpack.c.b16 %v1516, %v1515
      %v1524 = vpack.c.b16 %v1518, %v1517
      %v1525 = vpack.c.b16 %v1520, %v1519
      %v1526 = vpack.c.b16 %v1522, %v1521
      %v1528 = vsel %vm255, %v1523, 0
      %v1531 = vsel %vm255, %v1524, 0
      %v1534 = vsel %vm255, %v1525, 0
      %v1537 = vsel %vm255, %v1526, 0
      %v1540 = vsel %vm268, %v1514, 0
      %1542 = vmatprep.subr.bf16.mxu0 0
      %1543 = vmatpush1.bf16.msra.mxu0 %v1540
      %1544 = vmatprep.subr.bf16.mxu0 0
      %1545 = vmatpush1.bf16.msra.mxu0 0
      %1546 = vmatprep.subr.bf16.mxu0 0
      %1547 = vmatpush1.bf16.msra.mxu0 0
      %1548 = vmatprep.subr.bf16.mxu0 0
      %1549 = vmatpush1.bf16.msra.mxu0 0
      %1550 = vmatprep.subr.bf16.mxu0 0
      %1551 = vmatpush1.bf16.msra.mxu0 0
      %1552 = vmatprep.subr.bf16.mxu0 0
      %1553 = vmatpush1.bf16.msra.mxu0 0
      %1554 = vmatprep.subr.bf16.mxu0 0
      %1555 = vmatpush1.bf16.msra.mxu0 0
      %1556 = vmatprep.subr.bf16.mxu0 0
      %1557 = vmatpush1.bf16.msra.mxu0 0
      %1558 = vmatprep.subr.bf16.mxu0 0
      %1559 = vmatpush1.bf16.msra.mxu0 0
      %1560 = vmatprep.subr.bf16.mxu0 0
      %1561 = vmatpush1.bf16.msra.mxu0 0
      %1562 = vmatprep.subr.bf16.mxu0 0
      %1563 = vmatpush1.bf16.msra.mxu0 0
      %1564 = vmatprep.subr.bf16.mxu0 0
      %1565 = vmatpush1.bf16.msra.mxu0 0
      %1566 = vmatprep.subr.bf16.mxu0 0
      %1567 = vmatpush1.bf16.msra.mxu0 0
      %1568 = vmatprep.subr.bf16.mxu0 0
      %1569 = vmatpush1.bf16.msra.mxu0 0
      %1570 = vmatprep.subr.bf16.mxu0 0
      %1571 = vmatpush1.bf16.msra.mxu0 0
      %1572 = vmatprep.subr.bf16.mxu0 0
      %1573 = vmatpush1.bf16.msra.mxu0 0
      %1574 = vmatprep.mubr.bf16.mxu0 0
      %1575 = vmatmul.mubr.bf16.gmra.mrb[0].mxu0 %v1528
      %v1576 = vpop.f32.mrb[0].mxu0
      %v1577 = vadd.f32 0.0, %v1576
      %v1578 = vpop.f32.mrb[0].mxu0
      %v1579 = vpop.f32.mrb[0].mxu0
      %v1580 = vadd.f32 0.0, %v1579
      %v1581 = vpop.f32.mrb[0].mxu0
      %1582 = vmatprep.mubr.bf16.mxu0 0
      %1583 = vmatmul.mubr.bf16.gmra.mrb[0].mxu0 %v1531
      %v1584 = vpop.f32.mrb[0].mxu0
      %v1585 = vadd.f32 0.0, %v1584
      %v1586 = vpop.f32.mrb[0].mxu0
      %v1587 = vpop.f32.mrb[0].mxu0
      %v1588 = vadd.f32 0.0, %v1587
      %v1589 = vpop.f32.mrb[0].mxu0
      %1590 = vmatprep.mubr.bf16.mxu0 0
      %1591 = vmatmul.mubr.bf16.gmra.mrb[0].mxu0 %v1534
      %v1592 = vpop.f32.mrb[0].mxu0
      %v1593 = vadd.f32 0.0, %v1592
      %v1594 = vpop.f32.mrb[0].mxu0
      %v1595 = vpop.f32.mrb[0].mxu0
      %v1596 = vadd.f32 0.0, %v1595
      %v1597 = vpop.f32.mrb[0].mxu0
      %1598 = vmatprep.mubr.bf16.mxu0 0
      %1599 = vmatmul.mubr.bf16.gmra.mrb[0].mxu0 %v1537
      %v1600 = vpop.f32.mrb[0].mxu0
      %v1601 = vadd.f32 0.0, %v1600
      %v1602 = vpop.f32.mrb[0].mxu0
      %v1603 = vpop.f32.mrb[0].mxu0
      %v1604 = vadd.f32 0.0, %v1603
      %v1605 = vpop.f32.mrb[0].mxu0
      %1606 = vdwg.mxu0
      %v1607 = vadd.f32 %v1377, %v1577
      %v1608 = vadd.f32 %v1378, %v1580
      %v1609 = vadd.f32 %v1379, %v1585
      %v1610 = vadd.f32 %v1380, %v1588
      %v1611 = vadd.f32 %v1381, %v1593
      %v1612 = vadd.f32 %v1382, %v1596
      %v1613 = vadd.f32 %v1383, %v1601
      %v1614 = vadd.f32 %v1384, %v1604
      %v1615 = vpack.c.bf16 %v1608, %v1607
      %v1616 = vpack.c.bf16 %v1610, %v1609
      %v1617 = vpack.c.bf16 %v1612, %v1611
      %v1618 = vpack.c.bf16 %v1614, %v1613
      %v1623 = vunpack.c.l.b16 %v1615
      %v1624 = vunpack.c.h.b16 %v1615
      %v1625 = vunpack.c.l.b16 %v1616
      %v1626 = vunpack.c.h.b16 %v1616
      %v1627 = vunpack.c.l.b16 %v1617
      %v1628 = vunpack.c.h.b16 %v1617
      %v1629 = vunpack.c.l.b16 %v1618
      %v1630 = vunpack.c.h.b16 %v1618
      %v1631 = vpack.c.b16 %v1623, %v1623
      %v1632 = vpack.c.b16 %v1624, %v1624
      %v1633 = vpack.c.b16 %v1625, %v1625
      %v1634 = vpack.c.b16 %v1626, %v1626
      %v1635 = vpack.c.b16 %v1627, %v1627
      %v1636 = vpack.c.b16 %v1628, %v1628
      %v1637 = vpack.c.b16 %v1629, %v1629
      %v1638 = vpack.c.b16 %v1630, %v1630
      %vm1647 = vcmask 60416
      %1648 = vst.msk [vmem:[%s198] sm:$0xf] %vm1647, %v1631
      %1649 = vst.msk [vmem:[%s198 + $0x4] sm:$0xf] %vm1647, %v1632
      %1650 = vst.msk [vmem:[%s198 + $0x8] sm:$0xf] %vm1647, %v1633
      %1651 = vst.msk [vmem:[%s198 + $0xc] sm:$0xf] %vm1647, %v1634
      %1652 = vst.msk [vmem:[%s198 + $0x10] sm:$0xf] %vm1647, %v1635
      %1653 = vst.msk [vmem:[%s198 + $0x14] sm:$0xf] %vm1647, %v1636
      %1654 = vst.msk [vmem:[%s198 + $0x18] sm:$0xf] %vm1647, %v1637
      %1655 = vst.msk [vmem:[%s198 + $0x1c] sm:$0xf] %vm1647, %v1638
      %vm1656 = vcmask 64512
      %v1657 = vsel %vm1656, %v1607, 0.0
      %v1658 = vsel %vm1656, %v1608, 0.0
      %v1659 = vadd.f32 %v1657, %v1658
      %v1660 = vsel %vm1656, %v1609, 0.0
      %v1661 = vadd.f32 %v1659, %v1660
      %v1662 = vsel %vm1656, %v1610, 0.0
      %v1663 = vadd.f32 %v1661, %v1662
      %v1664 = vsel %vm1656, %v1611, 0.0
      %v1665 = vadd.f32 %v1663, %v1664
      %v1666 = vsel %vm1656, %v1612, 0.0
      %v1667 = vadd.f32 %v1665, %v1666
      %v1668 = vsel %vm1656, %v1613, 0.0
      %v1669 = vadd.f32 %v1667, %v1668
      %v1670 = vsel %vm1656, %v1614, 0.0
      %v1671 = vadd.f32 %v1669, %v1670
      %v1672 = vrot.slane %v1671, 4
      %v1673 = vadd.f32 %v1671, %v1672
      %v1674 = vrot.slane %v1673, 2
      %v1675 = vadd.f32 %v1673, %v1674
      %v1676 = vrot.slane %v1675, 1
      %v1677 = vadd.f32 %v1675, %v1676
      %v1678 = vmul.f32 %v1607, %v1607
      %v1679 = vmul.f32 %v1608, %v1608
      %v1680 = vmul.f32 %v1609, %v1609
      %v1681 = vmul.f32 %v1610, %v1610
      %v1682 = vmul.f32 %v1611, %v1611
      %v1683 = vmul.f32 %v1612, %v1612
      %v1684 = vmul.f32 %v1613, %v1613
      %v1685 = vmul.f32 %v1614, %v1614
      %v1686 = vsel %vm1656, %v1678, 0.0
      %v1687 = vsel %vm1656, %v1679, 0.0
      %v1688 = vadd.f32 %v1686, %v1687
      %v1689 = vsel %vm1656, %v1680, 0.0
      %v1690 = vadd.f32 %v1688, %v1689
      %v1691 = vsel %vm1656, %v1681, 0.0
      %v1692 = vadd.f32 %v1690, %v1691
      %v1693 = vsel %vm1656, %v1682, 0.0
      %v1694 = vadd.f32 %v1692, %v1693
      %v1695 = vsel %vm1656, %v1683, 0.0
      %v1696 = vadd.f32 %v1694, %v1695
      %v1697 = vsel %vm1656, %v1684, 0.0
      %v1698 = vadd.f32 %v1696, %v1697
      %v1699 = vsel %vm1656, %v1685, 0.0
      %v1700 = vadd.f32 %v1698, %v1699
      %v1701 = vrot.slane %v1700, 4
      %v1702 = vadd.f32 %v1700, %v1701
      %v1703 = vrot.slane %v1702, 2
      %v1704 = vadd.f32 %v1702, %v1703
      %v1705 = vrot.slane %v1704, 1
      %v1706 = vadd.f32 %v1704, %v1705
      %vm1707 = vcmask 1040384
      %v1708 = vsel %vm1707, %v1677, %v1706
      %vm1709 = vcmask 58368
      %1710 = vst.msk [vmem:[%s207] sm:$0x3] %vm1709, %v1708
      %s1711 = sadd.s32 %s19, %s20
      %s1712 = smul.u32 8, %s1711
      %p1713 = scmp.lt.s32.totalorder %s1712, 15
      %s1714 = scalar_select %p1713, %s1712, 15
      %s1715 = smul.addr %s1714, 4
      %s1716 = scalar_lea.vmem %s2, %s1715
      %p1717 = scmp.lt.s32.totalorder %s19, 1
      %s1718 = scalar_select %p1717, %s19, 1
      %p1719 = scmp.lt.s32.totalorder %s20, 0
      %s1720 = scalar_select %p1719, %s20, 0
      %s1721 = sadd.s32 %s1720, %s1718
      %s1722 = smul.addr %s1721, 2
      %s1723 = scalar_lea.vmem %s3, %s1722
      // Predicated region
      $region29: #{downsample_block.4} parent=27 // pred_check
        %p1724 = pneg %p94
      $region30: #{downsample_block.4} parent=27 // pred_check_branch
        %1726 = sbr.rel (%p1724) target = $region32
      $region31: #{downsample_block.4} parent=27 // pred_region
        %s1727 = sadd.s32 %s19, %s20
        %s1728 = smul.u32 8, %s1727
      $region32: #{downsample_block.4} parent=27 // pred_fallthru
        _
      // Predicated region
      $region33: #{downsample_block.4} parent=27 // pred_check
        %p1729 = pneg %p122
      $region34: #{downsample_block.4} parent=27 // pred_check_branch
        %1731 = sbr.rel (%p1729) target = $region36
      $region35: #{downsample_block.4} parent=27 // pred_region
        _
      $region36: #{downsample_block.4} parent=27 // pred_fallthru
        _
    $region28: #{downsample_block.4} parent=5 // pred_fallthru
      _
    %p1732 = scmp.le.s32.totalorder 2, %s10
    // Predicated region
    $region37: #{downsample_block.4} parent=5 // pred_check
      %p1733 = pneg %p1732
    $region38: #{downsample_block.4} parent=5 // pred_check_branch
      %1735 = sbr.rel (%p1733) target = $region40
    $region39: #{downsample_block.4} parent=5 // pred_region
      %s1736 = ssub.s32 %s10, 2
      // Predicated region
      $region41: #{downsample_block.4} parent=39 // pred_check
        %p1737 = pneg %p100
      $region42: #{downsample_block.4} parent=39 // pred_check_branch
        %1739 = sbr.rel (%p1737) target = $region44
      $region43: #{downsample_block.4} parent=39 // pred_region
        %s1740 = sadd.s32 %s21, %s22
        %s1741 = smul.u32 8, %s1740
        %p1742 = scmp.lt.s32.totalorder %s1741, 15
        %s1743 = scalar_select %p1742, %s1741, 15
        %s1744 = smul.addr %s1743, 4
        %s1745 = scalar_lea.vmem %s2, %s1744
      $region44: #{downsample_block.4} parent=39 // pred_fallthru
        _
      // Predicated region
      $region45: #{downsample_block.4} parent=39 // pred_check
        %p1746 = pneg %p128
      $region46: #{downsample_block.4} parent=39 // pred_check_branch
        %1748 = sbr.rel (%p1746) target = $region48
      $region47: #{downsample_block.4} parent=39 // pred_region
        %p1749 = scmp.lt.s32.totalorder %s21, 1
        %s1750 = scalar_select %p1749, %s21, 1
        %p1751 = scmp.lt.s32.totalorder %s22, 0
        %s1752 = scalar_select %p1751, %s22, 0
        %s1753 = sadd.s32 %s1752, %s1750
        %s1754 = smul.addr %s1753, 2
        %s1755 = scalar_lea.vmem %s3, %s1754
      $region48: #{downsample_block.4} parent=39 // pred_fallthru
        _
    $region40: #{downsample_block.4} parent=5 // pred_fallthru
      _
  $region6: #{downsample_block.4} parent=0 // loop_footer
    %s14 = sadd.s32 1, %s10
  $region7: #{downsample_block.4} parent=0 // loop_footer_branch
    %9 = sbr.rel target = $region3
  $region8: #{downsample_block.4} parent=0 // loop_exit
    _

// kernel: downsample_block.6
$region0: #{downsample_block.6}
  #allocation0 [shape = 'u32[]', space=smem, size = 0x4, offset = 0x4, fixed_abs, tag = 'smem constant byte address 0x4 - core index']
  #allocation1 [shape = 'u32[144,128]{1,0:T(1,128)}', space=vmem, size = 0x12000, scoped, tag = 'internal scratch']
  %s0 = inlined_call_operand.vmem [shape: bf16[2,1,10,10,8], index: 0, kind: input, shape index: {}]
  %s1 = inlined_call_operand.vmem [shape: bf16[9,8,8], index: 1, kind: input, shape index: {}]
  %s2 = inlined_call_operand.vmem [shape: bf16[128,8], index: 2, kind: output, shape index: {0}]
  %s3 = inlined_call_operand.vmem [shape: f32[2,1,2,8], index: 3, kind: output, shape index: {1}]
  %4 = xla_tuple %s2, %s3
  %s5 = sld [smem:[#allocation0]]
  $region49: #{downsample_block.6} parent=0
    _
  %s7 = ssub.s32 1, %s5
  %s8 = scalar_select 0, %s7, %s5
  loop: start=0, step=1, limit=4
  $region2: #{downsample_block.6} parent=0 // loop_pre_header
    _
  $region3: #{downsample_block.6} parent=0 // loop_header
    %s10 = sphi 0, %s14
    %p11 = scmp.ge.s32.totalorder %s10, 4
    %s17 = sphi 0, %s29
    %s18 = sphi 0, %s25
    %s19 = sphi 0, %s17
    %s20 = sphi 0, %s18
    %s21 = sphi 0, %s19
    %s22 = sphi 0, %s20
    %s32 = sphi 0, %s34
    %s35 = sphi 0, %s32
    %s36 = sphi 0, %s35
    %s52 = sphi 0, %s36
    %s56 = sphi 0, %s56
    %s58 = sphi 0, %s56
    %s59 = sphi 0, %s58
    %s73 = sphi 0, %s59
    %s81 = sphi 0, %s83
    %s84 = sphi 0, %s81
    %s85 = sphi 0, %s84
    %s101 = sphi 0, %s85
    %s109 = sphi 0, %s111
    %s112 = sphi 0, %s109
    %s113 = sphi 0, %s112
    %s129 = sphi 0, %s113
  $region4: #{downsample_block.6} parent=0 // loop_header_branch
    %13 = sbr.rel (%p11) target = $region8
  $region5: #{downsample_block.6} parent=0 // loop_body
    %s15 = ssub.s32 %s10, 1
    %s16 = ssub.s32 %s10, 2
    %s23 = sadd.s32 1, %s18
    %p24 = scmp.ge.s32.totalorder %s23, 1
    %s25 = scalar_select %p24, 0, %s23
    %s26 = sadd.s32 1, %s17
    %s27 = scalar_select %p24, %s26, %s17
    %p28 = scmp.ge.s32.totalorder %s27, 2
    %s29 = scalar_select %p28, 0, %s27
    %s30 = ssub.s32 %s17, %s29
    %p31 = scmp.eq.s32.totalorder %s30, 0
    %s33 = sadd.s32 %s32, 1
    %s34 = scalar_select %p31, %s32, %s33
    %p37 = pneg %p31
    %p38 = scmp.eq.s32.totalorder %s10, 1
    %p39 = por %p37, %p38
    %p40 = scmp.ne.s32.totalorder %s32, %s35
    %p41 = scmp.eq.s32.totalorder %s10, 0
    %p42 = por %p40, %p41
    %p43 = scmp.ne.s32.totalorder %s32, %s35
    %p44 = scmp.eq.s32.totalorder %s15, 1
    %p45 = por %p43, %p44
    %p46 = scmp.ne.s32.totalorder %s35, %s36
    %p47 = scmp.eq.s32.totalorder %s15, 0
    %p48 = por %p46, %p47
    %p49 = scmp.ne.s32.totalorder %s35, %s36
    %p50 = scmp.eq.s32.totalorder %s16, 1
    %p51 = por %p49, %p50
    %p53 = scmp.ne.s32.totalorder %s36, %s52
    %p54 = scmp.eq.s32.totalorder %s16, 0
    %p55 = por %p53, %p54
    %s57 = sadd.s32 %s56, 1
    %p60 = scmp.eq.s32.totalorder %s10, 1
    %p61 = scmp.ne.s32.totalorder %s56, %s58
    %p62 = scmp.eq.s32.totalorder %s10, 0
    %p63 = por %p61, %p62
    %p64 = scmp.ne.s32.totalorder %s56, %s58
    %p65 = scmp.eq.s32.totalorder %s15, 1
    %p66 = por %p64, %p65
    %p67 = scmp.ne.s32.totalorder %s58, %s59
    %p68 = scmp.eq.s32.totalorder %s15, 0
    %p69 = por %p67, %p68
    %p70 = scmp.ne.s32.totalorder %s58, %s59
    %p71 = scmp.eq.s32.totalorder %s16, 1
    %p72 = por %p70, %p71
    %p74 = scmp.ne.s32.totalorder %s59, %s73
    %p75 = scmp.eq.s32.totalorder %s16, 0
    %p76 = por %p74, %p75
    %s77 = sadd.s32 %s17, %s18
    %s78 = sadd.s32 %s29, %s25
    %s79 = ssub.s32 %s77, %s78
    %p80 = scmp.eq.s32.totalorder %s79, 0
    %s82 = sadd.s32 %s81, 1
    %s83 = scalar_select %p80, %s81, %s82
    %p86 = pneg %p80
    %p87 = scmp.eq.s32.totalorder %s10, 1
    %p88 = por %p86, %p87
    %p89 = scmp.ne.s32.totalorder %s81, %s84
    %p90 = scmp.eq.s32.totalorder %s10, 0
    %p91 = por %p89, %p90
    %p92 = scmp.ne.s32.totalorder %s81, %s84
    %p93 = scmp.eq.s32.totalorder %s15, 1
    %p94 = por %p92, %p93
    %p95 = scmp.ne.s32.totalorder %s84, %s85
    %p96 = scmp.eq.s32.totalorder %s15, 0
    %p97 = por %p95, %p96
    %p98 = scmp.ne.s32.totalorder %s84, %s85
    %p99 = scmp.eq.s32.totalorder %s16, 1
    %p100 = por %p98, %p99
    %p102 = scmp.ne.s32.totalorder %s85, %s101
    %p103 = scmp.eq.s32.totalorder %s16, 0
    %p104 = por %p102, %p103
    %s105 = ssub.s32 %s17, %s29
    %s106 = ssub.s32 %s18, %s25
    %s107 = sor.u32 %s105, %s106
    %p108 = scmp.eq.s32.totalorder %s107, 0
    %s110 = sadd.s32 %s109, 1
    %s111 = scalar_select %p108, %s109, %s110
    %p114 = pneg %p108
    %p115 = scmp.eq.s32.totalorder %s10, 1
    %p116 = por %p114, %p115
    %p117 = scmp.ne.s32.totalorder %s109, %s112
    %p118 = scmp.eq.s32.totalorder %s10, 0
    %p119 = por %p117, %p118
    %p120 = scmp.ne.s32.totalorder %s109, %s112
    %p121 = scmp.eq.s32.totalorder %s15, 1
    %p122 = por %p120, %p121
    %p123 = scmp.ne.s32.totalorder %s112, %s113
    %p124 = scmp.eq.s32.totalorder %s15, 0
    %p125 = por %p123, %p124
    %p126 = scmp.ne.s32.totalorder %s112, %s113
    %p127 = scmp.eq.s32.totalorder %s16, 1
    %p128 = por %p126, %p127
    %p130 = scmp.ne.s32.totalorder %s113, %s129
    %p131 = scmp.eq.s32.totalorder %s16, 0
    %p132 = por %p130, %p131
    %p133 = scmp.le.s32.totalorder 1, %s10
    %p134 = scmp.lt.s32.totalorder %s10, 3
    %p135 = pnand %p133, %p134
    %p136 = pneg %p135
    // Predicated region
    $region9: #{downsample_block.6} parent=5 // pred_check
      _
    $region10: #{downsample_block.6} parent=5 // pred_check_branch
      %138 = sbr.rel (%p135) target = $region12
    $region11: #{downsample_block.6} parent=5 // pred_region
      %s139 = ssub.s32 %s10, 1
      // Predicated region
      $region13: #{downsample_block.6} parent=11 // pred_check
        %p140 = pneg %p69
      $region14: #{downsample_block.6} parent=11 // pred_check_branch
        %142 = sbr.rel (%p140) target = $region16
      $region15: #{downsample_block.6} parent=11 // pred_region
        _
      $region16: #{downsample_block.6} parent=11 // pred_fallthru
        _
    $region12: #{downsample_block.6} parent=5 // pred_fallthru
      _
    %p143 = scmp.lt.s32.totalorder %s10, 2
    // Predicated region
    $region17: #{downsample_block.6} parent=5 // pred_check
      %p144 = pneg %p143
    $region18: #{downsample_block.6} parent=5 // pred_check_branch
      %146 = sbr.rel (%p144) target = $region20
    $region19: #{downsample_block.6} parent=5 // pred_region
      // Predicated region
      $region21: #{downsample_block.6} parent=19 // pred_check
        %p147 = pneg %p42
      $region22: #{downsample_block.6} parent=19 // pred_check_branch
        %149 = sbr.rel (%p147) target = $region24
      $region23: #{downsample_block.6} parent=19 // pred_region
        %p150 = scmp.lt.s32.totalorder %s17, 1
        %s151 = scalar_select %p150, %s17, 1
        %s152 = smul.addr %s151, 20
        %s153 = smul.addr %s152, 4
        %s154 = scalar_lea.vmem %s0, %s153
      $region24: #{downsample_block.6} parent=19 // pred_fallthru
        _
    $region20: #{downsample_block.6} parent=5 // pred_fallthru
      _
    %p155 = scmp.le.s32.totalorder 1, %s10
    %p156 = scmp.lt.s32.totalorder %s10, 3
    %p157 = pnand %p155, %p156
    %p158 = pneg %p157
    // Predicated region
    $region25: #{downsample_block.6} parent=5 // pred_check
      _
    $region26: #{downsample_block.6} parent=5 // pred_check_branch
      %160 = sbr.rel (%p157) target = $region28
    $region27: #{downsample_block.6} parent=5 // pred_region
      %s161 = ssub.s32 %s10, 1
      %p162 = scmp.lt.s32.totalorder %s19, 1
      %s163 = scalar_select %p162, %s19, 1
      %s164 = smul.addr %s163, 20
      %s165 = smul.addr %s164, 4
      %s166 = scalar_lea.vmem %s0, %s165
      %p167 = pneg %p48
      %p168 = pneg %p45
      %p169 = pneg %p69
      %p170 = pneg %p66
      %p171 = pneg %p97
      %p172 = pneg %p94
      %s173 = sadd.s32 %s19, %s20
      %s174 = smul.u32 8, %s173
      %p175 = scmp.lt.s32.totalorder %s174, 15
      %s176 = scalar_select %p175, %s174, 15
      %s177 = smul.addr %s176, 4
      %s178 = scalar_lea.vmem %s2, %s177
      %p179 = pneg %p125
      %p180 = pneg %p122
      %p181 = scmp.lt.s32.totalorder %s19, 1
      %s182 = scalar_select %p181, %s19, 1
      %p183 = scmp.lt.s32.totalorder %s20, 0
      %s184 = scalar_select %p183, %s20, 0
      %s185 = sadd.s32 %s184, %s182
      %s186 = smul.addr %s185, 2
      %s187 = scalar_lea.vmem %s3, %s186
      %p188 = scmp.lt.s32.totalorder %s19, 1
      %s189 = scalar_select %p188, %s19, 1
      %s190 = smul.addr %s189, 20
      %s191 = smul.addr %s190, 4
      %s192 = scalar_lea.vmem %s0, %s191
      %s193 = sadd.s32 %s19, %s20
      %s194 = smul.u32 8, %s193
      %p195 = scmp.lt.s32.totalorder %s194, 15
      %s196 = scalar_select %p195, %s194, 15
      %s197 = smul.addr %s196, 4
      %s198 = scalar_lea.vmem %s2, %s197
      %s199 = sadd.s32 %s19, %s20
      %s200 = smul.u32 8, %s199
      %p201 = scmp.lt.s32.totalorder %s19, 1
      %s202 = scalar_select %p201, %s19, 1
      %p203 = scmp.lt.s32.totalorder %s20, 0
      %s204 = scalar_select %p203, %s20, 0
      %s205 = sadd.s32 %s204, %s202
      %s206 = smul.addr %s205, 2
      %s207 = scalar_lea.vmem %s3, %s206
      %s209 = smul.u32 %s20, 8
      %s210 = smul.u32 %s209, 2
      %s211 = smul.addr %s210, 4
      %s212 = scalar_lea.vmem %s192, %s211
      %v213 = vld [vmem:[%s212] sm:$0xf]
      %v214 = vld [vmem:[%s212 + $0x8] sm:$0xf]
      %v215 = vld [vmem:[%s212 + $0x10] sm:$0xf]
      %v216 = vld [vmem:[%s212 + $0x18] sm:$0xf]
      %v217 = vld [vmem:[%s212 + $0x20] sm:$0xf]
      %v218 = vld [vmem:[%s212 + $0x28] sm:$0xf]
      %v219 = vld [vmem:[%s212 + $0x30] sm:$0xf]
      %v220 = vld [vmem:[%s212 + $0x38] sm:$0xf]
      %v221 = vld [vmem:[%s1] sm:$0xf]
      %v222 = vld [vmem:[%s212 + $0x4] sm:$0x1]
      %v223 = vld [vmem:[%s212 + $0xc] sm:$0x1]
      %v224 = vld [vmem:[%s212 + $0x14] sm:$0x1]
      %v225 = vld [vmem:[%s212 + $0x1c] sm:$0x1]
      %v226 = vld [vmem:[%s212 + $0x24] sm:$0x1]
      %v227 = vld [vmem:[%s212 + $0x2c] sm:$0x1]
      %v228 = vld [vmem:[%s212 + $0x34] sm:$0x1]
      %v229 = vld [vmem:[%s212 + $0x3c] sm:$0x1]
      %vm230 = vsmask.f32 3328
      %vm231 = vsmask.f32 7440
      %vm232 = vmor %vm230, %vm231
      %v234 = vshrl.u32 %v213, 16
      %v236 = vrot.slane %v234, 4
      %v237 = vshll.u32 %v213, 16
      %v239 = vrot.slane %v237, 5
      %v240 = vor.u32 %v236, %v239
      %v241 = vrot.slane %v240, 4
      %v243 = vshll.u32 %v222, 16
      %v245 = vrot.slane %v243, 5
      %v246 = vsel %vm232, %v241, %v245
      %v248 = vshrl.u32 %v214, 16
      %v250 = vrot.slane %v248, 4
      %v251 = vshll.u32 %v214, 16
      %v253 = vrot.slane %v251, 5
      %v254 = vor.u32 %v250, %v253
      %v255 = vrot.slane %v254, 4
      %v257 = vshll.u32 %v223, 16
      %v259 = vrot.slane %v257, 5
      %v260 = vsel %vm232, %v255, %v259
      %v262 = vshrl.u32 %v215, 16
      %v264 = vrot.slane %v262, 4
      %v265 = vshll.u32 %v215, 16
      %v267 = vrot.slane %v265, 5
      %v268 = vor.u32 %v264, %v267
      %v269 = vrot.slane %v268, 4
      %v271 = vshll.u32 %v224, 16
      %v273 = vrot.slane %v271, 5
      %v274 = vsel %vm232, %v269, %v273
      %v276 = vshrl.u32 %v216, 16
      %v278 = vrot.slane %v276, 4
      %v279 = vshll.u32 %v216, 16
      %v281 = vrot.slane %v279, 5
      %v282 = vor.u32 %v278, %v281
      %v283 = vrot.slane %v282, 4
      %v285 = vshll.u32 %v225, 16
      %v287 = vrot.slane %v285, 5
      %v288 = vsel %vm232, %v283, %v287
      %v290 = vshrl.u32 %v217, 16
      %v292 = vrot.slane %v290, 4
      %v293 = vshll.u32 %v217, 16
      %v295 = vrot.slane %v293, 5
      %v296 = vor.u32 %v292, %v295
      %v297 = vrot.slane %v296, 4
      %v299 = vshll.u32 %v226, 16
      %v301 = vrot.slane %v299, 5
      %v302 = vsel %vm232, %v297, %v301
      %v304 = vshrl.u32 %v218, 16
      %v306 = vrot.slane %v304, 4
      %v307 = vshll.u32 %v218, 16
      %v309 = vrot.slane %v307, 5
      %v310 = vor.u32 %v306, %v309
      %v311 = vrot.slane %v310, 4
      %v313 = vshll.u32 %v227, 16
      %v315 = vrot.slane %v313, 5
      %v316 = vsel %vm232, %v311, %v315
      %v318 = vshrl.u32 %v219, 16
      %v320 = vrot.slane %v318, 4
      %v321 = vshll.u32 %v219, 16
      %v323 = vrot.slane %v321, 5
      %v324 = vor.u32 %v320, %v323
      %v325 = vrot.slane %v324, 4
      %v327 = vshll.u32 %v228, 16
      %v329 = vrot.slane %v327, 5
      %v330 = vsel %vm232, %v325, %v329
      %v332 = vshrl.u32 %v220, 16
      %v334 = vrot.slane %v332, 4
      %v335 = vshll.u32 %v220, 16
      %v337 = vrot.slane %v335, 5
      %v338 = vor.u32 %v334, %v337
      %v339 = vrot.slane %v338, 4
      %v341 = vshll.u32 %v229, 16
      %v343 = vrot.slane %v341, 5
      %v344 = vsel %vm232, %v339, %v343
      %s345 = scalar_lea.vmem %s1, 4
      %v346 = vld [vmem:[%s345] sm:$0xf]
      %v347 = vunpack.c.l.b16 %v246
      %v348 = vunpack.c.l.b16 %v260
      %v349 = vunpack.c.l.b16 %v274
      %v350 = vunpack.c.l.b16 %v288
      %v351 = vunpack.c.l.b16 %v302
      %v352 = vunpack.c.l.b16 %v316
      %v353 = vunpack.c.l.b16 %v330
      %v354 = vunpack.c.l.b16 %v344
      %v355 = vpack.c.b16 %v348, %v347
      %v356 = vpack.c.b16 %v350, %v349
      %v357 = vpack.c.b16 %v352, %v351
      %v358 = vpack.c.b16 %v354, %v353
      %vm359 = vcmask 64512
      %v361 = vsel %vm359, %v355, 0
      %v364 = vsel %vm359, %v356, 0
      %v367 = vsel %vm359, %v357, 0
      %v370 = vsel %vm359, %v358, 0
      %vm372 = vcmask 1043456
      %v374 = vsel %vm372, %v346, 0
      %376 = vmatprep.subr.bf16.mxu0 0
      %377 = vmatpush1.bf16.msra.mxu0 %v374
      %378 = vmatprep.subr.bf16.mxu0 0
      %379 = vmatpush1.bf16.msra.mxu0 0
      %380 = vmatprep.subr.bf16.mxu0 0
      %381 = vmatpush1.bf16.msra.mxu0 0
      %382 = vmatprep.subr.bf16.mxu0 0
      %383 = vmatpush1.bf16.msra.mxu0 0
      %384 = vmatprep.subr.bf16.mxu0 0
      %385 = vmatpush1.bf16.msra.mxu0 0
      %386 = vmatprep.subr.bf16.mxu0 0
      %387 = vmatpush1.bf16.msra.mxu0 0
      %388 = vmatprep.subr.bf16.mxu0 0
      %389 = vmatpush1.bf16.msra.mxu0 0
      %390 = vmatprep.subr.bf16.mxu0 0
      %391 = vmatpush1.bf16.msra.mxu0 0
      %392 = vmatprep.subr.bf16.mxu0 0
      %393 = vmatpush1.bf16.msra.mxu0 0
      %394 = vmatprep.subr.bf16.mxu0 0
      %395 = vmatpush1.bf16.msra.mxu0 0
      %396 = vmatprep.subr.bf16.mxu0 0
      %397 = vmatpush1.bf16.msra.mxu0 0
      %398 = vmatprep.subr.bf16.mxu0 0
      %399 = vmatpush1.bf16.msra.mxu0 0
      %400 = vmatprep.subr.bf16.mxu0 0
      %401 = vmatpush1.bf16.msra.mxu0 0
      %402 = vmatprep.subr.bf16.mxu0 0
      %403 = vmatpush1.bf16.msra.mxu0 0
      %404 = vmatprep.subr.bf16.mxu0 0
      %405 = vmatpush1.bf16.msra.mxu0 0
      %406 = vmatprep.subr.bf16.mxu0 0
      %407 = vmatpush1.bf16.msra.mxu0 0
      %408 = vmatprep.mubr.bf16.mxu0 0
      %409 = vmatmul.mubr.bf16.gmra.mrb[0].mxu0 %v361
      %v410 = vpop.f32.mrb[0].mxu0
      %v411 = vadd.f32 0.0, %v410
      %v412 = vpop.f32.mrb[0].mxu0
      %v413 = vpop.f32.mrb[0].mxu0
      %v414 = vadd.f32 0.0, %v413
      %v415 = vpop.f32.mrb[0].mxu0
      %416 = vmatprep.mubr.bf16.mxu0 0
      %417 = vmatmul.mubr.bf16.gmra.mrb[0].mxu0 %v364
      %v418 = vpop.f32.mrb[0].mxu0
      %v419 = vadd.f32 0.0, %v418
      %v420 = vpop.f32.mrb[0].mxu0
      %v421 = vpop.f32.mrb[0].mxu0
      %v422 = vadd.f32 0.0, %v421
      %v423 = vpop.f32.mrb[0].mxu0
      %424 = vmatprep.mubr.bf16.mxu0 0
      %425 = vmatmul.mubr.bf16.gmra.mrb[0].mxu0 %v367
      %v426 = vpop.f32.mrb[0].mxu0
      %v427 = vadd.f32 0.0, %v426
      %v428 = vpop.f32.mrb[0].mxu0
      %v429 = vpop.f32.mrb[0].mxu0
      %v430 = vadd.f32 0.0, %v429
      %v431 = vpop.f32.mrb[0].mxu0
      %432 = vmatprep.mubr.bf16.mxu0 0
      %433 = vmatmul.mubr.bf16.gmra.mrb[0].mxu0 %v370
      %v434 = vpop.f32.mrb[0].mxu0
      %v435 = vadd.f32 0.0, %v434
      %v436 = vpop.f32.mrb[0].mxu0
      %v437 = vpop.f32.mrb[0].mxu0
      %v438 = vadd.f32 0.0, %v437
      %v439 = vpop.f32.mrb[0].mxu0
      %440 = vdwg.mxu0
      %v449 = vunpack.c.l.b16 %v213
      %v450 = vunpack.c.l.b16 %v214
      %v451 = vunpack.c.l.b16 %v215
      %v452 = vunpack.c.l.b16 %v216
      %v453 = vunpack.c.l.b16 %v217
      %v454 = vunpack.c.l.b16 %v218
      %v455 = vunpack.c.l.b16 %v219
      %v456 = vunpack.c.l.b16 %v220
      %v457 = vpack.c.b16 %v450, %v449
      %v458 = vpack.c.b16 %v452, %v451
      %v459 = vpack.c.b16 %v454, %v453
      %v460 = vpack.c.b16 %v456, %v455
      %v462 = vsel %vm359, %v457, 0
      %v465 = vsel %vm359, %v458, 0
      %v468 = vsel %vm359, %v459, 0
      %v471 = vsel %vm359, %v460, 0
      %v474 = vsel %vm372, %v221, 0
      %476 = vmatprep.subr.bf16.mxu0 0
      %477 = vmatpush1.bf16.msra.mxu0 %v474
      %478 = vmatprep.subr.bf16.mxu0 0
      %479 = vmatpush1.bf16.msra.mxu0 0
      %480 = vmatprep.subr.bf16.mxu0 0
      %481 = vmatpush1.bf16.msra.mxu0 0
      %482 = vmatprep.subr.bf16.mxu0 0
      %483 = vmatpush1.bf16.msra.mxu0 0
      %484 = vmatprep.subr.bf16.mxu0 0
      %485 = vmatpush1.bf16.msra.mxu0 0
      %486 = vmatprep.subr.bf16.mxu0 0
      %487 = vmatpush1.bf16.msra.mxu0 0
      %488 = vmatprep.subr.bf16.mxu0 0
      %489 = vmatpush1.bf16.msra.mxu0 0
      %490 = vmatprep.subr.bf16.mxu0 0
      %491 = vmatpush1.bf16.msra.mxu0 0
      %492 = vmatprep.subr.bf16.mxu0 0
      %493 = vmatpush1.bf16.msra.mxu0 0
      %494 = vmatprep.subr.bf16.mxu0 0
      %495 = vmatpush1.bf16.msra.mxu0 0
      %496 = vmatprep.subr.bf16.mxu0 0
      %497 = vmatpush1.bf16.msra.mxu0 0
      %498 = vmatprep.subr.bf16.mxu0 0
      %499 = vmatpush1.bf16.msra.mxu0 0
      %500 = vmatprep.subr.bf16.mxu0 0
      %501 = vmatpush1.bf16.msra.mxu0 0
      %502 = vmatprep.subr.bf16.mxu0 0
      %503 = vmatpush1.bf16.msra.mxu0 0
      %504 = vmatprep.subr.bf16.mxu0 0
      %505 = vmatpush1.bf16.msra.mxu0 0
      %506 = vmatprep.subr.bf16.mxu0 0
      %507 = vmatpush1.bf16.msra.mxu0 0
      %508 = vmatprep.mubr.bf16.mxu0 0
      %509 = vmatmul.mubr.bf16.gmra.mrb[0].mxu0 %v462
      %v510 = vpop.f32.mrb[0].mxu0
      %v511 = vadd.f32 %v411, %v510
      %v512 = vpop.f32.mrb[0].mxu0
      %v513 = vpop.f32.mrb[0].mxu0
      %v514 = vadd.f32 %v414, %v513
      %v515 = vpop.f32.mrb[0].mxu0
      %516 = vmatprep.mubr.bf16.mxu0 0
      %517 = vmatmul.mubr.bf16.gmra.mrb[0].mxu0 %v465
      %v518 = vpop.f32.mrb[0].mxu0
      %v519 = vadd.f32 %v419, %v518
      %v520 = vpop.f32.mrb[0].mxu0
      %v521 = vpop.f32.mrb[0].mxu0
      %v522 = vadd.f32 %v422, %v521
      %v523 = vpop.f32.mrb[0].mxu0
      %524 = vmatprep.mubr.bf16.mxu0 0
      %525 = vmatmul.mubr.bf16.gmra.mrb[0].mxu0 %v468
      %v526 = vpop.f32.mrb[0].mxu0
      %v527 = vadd.f32 %v427, %v526
      %v528 = vpop.f32.mrb[0].mxu0
      %v529 = vpop.f32.mrb[0].mxu0
      %v530 = vadd.f32 %v430, %v529
      %v531 = vpop.f32.mrb[0].mxu0
      %532 = vmatprep.mubr.bf16.mxu0 0
      %533 = vmatmul.mubr.bf16.gmra.mrb[0].mxu0 %v471
      %v534 = vpop.f32.mrb[0].mxu0
      %v535 = vadd.f32 %v435, %v534
      %v536 = vpop.f32.mrb[0].mxu0
      %v537 = vpop.f32.mrb[0].mxu0
      %v538 = vadd.f32 %v438, %v537
      %v539 = vpop.f32.mrb[0].mxu0
      %540 = vdwg.mxu0
      %v541 = vld [vmem:[%s212] sm:$0xe]
      %v542 = vld [vmem:[%s212 + $0x8] sm:$0xe]
      %v543 = vld [vmem:[%s212 + $0x10] sm:$0xe]
      %v544 = vld [vmem:[%s212 + $0x18] sm:$0xe]
      %v545 = vld [vmem:[%s212 + $0x20] sm:$0xe]
      %v546 = vld [vmem:[%s212 + $0x28] sm:$0xe]
      %v547 = vld [vmem:[%s212 + $0x30] sm:$0xe]
      %v548 = vld [vmem:[%s212 + $0x38] sm:$0xe]
      %vm565 = vcmask 1042432
      %vm566 = vcmask 1046532
      %vm567 = vmor %vm565, %vm566
      %v568 = vrot.slane %v541, 5
      %v569 = vrot.slane %v568, 4
      %v570 = vrot.slane %v222, 5
      %v571 = vsel %vm567, %v569, %v570
      %v572 = vrot.slane %v542, 5
      %v573 = vrot.slane %v572, 4
      %v574 = vrot.slane %v223, 5
      %v575 = vsel %vm567, %v573, %v574
      %v576 = vrot.slane %v543, 5
      %v577 = vrot.slane %v576, 4
      %v578 = vrot.slane %v224, 5
      %v579 = vsel %vm567, %v577, %v578
      %v580 = vrot.slane %v544, 5
      %v581 = vrot.slane %v580, 4
      %v582 = vrot.slane %v225, 5
      %v583 = vsel %vm567, %v581, %v582
      %v584 = vrot.slane %v545, 5
      %v585 = vrot.slane %v584, 4
      %v586 = vrot.slane %v226, 5
      %v587 = vsel %vm567, %v585, %v586
      %v588 = vrot.slane %v546, 5
      %v589 = vrot.slane %v588, 4
      %v590 = vrot.slane %v227, 5
      %v591 = vsel %vm567, %v589, %v590
      %v592 = vrot.slane %v547, 5
      %v593 = vrot.slane %v592, 4
      %v594 = vrot.slane %v228, 5
      %v595 = vsel %vm567, %v593, %v594
      %v596 = vrot.slane %v548, 5
      %v597 = vrot.slane %v596, 4
      %v598 = vrot.slane %v229, 5
      %v599 = vsel %vm567, %v597, %v598
      %s600 = scalar_lea.vmem %s1, 8
      %v601 = vld [vmem:[%s600] sm:$0xf]
      %v602 = vunpack.c.l.b16 %v571
      %v603 = vunpack.c.l.b16 %v575
      %v604 = vunpack.c.l.b16 %v579
      %v605 = vunpack.c.l.b16 %v583
      %v606 = vunpack.c.l.b16 %v587
      %v607 = vunpack.c.l.b16 %v591
      %v608 = vunpack.c.l.b16 %v595
      %v609 = vunpack.c.l.b16 %v599
      %v610 = vpack.c.b16 %v603, %v602
      %v611 = vpack.c.b16 %v605, %v604
      %v612 = vpack.c.b16 %v607, %v606
      %v613 = vpack.c.b16 %v609, %v608
      %v615 = vsel %vm359, %v610, 0
      %v618 = vsel %vm359, %v611, 0
      %v621 = vsel %vm359, %v612, 0
      %v624 = vsel %vm359, %v613, 0
      %v627 = vsel %vm372, %v601, 0
      %629 = vmatprep.subr.bf16.mxu0 0
      %630 = vmatpush1.bf16.msra.mxu0 %v627
      %631 = vmatprep.subr.bf16.mxu0 0
      %632 = vmatpush1.bf16.msra.mxu0 0
      %633 = vmatprep.subr.bf16.mxu0 0
      %634 = vmatpush1.bf16.msra.mxu0 0
      %635 = vmatprep.subr.bf16.mxu0 0
      %636 = vmatpush1.bf16.msra.mxu0 0
      %637 = vmatprep.subr.bf16.mxu0 0
      %638 = vmatpush1.bf16.msra.mxu0 0
      %639 = vmatprep.subr.bf16.mxu0 0
      %640 = vmatpush1.bf16.msra.mxu0 0
      %641 = vmatprep.subr.bf16.mxu0 0
      %642 = vmatpush1.bf16.msra.mxu0 0
      %643 = vmatprep.subr.bf16.mxu0 0
      %644 = vmatpush1.bf16.msra.mxu0 0
      %645 = vmatprep.subr.bf16.mxu0 0
      %646 = vmatpush1.bf16.msra.mxu0 0
      %647 = vmatprep.subr.bf16.mxu0 0
      %648 = vmatpush1.bf16.msra.mxu0 0
      %649 = vmatprep.subr.bf16.mxu0 0
      %650 = vmatpush1.bf16.msra.mxu0 0
      %651 = vmatprep.subr.bf16.mxu0 0
      %652 = vmatpush1.bf16.msra.mxu0 0
      %653 = vmatprep.subr.bf16.mxu0 0
      %654 = vmatpush1.bf16.msra.mxu0 0
      %655 = vmatprep.subr.bf16.mxu0 0
      %656 = vmatpush1.bf16.msra.mxu0 0
      %657 = vmatprep.subr.bf16.mxu0 0
      %658 = vmatpush1.bf16.msra.mxu0 0
      %659 = vmatprep.subr.bf16.mxu0 0
      %660 = vmatpush1.bf16.msra.mxu0 0
      %661 = vmatprep.mubr.bf16.mxu0 0
      %662 = vmatmul.mubr.bf16.gmra.mrb[0].mxu0 %v615
      %v663 = vpop.f32.mrb[0].mxu0
      %v664 = vadd.f32 0.0, %v663
      %v665 = vpop.f32.mrb[0].mxu0
      %v666 = vpop.f32.mrb[0].mxu0
      %v667 = vadd.f32 0.0, %v666
      %v668 = vpop.f32.mrb[0].mxu0
      %669 = vmatprep.mubr.bf16.mxu0 0
      %670 = vmatmul.mubr.bf16.gmra.mrb[0].mxu0 %v618
      %v671 = vpop.f32.mrb[0].mxu0
      %v672 = vadd.f32 0.0, %v671
      %v673 = vpop.f32.mrb[0].mxu0
      %v674 = vpop.f32.mrb[0].mxu0
      %v675 = vadd.f32 0.0, %v674
      %v676 = vpop.f32.mrb[0].mxu0
      %677 = vmatprep.mubr.bf16.mxu0 0
      %678 = vmatmul.mubr.bf16.gmra.mrb[0].mxu0 %v621
      %v679 = vpop.f32.mrb[0].mxu0
      %v680 = vadd.f32 0.0, %v679
      %v681 = vpop.f32.mrb[0].mxu0
      %v682 = vpop.f32.mrb[0].mxu0
      %v683 = vadd.f32 0.0, %v682
      %v684 = vpop.f32.mrb[0].mxu0
      %685 = vmatprep.mubr.bf16.mxu0 0
      %686 = vmatmul.mubr.bf16.gmra.mrb[0].mxu0 %v624
      %v687 = vpop.f32.mrb[0].mxu0
      %v688 = vadd.f32 0.0, %v687
      %v689 = vpop.f32.mrb[0].mxu0
      %v690 = vpop.f32.mrb[0].mxu0
      %v691 = vadd.f32 0.0, %v690
      %v692 = vpop.f32.mrb[0].mxu0
      %693 = vdwg.mxu0
      %v694 = vadd.f32 %v511, %v664
      %v695 = vadd.f32 %v514, %v667
      %v696 = vadd.f32 %v519, %v672
      %v697 = vadd.f32 %v522, %v675
      %v698 = vadd.f32 %v527, %v680
      %v699 = vadd.f32 %v530, %v683
      %v700 = vadd.f32 %v535, %v688
      %v701 = vadd.f32 %v538, %v691
      %s702 = sadd.s32 %s209, 1
      %s703 = smul.u32 %s702, 2
      %s704 = smul.addr %s703, 4
      %s705 = scalar_lea.vmem %s192, %s704
      %v706 = vld [vmem:[%s705] sm:$0xf]
      %v707 = vld [vmem:[%s705 + $0x8] sm:$0xf]
      %v708 = vld [vmem:[%s705 + $0x10] sm:$0xf]
      %v709 = vld [vmem:[%s705 + $0x18] sm:$0xf]
      %v710 = vld [vmem:[%s705 + $0x20] sm:$0xf]
      %v711 = vld [vmem:[%s705 + $0x28] sm:$0xf]
      %v712 = vld [vmem:[%s705 + $0x30] sm:$0xf]
      %v713 = vld [vmem:[%s705 + $0x38] sm:$0xf]
      %s714 = scalar_lea.vmem %s1, 12
      %v715 = vld [vmem:[%s714] sm:$0xf]
      %v724 = vunpack.c.l.b16 %v706
      %v725 = vunpack.c.l.b16 %v707
      %v726 = vunpack.c.l.b16 %v708
      %v727 = vunpack.c.l.b16 %v709
      %v728 = vunpack.c.l.b16 %v710
      %v729 = vunpack.c.l.b16 %v711
      %v730 = vunpack.c.l.b16 %v712
      %v731 = vunpack.c.l.b16 %v713
      %v732 = vpack.c.b16 %v725, %v724
      %v733 = vpack.c.b16 %v727, %v726
      %v734 = vpack.c.b16 %v729, %v728
      %v735 = vpack.c.b16 %v731, %v730
      %v737 = vsel %vm359, %v732, 0
      %v740 = vsel %vm359, %v733, 0
      %v743 = vsel %vm359, %v734, 0
      %v746 = vsel %vm359, %v735, 0
      %v749 = vsel %vm372, %v715, 0
      %751 = vmatprep.subr.bf16.mxu0 0
      %752 = vmatpush1.bf16.msra.mxu0 %v749
      %753 = vmatprep.subr.bf16.mxu0 0
      %754 = vmatpush1.bf16.msra.mxu0 0
      %755 = vmatprep.subr.bf16.mxu0 0
      %756 = vmatpush1.bf16.msra.mxu0 0
      %757 = vmatprep.subr.bf16.mxu0 0
      %758 = vmatpush1.bf16.msra.mxu0 0
      %759 = vmatprep.subr.bf16.mxu0 0
      %760 = vmatpush1.bf16.msra.mxu0 0
      %761 = vmatprep.subr.bf16.mxu0 0
      %762 = vmatpush1.bf16.msra.mxu0 0
      %763 = vmatprep.subr.bf16.mxu0 0
      %764 = vmatpush1.bf16.msra.mxu0 0
      %765 = vmatprep.subr.bf16.mxu0 0
      %766 = vmatpush1.bf16.msra.mxu0 0
      %767 = vmatprep.subr.bf16.mxu0 0
      %768 = vmatpush1.bf16.msra.mxu0 0
      %769 = vmatprep.subr.bf16.mxu0 0
      %770 = vmatpush1.bf16.msra.mxu0 0
      %771 = vmatprep.subr.bf16.mxu0 0
      %772 = vmatpush1.bf16.msra.mxu0 0
      %773 = vmatprep.subr.bf16.mxu0 0
      %774 = vmatpush1.bf16.msra.mxu0 0
      %775 = vmatprep.subr.bf16.mxu0 0
      %776 = vmatpush1.bf16.msra.mxu0 0
      %777 = vmatprep.subr.bf16.mxu0 0
      %778 = vmatpush1.bf16.msra.mxu0 0
      %779 = vmatprep.subr.bf16.mxu0 0
      %780 = vmatpush1.bf16.msra.mxu0 0
      %781 = vmatprep.subr.bf16.mxu0 0
      %782 = vmatpush1.bf16.msra.mxu0 0
      %783 = vmatprep.mubr.bf16.mxu0 0
      %784 = vmatmul.mubr.bf16.gmra.mrb[0].mxu0 %v737
      %v785 = vpop.f32.mrb[0].mxu0
      %v786 = vadd.f32 0.0, %v785
      %v787 = vpop.f32.mrb[0].mxu0
      %v788 = vpop.f32.mrb[0].mxu0
      %v789 = vadd.f32 0.0, %v788
      %v790 = vpop.f32.mrb[0].mxu0
      %791 = vmatprep.mubr.bf16.mxu0 0
      %792 = vmatmul.mubr.bf16.gmra.mrb[0].mxu0 %v740
      %v793 = vpop.f32.mrb[0].mxu0
      %v794 = vadd.f32 0.0, %v793
      %v795 = vpop.f32.mrb[0].mxu0
      %v796 = vpop.f32.mrb[0].mxu0
      %v797 = vadd.f32 0.0, %v796
      %v798 = vpop.f32.mrb[0].mxu0
      %799 = vmatprep.mubr.bf16.mxu0 0
      %800 = vmatmul.mubr.bf16.gmra.mrb[0].mxu0 %v743
      %v801 = vpop.f32.mrb[0].mxu0
      %v802 = vadd.f32 0.0, %v801
      %v803 = vpop.f32.mrb[0].mxu0
      %v804 = vpop.f32.mrb[0].mxu0
      %v805 = vadd.f32 0.0, %v804
      %v806 = vpop.f32.mrb[0].mxu0
      %807 = vmatprep.mubr.bf16.mxu0 0
      %808 = vmatmul.mubr.bf16.gmra.mrb[0].mxu0 %v746
      %v809 = vpop.f32.mrb[0].mxu0
      %v810 = vadd.f32 0.0, %v809
      %v811 = vpop.f32.mrb[0].mxu0
      %v812 = vpop.f32.mrb[0].mxu0
      %v813 = vadd.f32 0.0, %v812
      %v814 = vpop.f32.mrb[0].mxu0
      %815 = vdwg.mxu0
      %v816 = vadd.f32 %v694, %v786
      %v817 = vadd.f32 %v695, %v789
      %v818 = vadd.f32 %v696, %v794
      %v819 = vadd.f32 %v697, %v797
      %v820 = vadd.f32 %v698, %v802
      %v821 = vadd.f32 %v699, %v805
      %v822 = vadd.f32 %v700, %v810
      %v823 = vadd.f32 %v701, %v813
      %v824 = vld [vmem:[%s705] sm:$0xf]
      %v825 = vld [vmem:[%s705 + $0x4] sm:$0x1]
      %v826 = vld [vmem:[%s705 + $0x8] sm:$0xf]
      %v827 = vld [vmem:[%s705 + $0xc] sm:$0x1]
      %v828 = vld [vmem:[%s705 + $0x10] sm:$0xf]
      %v829 = vld [vmem:[%s705 + $0x14] sm:$0x1]
      %v830 = vld [vmem:[%s705 + $0x18] sm:$0xf]
      %v831 = vld [vmem:[%s705 + $0x1c] sm:$0x1]
      %v832 = vld [vmem:[%s705 + $0x20] sm:$0xf]
      %v833 = vld [vmem:[%s705 + $0x24] sm:$0x1]
      %v834 = vld [vmem:[%s705 + $0x28] sm:$0xf]
      %v835 = vld [vmem:[%s705 + $0x2c] sm:$0x1]
      %v836 = vld [vmem:[%s705 + $0x30] sm:$0xf]
      %v837 = vld [vmem:[%s705 + $0x34] sm:$0x1]
      %v838 = vld [vmem:[%s705 + $0x38] sm:$0xf]
      %v839 = vld [vmem:[%s705 + $0x3c] sm:$0x1]
      %v841 = vshrl.u32 %v824, 16
      %v843 = vrot.slane %v841, 4
      %v844 = vshll.u32 %v824, 16
      %v846 = vrot.slane %v844, 5
      %v847 = vor.u32 %v843, %v846
      %v848 = vrot.slane %v847, 4
      %v850 = vshll.u32 %v825, 16
      %v852 = vrot.slane %v850, 5
      %v853 = vsel %vm232, %v848, %v852
      %v855 = vshrl.u32 %v826, 16
      %v857 = vrot.slane %v855, 4
      %v858 = vshll.u32 %v826, 16
      %v860 = vrot.slane %v858, 5
      %v861 = vor.u32 %v857, %v860
      %v862 = vrot.slane %v861, 4
      %v864 = vshll.u32 %v827, 16
      %v866 = vrot.slane %v864, 5
      %v867 = vsel %vm232, %v862, %v866
      %v869 = vshrl.u32 %v828, 16
      %v871 = vrot.slane %v869, 4
      %v872 = vshll.u32 %v828, 16
      %v874 = vrot.slane %v872, 5
      %v875 = vor.u32 %v871, %v874
      %v876 = vrot.slane %v875, 4
      %v878 = vshll.u32 %v829, 16
      %v880 = vrot.slane %v878, 5
      %v881 = vsel %vm232, %v876, %v880
      %v883 = vshrl.u32 %v830, 16
      %v885 = vrot.slane %v883, 4
      %v886 = vshll.u32 %v830, 16
      %v888 = vrot.slane %v886, 5
      %v889 = vor.u32 %v885, %v888
      %v890 = vrot.slane %v889, 4
      %v892 = vshll.u32 %v831, 16
      %v894 = vrot.slane %v892, 5
      %v895 = vsel %vm232, %v890, %v894
      %v897 = vshrl.u32 %v832, 16
      %v899 = vrot.slane %v897, 4
      %v900 = vshll.u32 %v832, 16
      %v902 = vrot.slane %v900, 5
      %v903 = vor.u32 %v899, %v902
      %v904 = vrot.slane %v903, 4
      %v906 = vshll.u32 %v833, 16
      %v908 = vrot.slane %v906, 5
      %v909 = vsel %vm232, %v904, %v908
      %v911 = vshrl.u32 %v834, 16
      %v913 = vrot.slane %v911, 4
      %v914 = vshll.u32 %v834, 16
      %v916 = vrot.slane %v914, 5
      %v917 = vor.u32 %v913, %v916
      %v918 = vrot.slane %v917, 4
      %v920 = vshll.u32 %v835, 16
      %v922 = vrot.slane %v920, 5
      %v923 = vsel %vm232, %v918, %v922
      %v925 = vshrl.u32 %v836, 16
      %v927 = vrot.slane %v925, 4
      %v928 = vshll.u32 %v836, 16
      %v930 = vrot.slane %v928, 5
      %v931 = vor.u32 %v927, %v930
      %v932 = vrot.slane %v931, 4
      %v934 = vshll.u32 %v837, 16
      %v936 = vrot.slane %v934, 5
      %v937 = vsel %vm232, %v932, %v936
      %v939 = vshrl.u32 %v838, 16
      %v941 = vrot.slane %v939, 4
      %v942 = vshll.u32 %v838, 16
      %v944 = vrot.slane %v942, 5
      %v945 = vor.u32 %v941, %v944
      %v946 = vrot.slane %v945, 4
      %v948 = vshll.u32 %v839, 16
      %v950 = vrot.slane %v948, 5
      %v951 = vsel %vm232, %v946, %v950
      %s952 = scalar_lea.vmem %s1, 16
      %v953 = vld [vmem:[%s952] sm:$0xf]
      %v954 = vunpack.c.l.b16 %v853
      %v955 = vunpack.c.l.b16 %v867
      %v956 = vunpack.c.l.b16 %v881
      %v957 = vunpack.c.l.b16 %v895
      %v958 = vunpack.c.l.b16 %v909
      %v959 = vunpack.c.l.b16 %v923
      %v960 = vunpack.c.l.b16 %v937
      %v961 = vunpack.c.l.b16 %v951
      %v962 = vpack.c.b16 %v955, %v954
      %v963 = vpack.c.b16 %v957, %v956
      %v964 = vpack.c.b16 %v959, %v958
      %v965 = vpack.c.b16 %v961, %v960
      %v967 = vsel %vm359, %v962, 0
      %v970 = vsel %vm359, %v963, 0
      %v973 = vsel %vm359, %v964, 0
      %v976 = vsel %vm359, %v965, 0
      %v979 = vsel %vm372, %v953, 0
      %981 = vmatprep.subr.bf16.mxu0 0
      %982 = vmatpush1.bf16.msra.mxu0 %v979
      %983 = vmatprep.subr.bf16.mxu0 0
      %984 = vmatpush1.bf16.msra.mxu0 0
      %985 = vmatprep.subr.bf16.mxu0 0
      %986 = vmatpush1.bf16.msra.mxu0 0
      %987 = vmatprep.subr.bf16.mxu0 0
      %988 = vmatpush1.bf16.msra.mxu0 0
      %989 = vmatprep.subr.bf16.mxu0 0
      %990 = vmatpush1.bf16.msra.mxu0 0
      %991 = vmatprep.subr.bf16.mxu0 0
      %992 = vmatpush1.bf16.msra.mxu0 0
      %993 = vmatprep.subr.bf16.mxu0 0
      %994 = vmatpush1.bf16.msra.mxu0 0
      %995 = vmatprep.subr.bf16.mxu0 0
      %996 = vmatpush1.bf16.msra.mxu0 0
      %997 = vmatprep.subr.bf16.mxu0 0
      %998 = vmatpush1.bf16.msra.mxu0 0
      %999 = vmatprep.subr.bf16.mxu0 0
      %1000 = vmatpush1.bf16.msra.mxu0 0
      %1001 = vmatprep.subr.bf16.mxu0 0
      %1002 = vmatpush1.bf16.msra.mxu0 0
      %1003 = vmatprep.subr.bf16.mxu0 0
      %1004 = vmatpush1.bf16.msra.mxu0 0
      %1005 = vmatprep.subr.bf16.mxu0 0
      %1006 = vmatpush1.bf16.msra.mxu0 0
      %1007 = vmatprep.subr.bf16.mxu0 0
      %1008 = vmatpush1.bf16.msra.mxu0 0
      %1009 = vmatprep.subr.bf16.mxu0 0
      %1010 = vmatpush1.bf16.msra.mxu0 0
      %1011 = vmatprep.subr.bf16.mxu0 0
      %1012 = vmatpush1.bf16.msra.mxu0 0
      %1013 = vmatprep.mubr.bf16.mxu0 0
      %1014 = vmatmul.mubr.bf16.gmra.mrb[0].mxu0 %v967
      %v1015 = vpop.f32.mrb[0].mxu0
      %v1016 = vadd.f32 0.0, %v1015
      %v1017 = vpop.f32.mrb[0].mxu0
      %v1018 = vpop.f32.mrb[0].mxu0
      %v1019 = vadd.f32 0.0, %v1018
      %v1020 = vpop.f32.mrb[0].mxu0
      %1021 = vmatprep.mubr.bf16.mxu0 0
      %1022 = vmatmul.mubr.bf16.gmra.mrb[0].mxu0 %v970
      %v1023 = vpop.f32.mrb[0].mxu0
      %v1024 = vadd.f32 0.0, %v1023
      %v1025 = vpop.f32.mrb[0].mxu0
      %v1026 = vpop.f32.mrb[0].mxu0
      %v1027 = vadd.f32 0.0, %v1026
      %v1028 = vpop.f32.mrb[0].mxu0
      %1029 = vmatprep.mubr.bf16.mxu0 0
      %1030 = vmatmul.mubr.bf16.gmra.mrb[0].mxu0 %v973
      %v1031 = vpop.f32.mrb[0].mxu0
      %v1032 = vadd.f32 0.0, %v1031
      %v1033 = vpop.f32.mrb[0].mxu0
      %v1034 = vpop.f32.mrb[0].mxu0
      %v1035 = vadd.f32 0.0, %v1034
      %v1036 = vpop.f32.mrb[0].mxu0
      %1037 = vmatprep.mubr.bf16.mxu0 0
      %1038 = vmatmul.mubr.bf16.gmra.mrb[0].mxu0 %v976
      %v1039 = vpop.f32.mrb[0].mxu0
      %v1040 = vadd.f32 0.0, %v1039
      %v1041 = vpop.f32.mrb[0].mxu0
      %v1042 = vpop.f32.mrb[0].mxu0
      %v1043 = vadd.f32 0.0, %v1042
      %v1044 = vpop.f32.mrb[0].mxu0
      %1045 = vdwg.mxu0
      %v1046 = vadd.f32 %v816, %v1016
      %v1047 = vadd.f32 %v817, %v1019
      %v1048 = vadd.f32 %v818, %v1024
      %v1049 = vadd.f32 %v819, %v1027
      %v1050 = vadd.f32 %v820, %v1032
      %v1051 = vadd.f32 %v821, %v1035
      %v1052 = vadd.f32 %v822, %v1040
      %v1053 = vadd.f32 %v823, %v1043
      %v1054 = vld [vmem:[%s705] sm:$0xe]
      %v1055 = vld [vmem:[%s705 + $0x8] sm:$0xe]
      %v1056 = vld [vmem:[%s705 + $0x10] sm:$0xe]
      %v1057 = vld [vmem:[%s705 + $0x18] sm:$0xe]
      %v1058 = vld [vmem:[%s705 + $0x20] sm:$0xe]
      %v1059 = vld [vmem:[%s705 + $0x28] sm:$0xe]
      %v1060 = vld [vmem:[%s705 + $0x30] sm:$0xe]
      %v1061 = vld [vmem:[%s705 + $0x38] sm:$0xe]
      %v1078 = vrot.slane %v1054, 5
      %v1079 = vrot.slane %v1078, 4
      %v1080 = vrot.slane %v825, 5
      %v1081 = vsel %vm567, %v1079, %v1080
      %v1082 = vrot.slane %v1055, 5
      %v1083 = vrot.slane %v1082, 4
      %v1084 = vrot.slane %v827, 5
      %v1085 = vsel %vm567, %v1083, %v1084
      %v1086 = vrot.slane %v1056, 5
      %v1087 = vrot.slane %v1086, 4
      %v1088 = vrot.slane %v829, 5
      %v1089 = vsel %vm567, %v1087, %v1088
      %v1090 = vrot.slane %v1057, 5
      %v1091 = vrot.slane %v1090, 4
      %v1092 = vrot.slane %v831, 5
      %v1093 = vsel %vm567, %v1091, %v1092
      %v1094 = vrot.slane %v1058, 5
      %v1095 = vrot.slane %v1094, 4
      %v1096 = vrot.slane %v833, 5
      %v1097 = vsel %vm567, %v1095, %v1096
      %v1098 = vrot.slane %v1059, 5
      %v1099 = vrot.slane %v1098, 4
      %v1100 = vrot.slane %v835, 5
      %v1101 = vsel %vm567, %v1099, %v1100
      %v1102 = vrot.slane %v1060, 5
      %v1103 = vrot.slane %v1102, 4
      %v1104 = vrot.slane %v837, 5
      %v1105 = vsel %vm567, %v1103, %v1104
      %v1106 = vrot.slane %v1061, 5
      %v1107 = vrot.slane %v1106, 4
      %v1108 = vrot.slane %v839, 5
      %v1109 = vsel %vm567, %v1107, %v1108
      %s1110 = scalar_lea.vmem %s1, 20
      %v1111 = vld [vmem:[%s1110] sm:$0xf]
      %v1112 = vunpack.c.l.b16 %v1081
      %v1113 = vunpack.c.l.b16 %v1085
      %v1114 = vunpack.c.l.b16 %v1089
      %v1115 = vunpack.c.l.b16 %v1093
      %v1116 = vunpack.c.l.b16 %v1097
      %v1117 = vunpack.c.l.b16 %v1101
      %v1118 = vunpack.c.l.b16 %v1105
      %v1119 = vunpack.c.l.b16 %v1109
      %v1120 = vpack.c.b16 %v1113, %v1112
      %v1121 = vpack.c.b16 %v1115, %v1114
      %v1122 = vpack.c.b16 %v1117, %v1116
      %v1123 = vpack.c.b16 %v1119, %v1118
      %v1125 = vsel %vm359, %v1120, 0
      %v1128 = vsel %vm359, %v1121, 0
      %v1131 = vsel %vm359, %v1122, 0
      %v1134 = vsel %vm359, %v1123, 0
      %v1137 = vsel %vm372, %v1111, 0
      %1139 = vmatprep.subr.bf16.mxu0 0
      %1140 = vmatpush1.bf16.msra.mxu0 %v1137
      %1141 = vmatprep.subr.bf16.mxu0 0
      %1142 = vmatpush1.bf16.msra.mxu0 0
      %1143 = vmatprep.subr.bf16.mxu0 0
      %1144 = vmatpush1.bf16.msra.mxu0 0
      %1145 = vmatprep.subr.bf16.mxu0 0
      %1146 = vmatpush1.bf16.msra.mxu0 0
      %1147 = vmatprep.subr.bf16.mxu0 0
      %1148 = vmatpush1.bf16.msra.mxu0 0
      %1149 = vmatprep.subr.bf16.mxu0 0
      %1150 = vmatpush1.bf16.msra.mxu0 0
      %1151 = vmatprep.subr.bf16.mxu0 0
      %1152 = vmatpush1.bf16.msra.mxu0 0
      %1153 = vmatprep.subr.bf16.mxu0 0
      %1154 = vmatpush1.bf16.msra.mxu0 0
      %1155 = vmatprep.subr.bf16.mxu0 0
      %1156 = vmatpush1.bf16.msra.mxu0 0
      %1157 = vmatprep.subr.bf16.mxu0 0
      %1158 = vmatpush1.bf16.msra.mxu0 0
      %1159 = vmatprep.subr.bf16.mxu0 0
      %1160 = vmatpush1.bf16.msra.mxu0 0
      %1161 = vmatprep.subr.bf16.mxu0 0
      %1162 = vmatpush1.bf16.msra.mxu0 0
      %1163 = vmatprep.subr.bf16.mxu0 0
      %1164 = vmatpush1.bf16.msra.mxu0 0
      %1165 = vmatprep.subr.bf16.mxu0 0
      %1166 = vmatpush1.bf16.msra.mxu0 0
      %1167 = vmatprep.subr.bf16.mxu0 0
      %1168 = vmatpush1.bf16.msra.mxu0 0
      %1169 = vmatprep.subr.bf16.mxu0 0
      %1170 = vmatpush1.bf16.msra.mxu0 0
      %1171 = vmatprep.mubr.bf16.mxu0 0
      %1172 = vmatmul.mubr.bf16.gmra.mrb[0].mxu0 %v1125
      %v1173 = vpop.f32.mrb[0].mxu0
      %v1174 = vadd.f32 0.0, %v1173
      %v1175 = vpop.f32.mrb[0].mxu0
      %v1176 = vpop.f32.mrb[0].mxu0
      %v1177 = vadd.f32 0.0, %v1176
      %v1178 = vpop.f32.mrb[0].mxu0
      %1179 = vmatprep.mubr.bf16.mxu0 0
      %1180 = vmatmul.mubr.bf16.gmra.mrb[0].mxu0 %v1128
      %v1181 = vpop.f32.mrb[0].mxu0
      %v1182 = vadd.f32 0.0, %v1181
      %v1183 = vpop.f32.mrb[0].mxu0
      %v1184 = vpop.f32.mrb[0].mxu0
      %v1185 = vadd.f32 0.0, %v1184
      %v1186 = vpop.f32.mrb[0].mxu0
      %1187 = vmatprep.mubr.bf16.mxu0 0
      %1188 = vmatmul.mubr.bf16.gmra.mrb[0].mxu0 %v1131
      %v1189 = vpop.f32.mrb[0].mxu0
      %v1190 = vadd.f32 0.0, %v1189
      %v1191 = vpop.f32.mrb[0].mxu0
      %v1192 = vpop.f32.mrb[0].mxu0
      %v1193 = vadd.f32 0.0, %v1192
      %v1194 = vpop.f32.mrb[0].mxu0
      %1195 = vmatprep.mubr.bf16.mxu0 0
      %1196 = vmatmul.mubr.bf16.gmra.mrb[0].mxu0 %v1134
      %v1197 = vpop.f32.mrb[0].mxu0
      %v1198 = vadd.f32 0.0, %v1197
      %v1199 = vpop.f32.mrb[0].mxu0
      %v1200 = vpop.f32.mrb[0].mxu0
      %v1201 = vadd.f32 0.0, %v1200
      %v1202 = vpop.f32.mrb[0].mxu0
      %1203 = vdwg.mxu0
      %v1204 = vadd.f32 %v1046, %v1174
      %v1205 = vadd.f32 %v1047, %v1177
      %v1206 = vadd.f32 %v1048, %v1182
      %v1207 = vadd.f32 %v1049, %v1185
      %v1208 = vadd.f32 %v1050, %v1190
      %v1209 = vadd.f32 %v1051, %v1193
      %v1210 = vadd.f32 %v1052, %v1198
      %v1211 = vadd.f32 %v1053, %v1201
      %s1212 = sadd.s32 %s209, 2
      %s1213 = smul.u32 %s1212, 2
      %s1214 = smul.addr %s1213, 4
      %s1215 = scalar_lea.vmem %s192, %s1214
      %v1216 = vld [vmem:[%s1215] sm:$0xf]
      %v1217 = vld [vmem:[%s1215 + $0x8] sm:$0xf]
      %v1218 = vld [vmem:[%s1215 + $0x10] sm:$0xf]
      %v1219 = vld [vmem:[%s1215 + $0x18] sm:$0xf]
      %v1220 = vld [vmem:[%s1215 + $0x20] sm:$0xf]
      %v1221 = vld [vmem:[%s1215 + $0x28] sm:$0xf]
      %v1222 = vld [vmem:[%s1215 + $0x30] sm:$0xf]
      %v1223 = vld [vmem:[%s1215 + $0x38] sm:$0xf]
      %s1224 = scalar_lea.vmem %s1, 24
      %v1225 = vld [vmem:[%s1224] sm:$0xf]
      %v1234 = vunpack.c.l.b16 %v1216
      %v1235 = vunpack.c.l.b16 %v1217
      %v1236 = vunpack.c.l.b16 %v1218
      %v1237 = vunpack.c.l.b16 %v1219
      %v1238 = vunpack.c.l.b16 %v1220
      %v1239 = vunpack.c.l.b16 %v1221
      %v1240 = vunpack.c.l.b16 %v1222
      %v1241 = vunpack.c.l.b16 %v1223
      %v1242 = vpack.c.b16 %v1235, %v1234
      %v1243 = vpack.c.b16 %v1237, %v1236
      %v1244 = vpack.c.b16 %v1239, %v1238
      %v1245 = vpack.c.b16 %v1241, %v1240
      %v1247 = vsel %vm359, %v1242, 0
      %v1250 = vsel %vm359, %v1243, 0
      %v1253 = vsel %vm359, %v1244, 0
      %v1256 = vsel %vm359, %v1245, 0
      %v1259 = vsel %vm372, %v1225, 0
      %1261 = vmatprep.subr.bf16.mxu0 0
      %1262 = vmatpush1.bf16.msra.mxu0 %v1259
      %1263 = vmatprep.subr.bf16.mxu0 0
      %1264 = vmatpush1.bf16.msra.mxu0 0
      %1265 = vmatprep.subr.bf16.mxu0 0
      %1266 = vmatpush1.bf16.msra.mxu0 0
      %1267 = vmatprep.subr.bf16.mxu0 0
      %1268 = vmatpush1.bf16.msra.mxu0 0
      %1269 = vmatprep.subr.bf16.mxu0 0
      %1270 = vmatpush1.bf16.msra.mxu0 0
      %1271 = vmatprep.subr.bf16.mxu0 0
      %1272 = vmatpush1.bf16.msra.mxu0 0
      %1273 = vmatprep.subr.bf16.mxu0 0
      %1274 = vmatpush1.bf16.msra.mxu0 0
      %1275 = vmatprep.subr.bf16.mxu0 0
      %1276 = vmatpush1.bf16.msra.mxu0 0
      %1277 = vmatprep.subr.bf16.mxu0 0
      %1278 = vmatpush1.bf16.msra.mxu0 0
      %1279 = vmatprep.subr.bf16.mxu0 0
      %1280 = vmatpush1.bf16.msra.mxu0 0
      %1281 = vmatprep.subr.bf16.mxu0 0
      %1282 = vmatpush1.bf16.msra.mxu0 0
      %1283 = vmatprep.subr.bf16.mxu0 0
      %1284 = vmatpush1.bf16.msra.mxu0 0
      %1285 = vmatprep.subr.bf16.mxu0 0
      %1286 = vmatpush1.bf16.msra.mxu0 0
      %1287 = vmatprep.subr.bf16.mxu0 0
      %1288 = vmatpush1.bf16.msra.mxu0 0
      %1289 = vmatprep.subr.bf16.mxu0 0
      %1290 = vmatpush1.bf16.msra.mxu0 0
      %1291 = vmatprep.subr.bf16.mxu0 0
      %1292 = vmatpush1.bf16.msra.mxu0 0
      %1293 = vmatprep.mubr.bf16.mxu0 0
      %1294 = vmatmul.mubr.bf16.gmra.mrb[0].mxu0 %v1247
      %v1295 = vpop.f32.mrb[0].mxu0
      %v1296 = vadd.f32 0.0, %v1295
      %v1297 = vpop.f32.mrb[0].mxu0
      %v1298 = vpop.f32.mrb[0].mxu0
      %v1299 = vadd.f32 0.0, %v1298
      %v1300 = vpop.f32.mrb[0].mxu0
      %1301 = vmatprep.mubr.bf16.mxu0 0
      %1302 = vmatmul.mubr.bf16.gmra.mrb[0].mxu0 %v1250
      %v1303 = vpop.f32.mrb[0].mxu0
      %v1304 = vadd.f32 0.0, %v1303
      %v1305 = vpop.f32.mrb[0].mxu0
      %v1306 = vpop.f32.mrb[0].mxu0
      %v1307 = vadd.f32 0.0, %v1306
      %v1308 = vpop.f32.mrb[0].mxu0
      %1309 = vmatprep.mubr.bf16.mxu0 0
      %1310 = vmatmul.mubr.bf16.gmra.mrb[0].mxu0 %v1253
      %v1311 = vpop.f32.mrb[0].mxu0
      %v1312 = vadd.f32 0.0, %v1311
      %v1313 = vpop.f32.mrb[0].mxu0
      %v1314 = vpop.f32.mrb[0].mxu0
      %v1315 = vadd.f32 0.0, %v1314
      %v1316 = vpop.f32.mrb[0].mxu0
      %1317 = vmatprep.mubr.bf16.mxu0 0
      %1318 = vmatmul.mubr.bf16.gmra.mrb[0].mxu0 %v1256
      %v1319 = vpop.f32.mrb[0].mxu0
      %v1320 = vadd.f32 0.0, %v1319
      %v1321 = vpop.f32.mrb[0].mxu0
      %v1322 = vpop.f32.mrb[0].mxu0
      %v1323 = vadd.f32 0.0, %v1322
      %v1324 = vpop.f32.mrb[0].mxu0
      %1325 = vdwg.mxu0
      %v1326 = vadd.f32 %v1204, %v1296
      %v1327 = vadd.f32 %v1205, %v1299
      %v1328 = vadd.f32 %v1206, %v1304
      %v1329 = vadd.f32 %v1207, %v1307
      %v1330 = vadd.f32 %v1208, %v1312
      %v1331 = vadd.f32 %v1209, %v1315
      %v1332 = vadd.f32 %v1210, %v1320
      %v1333 = vadd.f32 %v1211, %v1323
      %v1334 = vld [vmem:[%s1215] sm:$0xf]
      %v1335 = vld [vmem:[%s1215 + $0x4] sm:$0x1]
      %v1336 = vld [vmem:[%s1215 + $0x8] sm:$0xf]
      %v1337 = vld [vmem:[%s1215 + $0xc] sm:$0x1]
      %v1338 = vld [vmem:[%s1215 + $0x10] sm:$0xf]
      %v1339 = vld [vmem:[%s1215 + $0x14] sm:$0x1]
      %v1340 = vld [vmem:[%s1215 + $0x18] sm:$0xf]
      %v1341 = vld [vmem:[%s1215 + $0x1c] sm:$0x1]
      %v1342 = vld [vmem:[%s1215 + $0x20] sm:$0xf]
      %v1343 = vld [vmem:[%s1215 + $0x24] sm:$0x1]
      %v1344 = vld [vmem:[%s1215 + $0x28] sm:$0xf]
      %v1345 = vld [vmem:[%s1215 + $0x2c] sm:$0x1]
      %v1346 = vld [vmem:[%s1215 + $0x30] sm:$0xf]
      %v1347 = vld [vmem:[%s1215 + $0x34] sm:$0x1]
      %v1348 = vld [vmem:[%s1215 + $0x38] sm:$0xf]
      %v1349 = vld [vmem:[%s1215 + $0x3c] sm:$0x1]
      %v1351 = vshrl.u32 %v1334, 16
      %v1353 = vrot.slane %v1351, 4
      %v1354 = vshll.u32 %v1334, 16
      %v1356 = vrot.slane %v1354, 5
      %v1357 = vor.u32 %v1353, %v1356
      %v1358 = vrot.slane %v1357, 4
      %v1360 = vshll.u32 %v1335, 16
      %v1362 = vrot.slane %v1360, 5
      %v1363 = vsel %vm232, %v1358, %v1362
      %v1365 = vshrl.u32 %v1336, 16
      %v1367 = vrot.slane %v1365, 4
      %v1368 = vshll.u32 %v1336, 16
      %v1370 = vrot.slane %v1368, 5
      %v1371 = vor.u32 %v1367, %v1370
      %v1372 = vrot.slane %v1371, 4
      %v1374 = vshll.u32 %v1337, 16
      %v1376 = vrot.slane %v1374, 5
      %v1377 = vsel %vm232, %v1372, %v1376
      %v1379 = vshrl.u32 %v1338, 16
      %v1381 = vrot.slane %v1379, 4
      %v1382 = vshll.u32 %v1338, 16
      %v1384 = vrot.slane %v1382, 5
      %v1385 = vor.u32 %v1381, %v1384
      %v1386 = vrot.slane %v1385, 4
      %v1388 = vshll.u32 %v1339, 16
      %v1390 = vrot.slane %v1388, 5
      %v1391 = vsel %vm232, %v1386, %v1390
      %v1393 = vshrl.u32 %v1340, 16
      %v1395 = vrot.slane %v1393, 4
      %v1396 = vshll.u32 %v1340, 16
      %v1398 = vrot.slane %v1396, 5
      %v1399 = vor.u32 %v1395, %v1398
      %v1400 = vrot.slane %v1399, 4
      %v1402 = vshll.u32 %v1341, 16
      %v1404 = vrot.slane %v1402, 5
      %v1405 = vsel %vm232, %v1400, %v1404
      %v1407 = vshrl.u32 %v1342, 16
      %v1409 = vrot.slane %v1407, 4
      %v1410 = vshll.u32 %v1342, 16
      %v1412 = vrot.slane %v1410, 5
      %v1413 = vor.u32 %v1409, %v1412
      %v1414 = vrot.slane %v1413, 4
      %v1416 = vshll.u32 %v1343, 16
      %v1418 = vrot.slane %v1416, 5
      %v1419 = vsel %vm232, %v1414, %v1418
      %v1421 = vshrl.u32 %v1344, 16
      %v1423 = vrot.slane %v1421, 4
      %v1424 = vshll.u32 %v1344, 16
      %v1426 = vrot.slane %v1424, 5
      %v1427 = vor.u32 %v1423, %v1426
      %v1428 = vrot.slane %v1427, 4
      %v1430 = vshll.u32 %v1345, 16
      %v1432 = vrot.slane %v1430, 5
      %v1433 = vsel %vm232, %v1428, %v1432
      %v1435 = vshrl.u32 %v1346, 16
      %v1437 = vrot.slane %v1435, 4
      %v1438 = vshll.u32 %v1346, 16
      %v1440 = vrot.slane %v1438, 5
      %v1441 = vor.u32 %v1437, %v1440
      %v1442 = vrot.slane %v1441, 4
      %v1444 = vshll.u32 %v1347, 16
      %v1446 = vrot.slane %v1444, 5
      %v1447 = vsel %vm232, %v1442, %v1446
      %v1449 = vshrl.u32 %v1348, 16
      %v1451 = vrot.slane %v1449, 4
      %v1452 = vshll.u32 %v1348, 16
      %v1454 = vrot.slane %v1452, 5
      %v1455 = vor.u32 %v1451, %v1454
      %v1456 = vrot.slane %v1455, 4
      %v1458 = vshll.u32 %v1349, 16
      %v1460 = vrot.slane %v1458, 5
      %v1461 = vsel %vm232, %v1456, %v1460
      %s1462 = scalar_lea.vmem %s1, 28
      %v1463 = vld [vmem:[%s1462] sm:$0xf]
      %v1464 = vunpack.c.l.b16 %v1363
      %v1465 = vunpack.c.l.b16 %v1377
      %v1466 = vunpack.c.l.b16 %v1391
      %v1467 = vunpack.c.l.b16 %v1405
      %v1468 = vunpack.c.l.b16 %v1419
      %v1469 = vunpack.c.l.b16 %v1433
      %v1470 = vunpack.c.l.b16 %v1447
      %v1471 = vunpack.c.l.b16 %v1461
      %v1472 = vpack.c.b16 %v1465, %v1464
      %v1473 = vpack.c.b16 %v1467, %v1466
      %v1474 = vpack.c.b16 %v1469, %v1468
      %v1475 = vpack.c.b16 %v1471, %v1470
      %v1477 = vsel %vm359, %v1472, 0
      %v1480 = vsel %vm359, %v1473, 0
      %v1483 = vsel %vm359, %v1474, 0
      %v1486 = vsel %vm359, %v1475, 0
      %v1489 = vsel %vm372, %v1463, 0
      %1491 = vmatprep.subr.bf16.mxu0 0
      %1492 = vmatpush1.bf16.msra.mxu0 %v1489
      %1493 = vmatprep.subr.bf16.mxu0 0
      %1494 = vmatpush1.bf16.msra.mxu0 0
      %1495 = vmatprep.subr.bf16.mxu0 0
      %1496 = vmatpush1.bf16.msra.mxu0 0
      %1497 = vmatprep.subr.bf16.mxu0 0
      %1498 = vmatpush1.bf16.msra.mxu0 0
      %1499 = vmatprep.subr.bf16.mxu0 0
      %1500 = vmatpush1.bf16.msra.mxu0 0
      %1501 = vmatprep.subr.bf16.mxu0 0
      %1502 = vmatpush1.bf16.msra.mxu0 0
      %1503 = vmatprep.subr.bf16.mxu0 0
      %1504 = vmatpush1.bf16.msra.mxu0 0
      %1505 = vmatprep.subr.bf16.mxu0 0
      %1506 = vmatpush1.bf16.msra.mxu0 0
      %1507 = vmatprep.subr.bf16.mxu0 0
      %1508 = vmatpush1.bf16.msra.mxu0 0
      %1509 = vmatprep.subr.bf16.mxu0 0
      %1510 = vmatpush1.bf16.msra.mxu0 0
      %1511 = vmatprep.subr.bf16.mxu0 0
      %1512 = vmatpush1.bf16.msra.mxu0 0
      %1513 = vmatprep.subr.bf16.mxu0 0
      %1514 = vmatpush1.bf16.msra.mxu0 0
      %1515 = vmatprep.subr.bf16.mxu0 0
      %1516 = vmatpush1.bf16.msra.mxu0 0
      %1517 = vmatprep.subr.bf16.mxu0 0
      %1518 = vmatpush1.bf16.msra.mxu0 0
      %1519 = vmatprep.subr.bf16.mxu0 0
      %1520 = vmatpush1.bf16.msra.mxu0 0
      %1521 = vmatprep.subr.bf16.mxu0 0
      %1522 = vmatpush1.bf16.msra.mxu0 0
      %1523 = vmatprep.mubr.bf16.mxu0 0
      %1524 = vmatmul.mubr.bf16.gmra.mrb[0].mxu0 %v1477
      %v1525 = vpop.f32.mrb[0].mxu0
      %v1526 = vadd.f32 0.0, %v1525
      %v1527 = vpop.f32.mrb[0].mxu0
      %v1528 = vpop.f32.mrb[0].mxu0
      %v1529 = vadd.f32 0.0, %v1528
      %v1530 = vpop.f32.mrb[0].mxu0
      %1531 = vmatprep.mubr.bf16.mxu0 0
      %1532 = vmatmul.mubr.bf16.gmra.mrb[0].mxu0 %v1480
      %v1533 = vpop.f32.mrb[0].mxu0
      %v1534 = vadd.f32 0.0, %v1533
      %v1535 = vpop.f32.mrb[0].mxu0
      %v1536 = vpop.f32.mrb[0].mxu0
      %v1537 = vadd.f32 0.0, %v1536
      %v1538 = vpop.f32.mrb[0].mxu0
      %1539 = vmatprep.mubr.bf16.mxu0 0
      %1540 = vmatmul.mubr.bf16.gmra.mrb[0].mxu0 %v1483
      %v1541 = vpop.f32.mrb[0].mxu0
      %v1542 = vadd.f32 0.0, %v1541
      %v1543 = vpop.f32.mrb[0].mxu0
      %v1544 = vpop.f32.mrb[0].mxu0
      %v1545 = vadd.f32 0.0, %v1544
      %v1546 = vpop.f32.mrb[0].mxu0
      %1547 = vmatprep.mubr.bf16.mxu0 0
      %1548 = vmatmul.mubr.bf16.gmra.mrb[0].mxu0 %v1486
      %v1549 = vpop.f32.mrb[0].mxu0
      %v1550 = vadd.f32 0.0, %v1549
      %v1551 = vpop.f32.mrb[0].mxu0
      %v1552 = vpop.f32.mrb[0].mxu0
      %v1553 = vadd.f32 0.0, %v1552
      %v1554 = vpop.f32.mrb[0].mxu0
      %1555 = vdwg.mxu0
      %v1556 = vadd.f32 %v1326, %v1526
      %v1557 = vadd.f32 %v1327, %v1529
      %v1558 = vadd.f32 %v1328, %v1534
      %v1559 = vadd.f32 %v1329, %v1537
      %v1560 = vadd.f32 %v1330, %v1542
      %v1561 = vadd.f32 %v1331, %v1545
      %v1562 = vadd.f32 %v1332, %v1550
      %v1563 = vadd.f32 %v1333, %v1553
      %v1564 = vld [vmem:[%s1215] sm:$0xe]
      %v1565 = vld [vmem:[%s1215 + $0x8] sm:$0xe]
      %v1566 = vld [vmem:[%s1215 + $0x10] sm:$0xe]
      %v1567 = vld [vmem:[%s1215 + $0x18] sm:$0xe]
      %v1568 = vld [vmem:[%s1215 + $0x20] sm:$0xe]
      %v1569 = vld [vmem:[%s1215 + $0x28] sm:$0xe]
      %v1570 = vld [vmem:[%s1215 + $0x30] sm:$0xe]
      %v1571 = vld [vmem:[%s1215 + $0x38] sm:$0xe]
      %v1588 = vrot.slane %v1564, 5
      %v1589 = vrot.slane %v1588, 4
      %v1590 = vrot.slane %v1335, 5
      %v1591 = vsel %vm567, %v1589, %v1590
      %v1592 = vrot.slane %v1565, 5
      %v1593 = vrot.slane %v1592, 4
      %v1594 = vrot.slane %v1337, 5
      %v1595 = vsel %vm567, %v1593, %v1594
      %v1596 = vrot.slane %v1566, 5
      %v1597 = vrot.slane %v1596, 4
      %v1598 = vrot.slane %v1339, 5
      %v1599 = vsel %vm567, %v1597, %v1598
      %v1600 = vrot.slane %v1567, 5
      %v1601 = vrot.slane %v1600, 4
      %v1602 = vrot.slane %v1341, 5
      %v1603 = vsel %vm567, %v1601, %v1602
      %v1604 = vrot.slane %v1568, 5
      %v1605 = vrot.slane %v1604, 4
      %v1606 = vrot.slane %v1343, 5
      %v1607 = vsel %vm567, %v1605, %v1606
      %v1608 = vrot.slane %v1569, 5
      %v1609 = vrot.slane %v1608, 4
      %v1610 = vrot.slane %v1345, 5
      %v1611 = vsel %vm567, %v1609, %v1610
      %v1612 = vrot.slane %v1570, 5
      %v1613 = vrot.slane %v1612, 4
      %v1614 = vrot.slane %v1347, 5
      %v1615 = vsel %vm567, %v1613, %v1614
      %v1616 = vrot.slane %v1571, 5
      %v1617 = vrot.slane %v1616, 4
      %v1618 = vrot.slane %v1349, 5
      %v1619 = vsel %vm567, %v1617, %v1618
      %s1620 = scalar_lea.vmem %s1, 32
      %v1621 = vld [vmem:[%s1620] sm:$0xf]
      %v1622 = vunpack.c.l.b16 %v1591
      %v1623 = vunpack.c.l.b16 %v1595
      %v1624 = vunpack.c.l.b16 %v1599
      %v1625 = vunpack.c.l.b16 %v1603
      %v1626 = vunpack.c.l.b16 %v1607
      %v1627 = vunpack.c.l.b16 %v1611
      %v1628 = vunpack.c.l.b16 %v1615
      %v1629 = vunpack.c.l.b16 %v1619
      %v1630 = vpack.c.b16 %v1623, %v1622
      %v1631 = vpack.c.b16 %v1625, %v1624
      %v1632 = vpack.c.b16 %v1627, %v1626
      %v1633 = vpack.c.b16 %v1629, %v1628
      %v1635 = vsel %vm359, %v1630, 0
      %v1638 = vsel %vm359, %v1631, 0
      %v1641 = vsel %vm359, %v1632, 0
      %v1644 = vsel %vm359, %v1633, 0
      %v1647 = vsel %vm372, %v1621, 0
      %1649 = vmatprep.subr.bf16.mxu0 0
      %1650 = vmatpush1.bf16.msra.mxu0 %v1647
      %1651 = vmatprep.subr.bf16.mxu0 0
      %1652 = vmatpush1.bf16.msra.mxu0 0
      %1653 = vmatprep.subr.bf16.mxu0 0
      %1654 = vmatpush1.bf16.msra.mxu0 0
      %1655 = vmatprep.subr.bf16.mxu0 0
      %1656 = vmatpush1.bf16.msra.mxu0 0
      %1657 = vmatprep.subr.bf16.mxu0 0
      %1658 = vmatpush1.bf16.msra.mxu0 0
      %1659 = vmatprep.subr.bf16.mxu0 0
      %1660 = vmatpush1.bf16.msra.mxu0 0
      %1661 = vmatprep.subr.bf16.mxu0 0
      %1662 = vmatpush1.bf16.msra.mxu0 0
      %1663 = vmatprep.subr.bf16.mxu0 0
      %1664 = vmatpush1.bf16.msra.mxu0 0
      %1665 = vmatprep.subr.bf16.mxu0 0
      %1666 = vmatpush1.bf16.msra.mxu0 0
      %1667 = vmatprep.subr.bf16.mxu0 0
      %1668 = vmatpush1.bf16.msra.mxu0 0
      %1669 = vmatprep.subr.bf16.mxu0 0
      %1670 = vmatpush1.bf16.msra.mxu0 0
      %1671 = vmatprep.subr.bf16.mxu0 0
      %1672 = vmatpush1.bf16.msra.mxu0 0
      %1673 = vmatprep.subr.bf16.mxu0 0
      %1674 = vmatpush1.bf16.msra.mxu0 0
      %1675 = vmatprep.subr.bf16.mxu0 0
      %1676 = vmatpush1.bf16.msra.mxu0 0
      %1677 = vmatprep.subr.bf16.mxu0 0
      %1678 = vmatpush1.bf16.msra.mxu0 0
      %1679 = vmatprep.subr.bf16.mxu0 0
      %1680 = vmatpush1.bf16.msra.mxu0 0
      %1681 = vmatprep.mubr.bf16.mxu0 0
      %1682 = vmatmul.mubr.bf16.gmra.mrb[0].mxu0 %v1635
      %v1683 = vpop.f32.mrb[0].mxu0
      %v1684 = vadd.f32 0.0, %v1683
      %v1685 = vpop.f32.mrb[0].mxu0
      %v1686 = vpop.f32.mrb[0].mxu0
      %v1687 = vadd.f32 0.0, %v1686
      %v1688 = vpop.f32.mrb[0].mxu0
      %1689 = vmatprep.mubr.bf16.mxu0 0
      %1690 = vmatmul.mubr.bf16.gmra.mrb[0].mxu0 %v1638
      %v1691 = vpop.f32.mrb[0].mxu0
      %v1692 = vadd.f32 0.0, %v1691
      %v1693 = vpop.f32.mrb[0].mxu0
      %v1694 = vpop.f32.mrb[0].mxu0
      %v1695 = vadd.f32 0.0, %v1694
      %v1696 = vpop.f32.mrb[0].mxu0
      %1697 = vmatprep.mubr.bf16.mxu0 0
      %1698 = vmatmul.mubr.bf16.gmra.mrb[0].mxu0 %v1641
      %v1699 = vpop.f32.mrb[0].mxu0
      %v1700 = vadd.f32 0.0, %v1699
      %v1701 = vpop.f32.mrb[0].mxu0
      %v1702 = vpop.f32.mrb[0].mxu0
      %v1703 = vadd.f32 0.0, %v1702
      %v1704 = vpop.f32.mrb[0].mxu0
      %1705 = vmatprep.mubr.bf16.mxu0 0
      %1706 = vmatmul.mubr.bf16.gmra.mrb[0].mxu0 %v1644
      %v1707 = vpop.f32.mrb[0].mxu0
      %v1708 = vadd.f32 0.0, %v1707
      %v1709 = vpop.f32.mrb[0].mxu0
      %v1710 = vpop.f32.mrb[0].mxu0
      %v1711 = vadd.f32 0.0, %v1710
      %v1712 = vpop.f32.mrb[0].mxu0
      %1713 = vdwg.mxu0
      %v1714 = vadd.f32 %v1556, %v1684
      %v1715 = vadd.f32 %v1557, %v1687
      %v1716 = vadd.f32 %v1558, %v1692
      %v1717 = vadd.f32 %v1559, %v1695
      %v1718 = vadd.f32 %v1560, %v1700
      %v1719 = vadd.f32 %v1561, %v1703
      %v1720 = vadd.f32 %v1562, %v1708
      %v1721 = vadd.f32 %v1563, %v1711
      %v1722 = vpack.c.bf16 %v1715, %v1714
      %v1723 = vpack.c.bf16 %v1717, %v1716
      %v1724 = vpack.c.bf16 %v1719, %v1718
      %v1725 = vpack.c.bf16 %v1721, %v1720
      %v1730 = vunpack.c.l.b16 %v1722
      %v1731 = vunpack.c.h.b16 %v1722
      %v1732 = vunpack.c.l.b16 %v1723
      %v1733 = vunpack.c.h.b16 %v1723
      %v1734 = vunpack.c.l.b16 %v1724
      %v1735 = vunpack.c.h.b16 %v1724
      %v1736 = vunpack.c.l.b16 %v1725
      %v1737 = vunpack.c.h.b16 %v1725
      %v1738 = vpack.c.b16 %v1730, %v1730
      %v1739 = vpack.c.b16 %v1731, %v1731
      %v1740 = vpack.c.b16 %v1732, %v1732
      %v1741 = vpack.c.b16 %v1733, %v1733
      %v1742 = vpack.c.b16 %v1734, %v1734
      %v1743 = vpack.c.b16 %v1735, %v1735
      %v1744 = vpack.c.b16 %v1736, %v1736
      %v1745 = vpack.c.b16 %v1737, %v1737
      %vm1754 = vcmask 60416
      %1755 = vst.msk [vmem:[%s198] sm:$0xf] %vm1754, %v1738
      %1756 = vst.msk [vmem:[%s198 + $0x4] sm:$0xf] %vm1754, %v1739
      %1757 = vst.msk [vmem:[%s198 + $0x8] sm:$0xf] %vm1754, %v1740
      %1758 = vst.msk [vmem:[%s198 + $0xc] sm:$0xf] %vm1754, %v1741
      %1759 = vst.msk [vmem:[%s198 + $0x10] sm:$0xf] %vm1754, %v1742
      %1760 = vst.msk [vmem:[%s198 + $0x14] sm:$0xf] %vm1754, %v1743
      %1761 = vst.msk [vmem:[%s198 + $0x18] sm:$0xf] %vm1754, %v1744
      %1762 = vst.msk [vmem:[%s198 + $0x1c] sm:$0xf] %vm1754, %v1745
      %v1763 = vsel %vm359, %v1714, 0.0
      %v1764 = vsel %vm359, %v1715, 0.0
      %v1765 = vadd.f32 %v1763, %v1764
      %v1766 = vsel %vm359, %v1716, 0.0
      %v1767 = vadd.f32 %v1765, %v1766
      %v1768 = vsel %vm359, %v1717, 0.0
      %v1769 = vadd.f32 %v1767, %v1768
      %v1770 = vsel %vm359, %v1718, 0.0
      %v1771 = vadd.f32 %v1769, %v1770
      %v1772 = vsel %vm359, %v1719, 0.0
      %v1773 = vadd.f32 %v1771, %v1772
      %v1774 = vsel %vm359, %v1720, 0.0
      %v1775 = vadd.f32 %v1773, %v1774
      %v1776 = vsel %vm359, %v1721, 0.0
      %v1777 = vadd.f32 %v1775, %v1776
      %v1778 = vrot.slane %v1777, 4
      %v1779 = vadd.f32 %v1777, %v1778
      %v1780 = vrot.slane %v1779, 2
      %v1781 = vadd.f32 %v1779, %v1780
      %v1782 = vrot.slane %v1781, 1
      %v1783 = vadd.f32 %v1781, %v1782
      %v1784 = vmul.f32 %v1714, %v1714
      %v1785 = vmul.f32 %v1715, %v1715
      %v1786 = vmul.f32 %v1716, %v1716
      %v1787 = vmul.f32 %v1717, %v1717
      %v1788 = vmul.f32 %v1718, %v1718
      %v1789 = vmul.f32 %v1719, %v1719
      %v1790 = vmul.f32 %v1720, %v1720
      %v1791 = vmul.f32 %v1721, %v1721
      %v1792 = vsel %vm359, %v1784, 0.0
      %v1793 = vsel %vm359, %v1785, 0.0
      %v1794 = vadd.f32 %v1792, %v1793
      %v1795 = vsel %vm359, %v1786, 0.0
      %v1796 = vadd.f32 %v1794, %v1795
      %v1797 = vsel %vm359, %v1787, 0.0
      %v1798 = vadd.f32 %v1796, %v1797
      %v1799 = vsel %vm359, %v1788, 0.0
      %v1800 = vadd.f32 %v1798, %v1799
      %v1801 = vsel %vm359, %v1789, 0.0
      %v1802 = vadd.f32 %v1800, %v1801
      %v1803 = vsel %vm359, %v1790, 0.0
      %v1804 = vadd.f32 %v1802, %v1803
      %v1805 = vsel %vm359, %v1791, 0.0
      %v1806 = vadd.f32 %v1804, %v1805
      %v1807 = vrot.slane %v1806, 4
      %v1808 = vadd.f32 %v1806, %v1807
      %v1809 = vrot.slane %v1808, 2
      %v1810 = vadd.f32 %v1808, %v1809
      %v1811 = vrot.slane %v1810, 1
      %v1812 = vadd.f32 %v1810, %v1811
      %vm1813 = vcmask 1040384
      %v1814 = vsel %vm1813, %v1783, %v1812
      %vm1815 = vcmask 58368
      %1816 = vst.msk [vmem:[%s207] sm:$0x3] %vm1815, %v1814
      %s1817 = sadd.s32 %s19, %s20
      %s1818 = smul.u32 8, %s1817
      %p1819 = scmp.lt.s32.totalorder %s1818, 15
      %s1820 = scalar_select %p1819, %s1818, 15
      %s1821 = smul.addr %s1820, 4
      %s1822 = scalar_lea.vmem %s2, %s1821
      %p1823 = scmp.lt.s32.totalorder %s19, 1
      %s1824 = scalar_select %p1823, %s19, 1
      %p1825 = scmp.lt.s32.totalorder %s20, 0
      %s1826 = scalar_select %p1825, %s20, 0
      %s1827 = sadd.s32 %s1826, %s1824
      %s1828 = smul.addr %s1827, 2
      %s1829 = scalar_lea.vmem %s3, %s1828
      // Predicated region
      $region29: #{downsample_block.6} parent=27 // pred_check
        %p1830 = pneg %p94
      $region30: #{downsample_block.6} parent=27 // pred_check_branch
        %1832 = sbr.rel (%p1830) target = $region32
      $region31: #{downsample_block.6} parent=27 // pred_region
        %s1833 = sadd.s32 %s19, %s20
        %s1834 = smul.u32 8, %s1833
      $region32: #{downsample_block.6} parent=27 // pred_fallthru
        _
      // Predicated region
      $region33: #{downsample_block.6} parent=27 // pred_check
        %p1835 = pneg %p122
      $region34: #{downsample_block.6} parent=27 // pred_check_branch
        %1837 = sbr.rel (%p1835) target = $region36
      $region35: #{downsample_block.6} parent=27 // pred_region
        _
      $region36: #{downsample_block.6} parent=27 // pred_fallthru
        _
    $region28: #{downsample_block.6} parent=5 // pred_fallthru
      _
    %p1838 = scmp.le.s32.totalorder 2, %s10
    // Predicated region
    $region37: #{downsample_block.6} parent=5 // pred_check
      %p1839 = pneg %p1838
    $region38: #{downsample_block.6} parent=5 // pred_check_branch
      %1841 = sbr.rel (%p1839) target = $region40
    $region39: #{downsample_block.6} parent=5 // pred_region
      %s1842 = ssub.s32 %s10, 2
      // Predicated region
      $region41: #{downsample_block.6} parent=39 // pred_check
        %p1843 = pneg %p100
      $region42: #{downsample_block.6} parent=39 // pred_check_branch
        %1845 = sbr.rel (%p1843) target = $region44
      $region43: #{downsample_block.6} parent=39 // pred_region
        %s1846 = sadd.s32 %s21, %s22
        %s1847 = smul.u32 8, %s1846
        %p1848 = scmp.lt.s32.totalorder %s1847, 15
        %s1849 = scalar_select %p1848, %s1847, 15
        %s1850 = smul.addr %s1849, 4
        %s1851 = scalar_lea.vmem %s2, %s1850
      $region44: #{downsample_block.6} parent=39 // pred_fallthru
        _
      // Predicated region
      $region45: #{downsample_block.6} parent=39 // pred_check
        %p1852 = pneg %p128
      $region46: #{downsample_block.6} parent=39 // pred_check_branch
        %1854 = sbr.rel (%p1852) target = $region48
      $region47: #{downsample_block.6} parent=39 // pred_region
        %p1855 = scmp.lt.s32.totalorder %s21, 1
        %s1856 = scalar_select %p1855, %s21, 1
        %p1857 = scmp.lt.s32.totalorder %s22, 0
        %s1858 = scalar_select %p1857, %s22, 0
        %s1859 = sadd.s32 %s1858, %s1856
        %s1860 = smul.addr %s1859, 2
        %s1861 = scalar_lea.vmem %s3, %s1860
      $region48: #{downsample_block.6} parent=39 // pred_fallthru
        _
    $region40: #{downsample_block.6} parent=5 // pred_fallthru
      _
  $region6: #{downsample_block.6} parent=0 // loop_footer
    %s14 = sadd.s32 1, %s10
  $region7: #{downsample_block.6} parent=0 // loop_footer_branch
    %9 = sbr.rel target = $region3
  $region8: #{downsample_block.6} parent=0 // loop_exit
    _

</llo_original>
